<compile_context>
chip_gen: v7x
topology: tpu7x:2x2x1
jax: 0.10.0
libtpu: 0.0.40
codegen_flags: <defaults>
</compile_context>

<pallas_src>
from functools import partial

import jax
import jax.numpy as jnp
from jax import lax
from jax.experimental import pallas as pl
from jax.experimental.pallas import tpu as pltpu


# ----------------------------- Pallas kernel ------------------------------- #

def _rgat_layer_kernel(x_ref, xdst_ref, w_ref, al_ref, ar_ref, adj_ref, bias_ref,
                       out_ref):
    """One (dst_tile, relation) grid step of a hetero GAT layer.

    x_ref    : (N_src, Kp)      bf16   flattened src features (prefix folded into lanes)
    xdst_ref : (dst_tile, Kp)   bf16   dst rows of x (dst nodes are the src prefix)
    w_ref    : (Kp, C)          bf16   block-diag (over prefix) fc weight of relation r
    al_ref   : (G, C)           bf16   block-diag attn_l matrix (el = A_l @ feat^T)
    ar_ref   : (G, C)           bf16   block-diag attn_r matrix
    adj_ref  : (dst_tile, N_src) f32   0/1 edge mask, adj[v,u]=1 iff u->v
    bias_ref : (1, C)           f32    per-relation bias (broadcast over prefix)
    out_ref  : (dst_tile, C)    f32    accumulator over relations (HeteroGraphConv 'sum')
    """
    r = pl.program_id(1)

    @pl.when(r == 0)
    def _():
        out_ref[...] = jnp.zeros_like(out_ref)

    w = w_ref[...]
    # fc projection for this relation: all prefix slots / heads fused on the lane axis.
    feat = jnp.dot(x_ref[...], w,
                   preferred_element_type=jnp.float32).astype(jnp.bfloat16)   # (N_src, C)
    feat_dst = jnp.dot(xdst_ref[...], w,
                       preferred_element_type=jnp.float32).astype(jnp.bfloat16)  # (dt, C)

    # Attention logits for all G = prefix*heads groups in one MXU call each.
    el = lax.dot_general(al_ref[...], feat, (((1,), (1,)), ((), ())),
                         preferred_element_type=jnp.float32)                  # (G, N_src)
    er = lax.dot_general(ar_ref[...], feat_dst, (((1,), (1,)), ((), ())),
                         preferred_element_type=jnp.float32)                  # (G, dt)

    adj = adj_ref[...]                                                        # (dt, N_src)
    scores = el[:, None, :] + er[:, :, None]                                  # (G, dt, Ns)
    scores = jnp.where(scores > 0, scores, 0.2 * scores)                      # LeakyReLU
    scores = scores + ((adj - 1.0) * 1e9)[None, :, :]                         # edge mask

    m = jnp.max(scores, axis=-1, keepdims=True)
    p = jnp.exp(scores - m)
    denom = jnp.sum(p, axis=-1, keepdims=True)
    alpha = (p * pl.reciprocal(denom, approx=True)).astype(jnp.bfloat16)      # (G, dt, Ns)

    # Zero-in-degree guard: rows without incoming edges get no aggregated message.
    has_edge = (jnp.sum(adj, axis=-1, keepdims=True) > 0).astype(jnp.float32)  # (dt, 1)

    g_cnt, c_dim = al_ref.shape
    f_dim = c_dim // g_cnt
    parts = [
        jnp.dot(alpha[g], feat[:, g * f_dim:(g + 1) * f_dim],
                preferred_element_type=jnp.float32)
        for g in range(g_cnt)
    ]
    rst = jnp.concatenate(parts, axis=-1) if g_cnt > 1 else parts[0]          # (dt, C)

    out_ref[...] = out_ref[...] + has_edge * rst + bias_ref[...]


# ------------------------------- JAX glue ---------------------------------- #

def _expand_params(W, attn_l, attn_r, bias, num_heads, prefix):
    """Build lane-fused, block-diagonal parameter tensors for the fused kernel."""
    R, in_feat, HF = W.shape
    H = num_heads
    F = HF // H
    P = 1
    for d in prefix:
        P *= d
    G = P * H
    C = G * F
    Kp = P * in_feat

    # Block-diagonal fc weight over the prefix: W_bd[r, p*in+i, p*HF+m] = W[r, i, m]
    eyeP = jnp.eye(P, dtype=jnp.float32)
    W_bd = jnp.einsum('pq,rim->rpiqm', eyeP, W).reshape(R, Kp, C)

    # Attention vectors broadcast over prefix, then block-expanded on the lane axis:
    # A[r, g, g*F+f] = attn[r, head(g), f]
    a_l = jnp.broadcast_to(attn_l.reshape(R, 1, H, F), (R, P, H, F)).reshape(R, G, F)
    a_r = jnp.broadcast_to(attn_r.reshape(R, 1, H, F), (R, P, H, F)).reshape(R, G, F)
    eyeG = jnp.eye(G, dtype=jnp.float32)
    A_l = jnp.einsum('gh,rgf->rghf', eyeG, a_l).reshape(R, G, C)
    A_r = jnp.einsum('gh,rgf->rghf', eyeG, a_r).reshape(R, G, C)

    b = jnp.broadcast_to(bias.reshape(R, 1, H, F), (R, P, H, F)).reshape(R, 1, C)

    return (W_bd.astype(jnp.bfloat16), A_l.astype(jnp.bfloat16),
            A_r.astype(jnp.bfloat16), b.astype(jnp.float32))


def gat_hetero_conv(x, adj, W, attn_l, attn_r, bias, num_heads):
    """One dglnn.HeteroGraphConv({rel: GATConv(in, out, num_heads)}) over one block.

    x   : (N_src, *prefix, in_feat)
    adj : (R, N_dst, N_src) 0/1 masks (dst nodes are the src prefix)
    Returns (N_dst, *prefix, num_heads, out_feat).
    """
    n_src = x.shape[0]
    prefix = x.shape[1:-1]
    in_feat = x.shape[-1]
    R = W.shape[0]
    H = num_heads
    F = W.shape[-1] // H
    P = 1
    for d in prefix:
        P *= d
    G = P * H
    C = G * F
    Kp = P * in_feat
    n_dst = adj.shape[1]

    W_bd, A_l, A_r, b = _expand_params(W, attn_l, attn_r, bias, H, prefix)
    x_flat = x.reshape(n_src, Kp).astype(jnp.bfloat16)   # pure reshape: no relayout copy
    adj_f = adj.astype(jnp.float32)

    # Destination-tile ("parallel") axis: 2 tiles when cleanly splittable (v7x megacore),
    # else a single full tile. Tile sizes respect the (8, 128) block constraint.
    dst_tile = n_dst // 2 if (n_dst % 16 == 0) else n_dst
    n_tiles = n_dst // dst_tile

    out = pl.pallas_call(
        _rgat_layer_kernel,
        out_shape=jax.ShapeDtypeStruct((n_dst, C), jnp.float32),
        grid_spec=pltpu.PrefetchScalarGridSpec(
            num_scalar_prefetch=0,
            grid=(n_tiles, R),  # relation axis last = reduction (output resident across r)
            in_specs=[
                pl.BlockSpec((n_src, Kp), lambda i, r: (0, 0)),            # x (all src)
                pl.BlockSpec((dst_tile, Kp), lambda i, r: (i, 0)),         # x (dst rows)
                pl.BlockSpec((None, Kp, C), lambda i, r: (r, 0, 0)),       # W_bd[r]
                pl.BlockSpec((None, G, C), lambda i, r: (r, 0, 0)),        # A_l[r]
                pl.BlockSpec((None, G, C), lambda i, r: (r, 0, 0)),        # A_r[r]
                pl.BlockSpec((None, dst_tile, n_src), lambda i, r: (r, i, 0)),  # adj[r]
                pl.BlockSpec((None, 1, C), lambda i, r: (r, 0, 0)),        # bias[r]
            ],
            out_specs=pl.BlockSpec((dst_tile, C), lambda i, r: (i, 0)),
        ),
        compiler_params=pltpu.CompilerParams(
            dimension_semantics=("parallel", "arbitrary")),
    )(x_flat, x_flat, W_bd, A_l, A_r, adj_f, b)

    # Lane layout is (prefix, head, feat)-major, so this is a pure reshape (no transpose).
    return out.reshape((n_dst,) + prefix + (H, F))


@partial(jax.jit, static_argnames=("num_heads",))
def stochastic_two_layer_rgcn(blocks_adj, x, params, num_heads=4):
    adj0, adj1 = blocks_adj
    h = gat_hetero_conv(x, adj0, params["W1"], params["al1"], params["ar1"],
                        params["b1"], num_heads)
    h = gat_hetero_conv(h, adj1, params["W2"], params["al2"], params["ar2"],
                        params["b2"], num_heads)
    return h


# --------------------------------- main ------------------------------------ #

if __name__ == "__main__":
    key = jax.random.PRNGKey(0)
    in_feat, hidden_feat, out_feat = 16, 8, 8
    H = 4
    rel_names = ("writes", "cites", "affiliated")
    R = len(rel_names)
    # block 0: 24 src nodes -> 16 dst nodes ; block 1: 16 src nodes -> 8 dst nodes
    n0_src, n0_dst, n1_dst = 24, 16, 8

    ks = jax.random.split(key, 10)
    params = {
        "W1": 0.1 * jax.random.normal(ks[0], (R, in_feat, H * hidden_feat), jnp.float32),
        "al1": 0.1 * jax.random.normal(ks[1], (R, H, hidden_feat), jnp.float32),
        "ar1": 0.1 * jax.random.normal(ks[2], (R, H, hidden_feat), jnp.float32),
        "b1": jnp.zeros((R, H, hidden_feat), jnp.float32),      # DGL GATConv bias init = 0
        "W2": 0.1 * jax.random.normal(ks[3], (R, hidden_feat, H * out_feat), jnp.float32),
        "al2": 0.1 * jax.random.normal(ks[4], (R, H, out_feat), jnp.float32),
        "ar2": 0.1 * jax.random.normal(ks[5], (R, H, out_feat), jnp.float32),
        "b2": jnp.zeros((R, H, out_feat), jnp.float32),
    }

    def make_adj(k, r, n_dst, n_src):
        a = (jax.random.uniform(k, (r, n_dst, n_src)) < 0.3).astype(jnp.float32)
        eye = jnp.eye(n_dst, n_src, dtype=jnp.float32)          # dst nodes are src prefix:
        return jnp.maximum(a, eye[None])                        # guarantees in-degree >= 1

    adj0 = make_adj(ks[6], R, n0_dst, n0_src)   # block 0, per relation
    adj1 = make_adj(ks[7], R, n1_dst, n0_dst)   # block 1, per relation
    x = jax.random.normal(ks[8], (n0_src, in_feat), jnp.float32)

    out = stochastic_two_layer_rgcn((adj0, adj1), x, params, num_heads=H)
    out = jax.block_until_ready(out)
    assert out.shape == (n1_dst, H, H, out_feat), out.shape
    assert bool(jnp.all(jnp.isfinite(out)))
    print("KERNEL_OK")
</pallas_src>

<mosaic_0001>
module attributes {stable_mosaic.version = 11 : i64} {
  func.func @_rgat_layer_kernel(%arg0: i32, %arg1: i32, %arg2: memref<24x16xbf16, #tpu.memory_space<vmem>>, %arg3: memref<8x16xbf16, #tpu.memory_space<vmem>>, %arg4: memref<1x16x32xbf16, #tpu.memory_space<vmem>>, %arg5: memref<1x4x32xbf16, #tpu.memory_space<vmem>>, %arg6: memref<1x4x32xbf16, #tpu.memory_space<vmem>>, %arg7: memref<1x8x24xf32, #tpu.memory_space<vmem>>, %arg8: memref<1x1x32xf32, #tpu.memory_space<vmem>>, %arg9: memref<8x32xf32, #tpu.memory_space<vmem>>) attributes {dimension_semantics = [#tpu.dimension_semantics<parallel>, #tpu.dimension_semantics<arbitrary>], iteration_bounds = array<i64: 2, 3>, scalar_prefetch = 0 : i64, scratch_operands = 0 : i64, tpu.core_type = #tpu.core_type<tc>, window_params = [{pipeline_mode = #tpu.pipeline_mode<synchronous>, transform_indices = @transform_0, window_bounds = array<i64: 24, 16>}, {transform_indices = @transform_1, window_bounds = array<i64: 8, 16>}, {transform_indices = @transform_2, window_bounds = array<i64: 1, 16, 32>}, {transform_indices = @transform_3, window_bounds = array<i64: 1, 4, 32>}, {transform_indices = @transform_4, window_bounds = array<i64: 1, 4, 32>}, {transform_indices = @transform_5, window_bounds = array<i64: 1, 8, 24>}, {transform_indices = @transform_6, window_bounds = array<i64: 1, 1, 32>}, {transform_indices = @transform_7, window_bounds = array<i64: 8, 32>}]} {
    %c0_i32 = arith.constant 0 : i32
    %0 = arith.cmpi eq, %arg1, %c0_i32 : i32
    %1 = arith.extui %0 : i1 to i32
    %c0_i32_0 = arith.constant 0 : i32
    %2 = arith.cmpi ne, %1, %c0_i32_0 : i32
    scf.if %2 {
      %cst_38 = arith.constant 0.000000e+00 : f32
      %79 = vector.broadcast %cst_38 : f32 to vector<8x32xf32>
      %c0_39 = arith.constant 0 : index
      %c0_40 = arith.constant 0 : index
      %80 = vector.load %arg9[%c0_39, %c0_40] : memref<8x32xf32, #tpu.memory_space<vmem>>, vector<8x32xf32>
      tpu.vector_store %arg9[%c0_39, %c0_40], %79 {strides = array<i32>} : memref<8x32xf32, #tpu.memory_space<vmem>>, vector<8x32xf32>,
    } else {
    }
    %c0 = arith.constant 0 : index
    %c0_1 = arith.constant 0 : index
    %c0_2 = arith.constant 0 : index
    %3 = vector.load %arg4[%c0, %c0_1, %c0_2] : memref<1x16x32xbf16, #tpu.memory_space<vmem>>, vector<1x16x32xbf16>
    %4 = vector.shape_cast %3 : vector<1x16x32xbf16> to vector<16x32xbf16>
    %c0_3 = arith.constant 0 : index
    %c0_4 = arith.constant 0 : index
    %5 = vector.load %arg2[%c0_3, %c0_4] : memref<24x16xbf16, #tpu.memory_space<vmem>>, vector<24x16xbf16>
    %cst = arith.constant dense<0.000000e+00> : vector<24x32xf32>
    %6 = tpu.matmul %5, %4, %cst {dimension_numbers = #tpu.dot_dimension_numbers<[1], [0], [0], [1], [0, 0, 1, 1], [], []>} : vector<24x16xbf16>, vector<16x32xbf16>, vector<24x32xf32> -> vector<24x32xf32>
    %7 = arith.truncf %6 : vector<24x32xf32> to vector<24x32xbf16>
    %c0_5 = arith.constant 0 : index
    %c0_6 = arith.constant 0 : index
    %8 = vector.load %arg3[%c0_5, %c0_6] : memref<8x16xbf16, #tpu.memory_space<vmem>>, vector<8x16xbf16>
    %cst_7 = arith.constant dense<0.000000e+00> : vector<8x32xf32>
    %9 = tpu.matmul %8, %4, %cst_7 {dimension_numbers = #tpu.dot_dimension_numbers<[1], [0], [0], [1], [0, 0, 1, 1], [], []>} : vector<8x16xbf16>, vector<16x32xbf16>, vector<8x32xf32> -> vector<8x32xf32>
    %10 = arith.truncf %9 : vector<8x32xf32> to vector<8x32xbf16>
    %c0_8 = arith.constant 0 : index
    %c0_9 = arith.constant 0 : index
    %c0_10 = arith.constant 0 : index
    %11 = vector.load %arg5[%c0_8, %c0_9, %c0_10] : memref<1x4x32xbf16, #tpu.memory_space<vmem>>, vector<1x4x32xbf16>
    %12 = vector.shape_cast %11 : vector<1x4x32xbf16> to vector<4x32xbf16>
    %cst_11 = arith.constant dense<0.000000e+00> : vector<4x24xf32>
    %13 = tpu.matmul %12, %7, %cst_11 {dimension_numbers = #tpu.dot_dimension_numbers<[1], [1], [0], [0], [0, 0, 1, 0], [], []>} : vector<4x32xbf16>, vector<24x32xbf16>, vector<4x24xf32> -> vector<4x24xf32>
    %c0_12 = arith.constant 0 : index
    %c0_13 = arith.constant 0 : index
    %c0_14 = arith.constant 0 : index
    %14 = vector.load %arg6[%c0_12, %c0_13, %c0_14] : memref<1x4x32xbf16, #tpu.memory_space<vmem>>, vector<1x4x32xbf16>
    %15 = vector.shape_cast %14 : vector<1x4x32xbf16> to vector<4x32xbf16>
    %cst_15 = arith.constant dense<0.000000e+00> : vector<4x8xf32>
    %16 = tpu.matmul %15, %10, %cst_15 {dimension_numbers = #tpu.dot_dimension_numbers<[1], [1], [0], [0], [0, 0, 1, 0], [], []>} : vector<4x32xbf16>, vector<8x32xbf16>, vector<4x8xf32> -> vector<4x8xf32>
    %c0_16 = arith.constant 0 : index
    %c0_17 = arith.constant 0 : index
    %c0_18 = arith.constant 0 : index
    %17 = vector.load %arg7[%c0_16, %c0_17, %c0_18] : memref<1x8x24xf32, #tpu.memory_space<vmem>>, vector<1x8x24xf32>
    %18 = vector.shape_cast %17 : vector<1x8x24xf32> to vector<8x24xf32>
    %19 = vector.shape_cast %13 : vector<4x24xf32> to vector<4x1x24xf32>
    %20 = vector.shape_cast %16 : vector<4x8xf32> to vector<4x8x1xf32>
    %21 = vector.broadcast %19 : vector<4x1x24xf32> to vector<4x8x24xf32>
    %22 = vector.broadcast %20 : vector<4x8x1xf32> to vector<4x8x24xf32>
    %23 = arith.addf %21, %22 : vector<4x8x24xf32>
    %cst_19 = arith.constant 0.000000e+00 : f32
    %24 = vector.broadcast %cst_19 : f32 to vector<4x8x24xf32>
    %25 = arith.cmpf ogt, %23, %24 : vector<4x8x24xf32>
    %cst_20 = arith.constant 2.000000e-01 : f32
    %26 = vector.broadcast %cst_20 : f32 to vector<4x8x24xf32>
    %27 = arith.mulf %26, %23 : vector<4x8x24xf32>
    %28 = arith.select %25, %23, %27 : vector<4x8x24xi1>, vector<4x8x24xf32>
    %cst_21 = arith.constant 1.000000e+00 : f32
    %29 = vector.broadcast %cst_21 : f32 to vector<8x24xf32>
    %30 = arith.subf %18, %29 : vector<8x24xf32>
    %cst_22 = arith.constant 1.000000e+09 : f32
    %31 = vector.broadcast %cst_22 : f32 to vector<8x24xf32>
    %32 = arith.mulf %30, %31 : vector<8x24xf32>
    %33 = vector.shape_cast %32 : vector<8x24xf32> to vector<1x8x24xf32>
    %34 = vector.broadcast %33 : vector<1x8x24xf32> to vector<4x8x24xf32>
    %35 = arith.addf %28, %34 : vector<4x8x24xf32>
    %cst_23 = arith.constant dense<0xFF800000> : vector<4x8xf32>
    %36 = vector.multi_reduction <maximumf>, %35, %cst_23 [2] : vector<4x8x24xf32> to vector<4x8xf32>
    %37 = vector.shape_cast %36 : vector<4x8xf32> to vector<4x8x1xf32>
    %38 = vector.broadcast %37 : vector<4x8x1xf32> to vector<4x8x24xf32>
    %39 = arith.subf %35, %38 : vector<4x8x24xf32>
    %40 = math.exp %39 : vector<4x8x24xf32>
    %cst_24 = arith.constant dense<0.000000e+00> : vector<4x8xf32>
    %41 = vector.multi_reduction <add>, %40, %cst_24 [2] : vector<4x8x24xf32> to vector<4x8xf32>
    %42 = vector.shape_cast %41 : vector<4x8xf32> to vector<4x8x1xf32>
    %43 = tpu.reciprocal %42 {approx = true} : vector<4x8x1xf32> -> vector<4x8x1xf32>
    %44 = vector.broadcast %43 : vector<4x8x1xf32> to vector<4x8x24xf32>
    %45 = arith.mulf %40, %44 : vector<4x8x24xf32>
    %46 = arith.truncf %45 : vector<4x8x24xf32> to vector<4x8x24xbf16>
    %cst_25 = arith.constant dense<0.000000e+00> : vector<8xf32>
    %47 = vector.multi_reduction <add>, %18, %cst_25 [1] : vector<8x24xf32> to vector<8xf32>
    %48 = vector.shape_cast %47 : vector<8xf32> to vector<8x1xf32>
    %cst_26 = arith.constant 0.000000e+00 : f32
    %49 = vector.broadcast %cst_26 : f32 to vector<8x1xf32>
    %50 = arith.cmpf ogt, %48, %49 : vector<8x1xf32>
    %51 = arith.extui %50 : vector<8x1xi1> to vector<8x1xi32>
    %52 = arith.sitofp %51 : vector<8x1xi32> to vector<8x1xf32>
    %53 = vector.extract_strided_slice %46 {offsets = [0, 0, 0], sizes = [1, 8, 24], strides = [1, 1, 1]} : vector<4x8x24xbf16> to vector<1x8x24xbf16>
    %54 = vector.shape_cast %53 : vector<1x8x24xbf16> to vector<8x24xbf16>
    %55 = vector.extract_strided_slice %7 {offsets = [0, 0], sizes = [24, 8], strides = [1, 1]} : vector<24x32xbf16> to vector<24x8xbf16>
    %cst_27 = arith.constant dense<0.000000e+00> : vector<8x8xf32>
    %56 = tpu.matmul %54, %55, %cst_27 {dimension_numbers = #tpu.dot_dimension_numbers<[1], [0], [0], [1], [0, 0, 1, 1], [], []>} : vector<8x24xbf16>, vector<24x8xbf16>, vector<8x8xf32> -> vector<8x8xf32>
    %57 = vector.extract_strided_slice %46 {offsets = [1, 0, 0], sizes = [1, 8, 24], strides = [1, 1, 1]} : vector<4x8x24xbf16> to vector<1x8x24xbf16>
    %58 = vector.shape_cast %57 : vector<1x8x24xbf16> to vector<8x24xbf16>
    %59 = vector.extract_strided_slice %7 {offsets = [0, 8], sizes = [24, 8], strides = [1, 1]} : vector<24x32xbf16> to vector<24x8xbf16>
    %cst_28 = arith.constant dense<0.000000e+00> : vector<8x8xf32>
    %60 = tpu.matmul %58, %59, %cst_28 {dimension_numbers = #tpu.dot_dimension_numbers<[1], [0], [0], [1], [0, 0, 1, 1], [], []>} : vector<8x24xbf16>, vector<24x8xbf16>, vector<8x8xf32> -> vector<8x8xf32>
    %61 = vector.extract_strided_slice %46 {offsets = [2, 0, 0], sizes = [1, 8, 24], strides = [1, 1, 1]} : vector<4x8x24xbf16> to vector<1x8x24xbf16>
    %62 = vector.shape_cast %61 : vector<1x8x24xbf16> to vector<8x24xbf16>
    %63 = vector.extract_strided_slice %7 {offsets = [0, 16], sizes = [24, 8], strides = [1, 1]} : vector<24x32xbf16> to vector<24x8xbf16>
    %cst_29 = arith.constant dense<0.000000e+00> : vector<8x8xf32>
    %64 = tpu.matmul %62, %63, %cst_29 {dimension_numbers = #tpu.dot_dimension_numbers<[1], [0], [0], [1], [0, 0, 1, 1], [], []>} : vector<8x24xbf16>, vector<24x8xbf16>, vector<8x8xf32> -> vector<8x8xf32>
    %65 = vector.extract_strided_slice %46 {offsets = [3, 0, 0], sizes = [1, 8, 24], strides = [1, 1, 1]} : vector<4x8x24xbf16> to vector<1x8x24xbf16>
    %66 = vector.shape_cast %65 : vector<1x8x24xbf16> to vector<8x24xbf16>
    %67 = vector.extract_strided_slice %7 {offsets = [0, 24], sizes = [24, 8], strides = [1, 1]} : vector<24x32xbf16> to vector<24x8xbf16>
    %cst_30 = arith.constant dense<0.000000e+00> : vector<8x8xf32>
    %68 = tpu.matmul %66, %67, %cst_30 {dimension_numbers = #tpu.dot_dimension_numbers<[1], [0], [0], [1], [0, 0, 1, 1], [], []>} : vector<8x24xbf16>, vector<24x8xbf16>, vector<8x8xf32> -> vector<8x8xf32>
    %69 = tpu.concatenate %56, %60, %64, %68 in 1 : vector<8x8xf32>, vector<8x8xf32>, vector<8x8xf32>, vector<8x8xf32> -> vector<8x32xf32>
    %c0_31 = arith.constant 0 : index
    %c0_32 = arith.constant 0 : index
    %70 = vector.load %arg9[%c0_31, %c0_32] : memref<8x32xf32, #tpu.memory_space<vmem>>, vector<8x32xf32>
    %71 = vector.broadcast %52 : vector<8x1xf32> to vector<8x32xf32>
    %72 = arith.mulf %71, %69 : vector<8x32xf32>
    %73 = arith.addf %70, %72 : vector<8x32xf32>
    %c0_33 = arith.constant 0 : index
    %c0_34 = arith.constant 0 : index
    %c0_35 = arith.constant 0 : index
    %74 = vector.load %arg8[%c0_33, %c0_34, %c0_35] : memref<1x1x32xf32, #tpu.memory_space<vmem>>, vector<1x1x32xf32>
    %75 = vector.shape_cast %74 : vector<1x1x32xf32> to vector<1x32xf32>
    %76 = vector.broadcast %75 : vector<1x32xf32> to vector<8x32xf32>
    %77 = arith.addf %73, %76 : vector<8x32xf32>
    %c0_36 = arith.constant 0 : index
    %c0_37 = arith.constant 0 : index
    %78 = vector.load %arg9[%c0_36, %c0_37] : memref<8x32xf32, #tpu.memory_space<vmem>>, vector<8x32xf32>
    tpu.vector_store %arg9[%c0_36, %c0_37], %77 {strides = array<i32>} : memref<8x32xf32, #tpu.memory_space<vmem>>, vector<8x32xf32>,
    return
  }
  func.func @transform_0(%arg0: i32, %arg1: i32) -> (i32, i32) {
    %c0_i32 = arith.constant 0 : i32
    %c0_i32_0 = arith.constant 0 : i32
    %c0_i32_1 = arith.constant 0 : i32
    return %c0_i32, %c0_i32_0 : i32, i32
  }
  func.func @transform_1(%arg0: i32, %arg1: i32) -> (i32, i32) {
    %c0_i32 = arith.constant 0 : i32
    %c0_i32_0 = arith.constant 0 : i32
    return %arg0, %c0_i32 : i32, i32
  }
  func.func @transform_2(%arg0: i32, %arg1: i32) -> (i32, i32, i32) {
    %c0_i32 = arith.constant 0 : i32
    %c0_i32_0 = arith.constant 0 : i32
    %c0_i32_1 = arith.constant 0 : i32
    return %arg1, %c0_i32, %c0_i32_0 : i32, i32, i32
  }
  func.func @transform_3(%arg0: i32, %arg1: i32) -> (i32, i32, i32) {
    %c0_i32 = arith.constant 0 : i32
    %c0_i32_0 = arith.constant 0 : i32
    %c0_i32_1 = arith.constant 0 : i32
    return %arg1, %c0_i32, %c0_i32_0 : i32, i32, i32
  }
  func.func @transform_4(%arg0: i32, %arg1: i32) -> (i32, i32, i32) {
    %c0_i32 = arith.constant 0 : i32
    %c0_i32_0 = arith.constant 0 : i32
    %c0_i32_1 = arith.constant 0 : i32
    return %arg1, %c0_i32, %c0_i32_0 : i32, i32, i32
  }
  func.func @transform_5(%arg0: i32, %arg1: i32) -> (i32, i32, i32) {
    %c0_i32 = arith.constant 0 : i32
    %c0_i32_0 = arith.constant 0 : i32
    return %arg1, %arg0, %c0_i32 : i32, i32, i32
  }
  func.func @transform_6(%arg0: i32, %arg1: i32) -> (i32, i32, i32) {
    %c0_i32 = arith.constant 0 : i32
    %c0_i32_0 = arith.constant 0 : i32
    %c0_i32_1 = arith.constant 0 : i32
    return %arg1, %c0_i32, %c0_i32_0 : i32, i32, i32
  }
  func.func @transform_7(%arg0: i32, %arg1: i32) -> (i32, i32) {
    %c0_i32 = arith.constant 0 : i32
    %c0_i32_0 = arith.constant 0 : i32
    return %arg0, %c0_i32 : i32, i32
  }
}

module attributes {stable_mosaic.version = 11 : i64} {
  func.func @_rgat_layer_kernel(%arg0: i32, %arg1: i32, %arg2: memref<16x32xbf16, #tpu.memory_space<vmem>>, %arg3: memref<8x32xbf16, #tpu.memory_space<vmem>>, %arg4: memref<1x32x128xbf16, #tpu.memory_space<vmem>>, %arg5: memref<1x16x128xbf16, #tpu.memory_space<vmem>>, %arg6: memref<1x16x128xbf16, #tpu.memory_space<vmem>>, %arg7: memref<1x8x16xf32, #tpu.memory_space<vmem>>, %arg8: memref<1x1x128xf32, #tpu.memory_space<vmem>>, %arg9: memref<8x128xf32, #tpu.memory_space<vmem>>) attributes {dimension_semantics = [#tpu.dimension_semantics<parallel>, #tpu.dimension_semantics<arbitrary>], iteration_bounds = array<i64: 1, 3>, scalar_prefetch = 0 : i64, scratch_operands = 0 : i64, tpu.core_type = #tpu.core_type<tc>, window_params = [{pipeline_mode = #tpu.pipeline_mode<synchronous>, transform_indices = @transform_0, window_bounds = array<i64: 16, 32>}, {transform_indices = @transform_1, window_bounds = array<i64: 8, 32>}, {transform_indices = @transform_2, window_bounds = array<i64: 1, 32, 128>}, {transform_indices = @transform_3, window_bounds = array<i64: 1, 16, 128>}, {transform_indices = @transform_4, window_bounds = array<i64: 1, 16, 128>}, {transform_indices = @transform_5, window_bounds = array<i64: 1, 8, 16>}, {transform_indices = @transform_6, window_bounds = array<i64: 1, 1, 128>}, {transform_indices = @transform_7, window_bounds = array<i64: 8, 128>}]} {
    %c0_i32 = arith.constant 0 : i32
    %0 = arith.cmpi eq, %arg1, %c0_i32 : i32
    %1 = arith.extui %0 : i1 to i32
    %c0_i32_0 = arith.constant 0 : i32
    %2 = arith.cmpi ne, %1, %c0_i32_0 : i32
    scf.if %2 {
      %cst_50 = arith.constant 0.000000e+00 : f32
      %127 = vector.broadcast %cst_50 : f32 to vector<8x128xf32>
      %c0_51 = arith.constant 0 : index
      %c0_52 = arith.constant 0 : index
      %128 = vector.load %arg9[%c0_51, %c0_52] : memref<8x128xf32, #tpu.memory_space<vmem>>, vector<8x128xf32>
      tpu.vector_store %arg9[%c0_51, %c0_52], %127 {strides = array<i32>} : memref<8x128xf32, #tpu.memory_space<vmem>>, vector<8x128xf32>,
    } else {
    }
    %c0 = arith.constant 0 : index
    %c0_1 = arith.constant 0 : index
    %c0_2 = arith.constant 0 : index
    %3 = vector.load %arg4[%c0, %c0_1, %c0_2] : memref<1x32x128xbf16, #tpu.memory_space<vmem>>, vector<1x32x128xbf16>
    %4 = vector.shape_cast %3 : vector<1x32x128xbf16> to vector<32x128xbf16>
    %c0_3 = arith.constant 0 : index
    %c0_4 = arith.constant 0 : index
    %5 = vector.load %arg2[%c0_3, %c0_4] : memref<16x32xbf16, #tpu.memory_space<vmem>>, vector<16x32xbf16>
    %cst = arith.constant dense<0.000000e+00> : vector<16x128xf32>
    %6 = tpu.matmul %5, %4, %cst {dimension_numbers = #tpu.dot_dimension_numbers<[1], [0], [0], [1], [0, 0, 1, 1], [], []>} : vector<16x32xbf16>, vector<32x128xbf16>, vector<16x128xf32> -> vector<16x128xf32>
    %7 = arith.truncf %6 : vector<16x128xf32> to vector<16x128xbf16>
    %c0_5 = arith.constant 0 : index
    %c0_6 = arith.constant 0 : index
    %8 = vector.load %arg3[%c0_5, %c0_6] : memref<8x32xbf16, #tpu.memory_space<vmem>>, vector<8x32xbf16>
    %cst_7 = arith.constant dense<0.000000e+00> : vector<8x128xf32>
    %9 = tpu.matmul %8, %4, %cst_7 {dimension_numbers = #tpu.dot_dimension_numbers<[1], [0], [0], [1], [0, 0, 1, 1], [], []>} : vector<8x32xbf16>, vector<32x128xbf16>, vector<8x128xf32> -> vector<8x128xf32>
    %10 = arith.truncf %9 : vector<8x128xf32> to vector<8x128xbf16>
    %c0_8 = arith.constant 0 : index
    %c0_9 = arith.constant 0 : index
    %c0_10 = arith.constant 0 : index
    %11 = vector.load %arg5[%c0_8, %c0_9, %c0_10] : memref<1x16x128xbf16, #tpu.memory_space<vmem>>, vector<1x16x128xbf16>
    %12 = vector.shape_cast %11 : vector<1x16x128xbf16> to vector<16x128xbf16>
    %cst_11 = arith.constant dense<0.000000e+00> : vector<16x16xf32>
    %13 = tpu.matmul %12, %7, %cst_11 {dimension_numbers = #tpu.dot_dimension_numbers<[1], [1], [0], [0], [0, 0, 1, 0], [], []>} : vector<16x128xbf16>, vector<16x128xbf16>, vector<16x16xf32> -> vector<16x16xf32>
    %c0_12 = arith.constant 0 : index
    %c0_13 = arith.constant 0 : index
    %c0_14 = arith.constant 0 : index
    %14 = vector.load %arg6[%c0_12, %c0_13, %c0_14] : memref<1x16x128xbf16, #tpu.memory_space<vmem>>, vector<1x16x128xbf16>
    %15 = vector.shape_cast %14 : vector<1x16x128xbf16> to vector<16x128xbf16>
    %cst_15 = arith.constant dense<0.000000e+00> : vector<16x8xf32>
    %16 = tpu.matmul %15, %10, %cst_15 {dimension_numbers = #tpu.dot_dimension_numbers<[1], [1], [0], [0], [0, 0, 1, 0], [], []>} : vector<16x128xbf16>, vector<8x128xbf16>, vector<16x8xf32> -> vector<16x8xf32>
    %c0_16 = arith.constant 0 : index
    %c0_17 = arith.constant 0 : index
    %c0_18 = arith.constant 0 : index
    %17 = vector.load %arg7[%c0_16, %c0_17, %c0_18] : memref<1x8x16xf32, #tpu.memory_space<vmem>>, vector<1x8x16xf32>
    %18 = vector.shape_cast %17 : vector<1x8x16xf32> to vector<8x16xf32>
    %19 = vector.shape_cast %13 : vector<16x16xf32> to vector<16x1x16xf32>
    %20 = vector.shape_cast %16 : vector<16x8xf32> to vector<16x8x1xf32>
    %21 = vector.broadcast %19 : vector<16x1x16xf32> to vector<16x8x16xf32>
    %22 = vector.broadcast %20 : vector<16x8x1xf32> to vector<16x8x16xf32>
    %23 = arith.addf %21, %22 : vector<16x8x16xf32>
    %cst_19 = arith.constant 0.000000e+00 : f32
    %24 = vector.broadcast %cst_19 : f32 to vector<16x8x16xf32>
    %25 = arith.cmpf ogt, %23, %24 : vector<16x8x16xf32>
    %cst_20 = arith.constant 2.000000e-01 : f32
    %26 = vector.broadcast %cst_20 : f32 to vector<16x8x16xf32>
    %27 = arith.mulf %26, %23 : vector<16x8x16xf32>
    %28 = arith.select %25, %23, %27 : vector<16x8x16xi1>, vector<16x8x16xf32>
    %cst_21 = arith.constant 1.000000e+00 : f32
    %29 = vector.broadcast %cst_21 : f32 to vector<8x16xf32>
    %30 = arith.subf %18, %29 : vector<8x16xf32>
    %cst_22 = arith.constant 1.000000e+09 : f32
    %31 = vector.broadcast %cst_22 : f32 to vector<8x16xf32>
    %32 = arith.mulf %30, %31 : vector<8x16xf32>
    %33 = vector.shape_cast %32 : vector<8x16xf32> to vector<1x8x16xf32>
    %34 = vector.broadcast %33 : vector<1x8x16xf32> to vector<16x8x16xf32>
    %35 = arith.addf %28, %34 : vector<16x8x16xf32>
    %cst_23 = arith.constant dense<0xFF800000> : vector<16x8xf32>
    %36 = vector.multi_reduction <maximumf>, %35, %cst_23 [2] : vector<16x8x16xf32> to vector<16x8xf32>
    %37 = vector.shape_cast %36 : vector<16x8xf32> to vector<16x8x1xf32>
    %38 = vector.broadcast %37 : vector<16x8x1xf32> to vector<16x8x16xf32>
    %39 = arith.subf %35, %38 : vector<16x8x16xf32>
    %40 = math.exp %39 : vector<16x8x16xf32>
    %cst_24 = arith.constant dense<0.000000e+00> : vector<16x8xf32>
    %41 = vector.multi_reduction <add>, %40, %cst_24 [2] : vector<16x8x16xf32> to vector<16x8xf32>
    %42 = vector.shape_cast %41 : vector<16x8xf32> to vector<16x8x1xf32>
    %43 = tpu.reciprocal %42 {approx = true} : vector<16x8x1xf32> -> vector<16x8x1xf32>
    %44 = vector.broadcast %43 : vector<16x8x1xf32> to vector<16x8x16xf32>
    %45 = arith.mulf %40, %44 : vector<16x8x16xf32>
    %46 = arith.truncf %45 : vector<16x8x16xf32> to vector<16x8x16xbf16>
    %cst_25 = arith.constant dense<0.000000e+00> : vector<8xf32>
    %47 = vector.multi_reduction <add>, %18, %cst_25 [1] : vector<8x16xf32> to vector<8xf32>
    %48 = vector.shape_cast %47 : vector<8xf32> to vector<8x1xf32>
    %cst_26 = arith.constant 0.000000e+00 : f32
    %49 = vector.broadcast %cst_26 : f32 to vector<8x1xf32>
    %50 = arith.cmpf ogt, %48, %49 : vector<8x1xf32>
    %51 = arith.extui %50 : vector<8x1xi1> to vector<8x1xi32>
    %52 = arith.sitofp %51 : vector<8x1xi32> to vector<8x1xf32>
    %53 = vector.extract_strided_slice %46 {offsets = [0, 0, 0], sizes = [1, 8, 16], strides = [1, 1, 1]} : vector<16x8x16xbf16> to vector<1x8x16xbf16>
    %54 = vector.shape_cast %53 : vector<1x8x16xbf16> to vector<8x16xbf16>
    %55 = vector.extract_strided_slice %7 {offsets = [0, 0], sizes = [16, 8], strides = [1, 1]} : vector<16x128xbf16> to vector<16x8xbf16>
    %cst_27 = arith.constant dense<0.000000e+00> : vector<8x8xf32>
    %56 = tpu.matmul %54, %55, %cst_27 {dimension_numbers = #tpu.dot_dimension_numbers<[1], [0], [0], [1], [0, 0, 1, 1], [], []>} : vector<8x16xbf16>, vector<16x8xbf16>, vector<8x8xf32> -> vector<8x8xf32>
    %57 = vector.extract_strided_slice %46 {offsets = [1, 0, 0], sizes = [1, 8, 16], strides = [1, 1, 1]} : vector<16x8x16xbf16> to vector<1x8x16xbf16>
    %58 = vector.shape_cast %57 : vector<1x8x16xbf16> to vector<8x16xbf16>
    %59 = vector.extract_strided_slice %7 {offsets = [0, 8], sizes = [16, 8], strides = [1, 1]} : vector<16x128xbf16> to vector<16x8xbf16>
    %cst_28 = arith.constant dense<0.000000e+00> : vector<8x8xf32>
    %60 = tpu.matmul %58, %59, %cst_28 {dimension_numbers = #tpu.dot_dimension_numbers<[1], [0], [0], [1], [0, 0, 1, 1], [], []>} : vector<8x16xbf16>, vector<16x8xbf16>, vector<8x8xf32> -> vector<8x8xf32>
    %61 = vector.extract_strided_slice %46 {offsets = [2, 0, 0], sizes = [1, 8, 16], strides = [1, 1, 1]} : vector<16x8x16xbf16> to vector<1x8x16xbf16>
    %62 = vector.shape_cast %61 : vector<1x8x16xbf16> to vector<8x16xbf16>
    %63 = vector.extract_strided_slice %7 {offsets = [0, 16], sizes = [16, 8], strides = [1, 1]} : vector<16x128xbf16> to vector<16x8xbf16>
    %cst_29 = arith.constant dense<0.000000e+00> : vector<8x8xf32>
    %64 = tpu.matmul %62, %63, %cst_29 {dimension_numbers = #tpu.dot_dimension_numbers<[1], [0], [0], [1], [0, 0, 1, 1], [], []>} : vector<8x16xbf16>, vector<16x8xbf16>, vector<8x8xf32> -> vector<8x8xf32>
    %65 = vector.extract_strided_slice %46 {offsets = [3, 0, 0], sizes = [1, 8, 16], strides = [1, 1, 1]} : vector<16x8x16xbf16> to vector<1x8x16xbf16>
    %66 = vector.shape_cast %65 : vector<1x8x16xbf16> to vector<8x16xbf16>
    %67 = vector.extract_strided_slice %7 {offsets = [0, 24], sizes = [16, 8], strides = [1, 1]} : vector<16x128xbf16> to vector<16x8xbf16>
    %cst_30 = arith.constant dense<0.000000e+00> : vector<8x8xf32>
    %68 = tpu.matmul %66, %67, %cst_30 {dimension_numbers = #tpu.dot_dimension_numbers<[1], [0], [0], [1], [0, 0, 1, 1], [], []>} : vector<8x16xbf16>, vector<16x8xbf16>, vector<8x8xf32> -> vector<8x8xf32>
    %69 = vector.extract_strided_slice %46 {offsets = [4, 0, 0], sizes = [1, 8, 16], strides = [1, 1, 1]} : vector<16x8x16xbf16> to vector<1x8x16xbf16>
    %70 = vector.shape_cast %69 : vector<1x8x16xbf16> to vector<8x16xbf16>
    %71 = vector.extract_strided_slice %7 {offsets = [0, 32], sizes = [16, 8], strides = [1, 1]} : vector<16x128xbf16> to vector<16x8xbf16>
    %cst_31 = arith.constant dense<0.000000e+00> : vector<8x8xf32>
    %72 = tpu.matmul %70, %71, %cst_31 {dimension_numbers = #tpu.dot_dimension_numbers<[1], [0], [0], [1], [0, 0, 1, 1], [], []>} : vector<8x16xbf16>, vector<16x8xbf16>, vector<8x8xf32> -> vector<8x8xf32>
    %73 = vector.extract_strided_slice %46 {offsets = [5, 0, 0], sizes = [1, 8, 16], strides = [1, 1, 1]} : vector<16x8x16xbf16> to vector<1x8x16xbf16>
    %74 = vector.shape_cast %73 : vector<1x8x16xbf16> to vector<8x16xbf16>
    %75 = vector.extract_strided_slice %7 {offsets = [0, 40], sizes = [16, 8], strides = [1, 1]} : vector<16x128xbf16> to vector<16x8xbf16>
    %cst_32 = arith.constant dense<0.000000e+00> : vector<8x8xf32>
    %76 = tpu.matmul %74, %75, %cst_32 {dimension_numbers = #tpu.dot_dimension_numbers<[1], [0], [0], [1], [0, 0, 1, 1], [], []>} : vector<8x16xbf16>, vector<16x8xbf16>, vector<8x8xf32> -> vector<8x8xf32>
    %77 = vector.extract_strided_slice %46 {offsets = [6, 0, 0], sizes = [1, 8, 16], strides = [1, 1, 1]} : vector<16x8x16xbf16> to vector<1x8x16xbf16>
    %78 = vector.shape_cast %77 : vector<1x8x16xbf16> to vector<8x16xbf16>
    %79 = vector.extract_strided_slice %7 {offsets = [0, 48], sizes = [16, 8], strides = [1, 1]} : vector<16x128xbf16> to vector<16x8xbf16>
    %cst_33 = arith.constant dense<0.000000e+00> : vector<8x8xf32>
    %80 = tpu.matmul %78, %79, %cst_33 {dimension_numbers = #tpu.dot_dimension_numbers<[1], [0], [0], [1], [0, 0, 1, 1], [], []>} : vector<8x16xbf16>, vector<16x8xbf16>, vector<8x8xf32> -> vector<8x8xf32>
    %81 = vector.extract_strided_slice %46 {offsets = [7, 0, 0], sizes = [1, 8, 16], strides = [1, 1, 1]} : vector<16x8x16xbf16> to vector<1x8x16xbf16>
    %82 = vector.shape_cast %81 : vector<1x8x16xbf16> to vector<8x16xbf16>
    %83 = vector.extract_strided_slice %7 {offsets = [0, 56], sizes = [16, 8], strides = [1, 1]} : vector<16x128xbf16> to vector<16x8xbf16>
    %cst_34 = arith.constant dense<0.000000e+00> : vector<8x8xf32>
    %84 = tpu.matmul %82, %83, %cst_34 {dimension_numbers = #tpu.dot_dimension_numbers<[1], [0], [0], [1], [0, 0, 1, 1], [], []>} : vector<8x16xbf16>, vector<16x8xbf16>, vector<8x8xf32> -> vector<8x8xf32>
    %85 = vector.extract_strided_slice %46 {offsets = [8, 0, 0], sizes = [1, 8, 16], strides = [1, 1, 1]} : vector<16x8x16xbf16> to vector<1x8x16xbf16>
    %86 = vector.shape_cast %85 : vector<1x8x16xbf16> to vector<8x16xbf16>
    %87 = vector.extract_strided_slice %7 {offsets = [0, 64], sizes = [16, 8], strides = [1, 1]} : vector<16x128xbf16> to vector<16x8xbf16>
    %cst_35 = arith.constant dense<0.000000e+00> : vector<8x8xf32>
    %88 = tpu.matmul %86, %87, %cst_35 {dimension_numbers = #tpu.dot_dimension_numbers<[1], [0], [0], [1], [0, 0, 1, 1], [], []>} : vector<8x16xbf16>, vector<16x8xbf16>, vector<8x8xf32> -> vector<8x8xf32>
    %89 = vector.extract_strided_slice %46 {offsets = [9, 0, 0], sizes = [1, 8, 16], strides = [1, 1, 1]} : vector<16x8x16xbf16> to vector<1x8x16xbf16>
    %90 = vector.shape_cast %89 : vector<1x8x16xbf16> to vector<8x16xbf16>
    %91 = vector.extract_strided_slice %7 {offsets = [0, 72], sizes = [16, 8], strides = [1, 1]} : vector<16x128xbf16> to vector<16x8xbf16>
    %cst_36 = arith.constant dense<0.000000e+00> : vector<8x8xf32>
    %92 = tpu.matmul %90, %91, %cst_36 {dimension_numbers = #tpu.dot_dimension_numbers<[1], [0], [0], [1], [0, 0, 1, 1], [], []>} : vector<8x16xbf16>, vector<16x8xbf16>, vector<8x8xf32> -> vector<8x8xf32>
    %93 = vector.extract_strided_slice %46 {offsets = [10, 0, 0], sizes = [1, 8, 16], strides = [1, 1, 1]} : vector<16x8x16xbf16> to vector<1x8x16xbf16>
    %94 = vector.shape_cast %93 : vector<1x8x16xbf16> to vector<8x16xbf16>
    %95 = vector.extract_strided_slice %7 {offsets = [0, 80], sizes = [16, 8], strides = [1, 1]} : vector<16x128xbf16> to vector<16x8xbf16>
    %cst_37 = arith.constant dense<0.000000e+00> : vector<8x8xf32>
    %96 = tpu.matmul %94, %95, %cst_37 {dimension_numbers = #tpu.dot_dimension_numbers<[1], [0], [0], [1], [0, 0, 1, 1], [], []>} : vector<8x16xbf16>, vector<16x8xbf16>, vector<8x8xf32> -> vector<8x8xf32>
    %97 = vector.extract_strided_slice %46 {offsets = [11, 0, 0], sizes = [1, 8, 16], strides = [1, 1, 1]} : vector<16x8x16xbf16> to vector<1x8x16xbf16>
    %98 = vector.shape_cast %97 : vector<1x8x16xbf16> to vector<8x16xbf16>
    %99 = vector.extract_strided_slice %7 {offsets = [0, 88], sizes = [16, 8], strides = [1, 1]} : vector<16x128xbf16> to vector<16x8xbf16>
    %cst_38 = arith.constant dense<0.000000e+00> : vector<8x8xf32>
    %100 = tpu.matmul %98, %99, %cst_38 {dimension_numbers = #tpu.dot_dimension_numbers<[1], [0], [0], [1], [0, 0, 1, 1], [], []>} : vector<8x16xbf16>, vector<16x8xbf16>, vector<8x8xf32> -> vector<8x8xf32>
    %101 = vector.extract_strided_slice %46 {offsets = [12, 0, 0], sizes = [1, 8, 16], strides = [1, 1, 1]} : vector<16x8x16xbf16> to vector<1x8x16xbf16>
    %102 = vector.shape_cast %101 : vector<1x8x16xbf16> to vector<8x16xbf16>
    %103 = vector.extract_strided_slice %7 {offsets = [0, 96], sizes = [16, 8], strides = [1, 1]} : vector<16x128xbf16> to vector<16x8xbf16>
    %cst_39 = arith.constant dense<0.000000e+00> : vector<8x8xf32>
    %104 = tpu.matmul %102, %103, %cst_39 {dimension_numbers = #tpu.dot_dimension_numbers<[1], [0], [0], [1], [0, 0, 1, 1], [], []>} : vector<8x16xbf16>, vector<16x8xbf16>, vector<8x8xf32> -> vector<8x8xf32>
    %105 = vector.extract_strided_slice %46 {offsets = [13, 0, 0], sizes = [1, 8, 16], strides = [1, 1, 1]} : vector<16x8x16xbf16> to vector<1x8x16xbf16>
    %106 = vector.shape_cast %105 : vector<1x8x16xbf16> to vector<8x16xbf16>
    %107 = vector.extract_strided_slice %7 {offsets = [0, 104], sizes = [16, 8], strides = [1, 1]} : vector<16x128xbf16> to vector<16x8xbf16>
    %cst_40 = arith.constant dense<0.000000e+00> : vector<8x8xf32>
    %108 = tpu.matmul %106, %107, %cst_40 {dimension_numbers = #tpu.dot_dimension_numbers<[1], [0], [0], [1], [0, 0, 1, 1], [], []>} : vector<8x16xbf16>, vector<16x8xbf16>, vector<8x8xf32> -> vector<8x8xf32>
    %109 = vector.extract_strided_slice %46 {offsets = [14, 0, 0], sizes = [1, 8, 16], strides = [1, 1, 1]} : vector<16x8x16xbf16> to vector<1x8x16xbf16>
    %110 = vector.shape_cast %109 : vector<1x8x16xbf16> to vector<8x16xbf16>
    %111 = vector.extract_strided_slice %7 {offsets = [0, 112], sizes = [16, 8], strides = [1, 1]} : vector<16x128xbf16> to vector<16x8xbf16>
    %cst_41 = arith.constant dense<0.000000e+00> : vector<8x8xf32>
    %112 = tpu.matmul %110, %111, %cst_41 {dimension_numbers = #tpu.dot_dimension_numbers<[1], [0], [0], [1], [0, 0, 1, 1], [], []>} : vector<8x16xbf16>, vector<16x8xbf16>, vector<8x8xf32> -> vector<8x8xf32>
    %113 = vector.extract_strided_slice %46 {offsets = [15, 0, 0], sizes = [1, 8, 16], strides = [1, 1, 1]} : vector<16x8x16xbf16> to vector<1x8x16xbf16>
    %114 = vector.shape_cast %113 : vector<1x8x16xbf16> to vector<8x16xbf16>
    %115 = vector.extract_strided_slice %7 {offsets = [0, 120], sizes = [16, 8], strides = [1, 1]} : vector<16x128xbf16> to vector<16x8xbf16>
    %cst_42 = arith.constant dense<0.000000e+00> : vector<8x8xf32>
    %116 = tpu.matmul %114, %115, %cst_42 {dimension_numbers = #tpu.dot_dimension_numbers<[1], [0], [0], [1], [0, 0, 1, 1], [], []>} : vector<8x16xbf16>, vector<16x8xbf16>, vector<8x8xf32> -> vector<8x8xf32>
    %117 = tpu.concatenate %56, %60, %64, %68, %72, %76, %80, %84, %88, %92, %96, %100, %104, %108, %112, %116 in 1 : vector<8x8xf32>, vector<8x8xf32>, vector<8x8xf32>, vector<8x8xf32>, vector<8x8xf32>, vector<8x8xf32>, vector<8x8xf32>, vector<8x8xf32>, vector<8x8xf32>, vector<8x8xf32>, vector<8x8xf32>, vector<8x8xf32>, vector<8x8xf32>, vector<8x8xf32>, vector<8x8xf32>, vector<8x8xf32> -> vector<8x128xf32>
    %c0_43 = arith.constant 0 : index
    %c0_44 = arith.constant 0 : index
    %118 = vector.load %arg9[%c0_43, %c0_44] : memref<8x128xf32, #tpu.memory_space<vmem>>, vector<8x128xf32>
    %119 = vector.broadcast %52 : vector<8x1xf32> to vector<8x128xf32>
    %120 = arith.mulf %119, %117 : vector<8x128xf32>
    %121 = arith.addf %118, %120 : vector<8x128xf32>
    %c0_45 = arith.constant 0 : index
    %c0_46 = arith.constant 0 : index
    %c0_47 = arith.constant 0 : index
    %122 = vector.load %arg8[%c0_45, %c0_46, %c0_47] : memref<1x1x128xf32, #tpu.memory_space<vmem>>, vector<1x1x128xf32>
    %123 = vector.shape_cast %122 : vector<1x1x128xf32> to vector<1x128xf32>
    %124 = vector.broadcast %123 : vector<1x128xf32> to vector<8x128xf32>
    %125 = arith.addf %121, %124 : vector<8x128xf32>
    %c0_48 = arith.constant 0 : index
    %c0_49 = arith.constant 0 : index
    %126 = vector.load %arg9[%c0_48, %c0_49] : memref<8x128xf32, #tpu.memory_space<vmem>>, vector<8x128xf32>
    tpu.vector_store %arg9[%c0_48, %c0_49], %125 {strides = array<i32>} : memref<8x128xf32, #tpu.memory_space<vmem>>, vector<8x128xf32>,
    return
  }
  func.func @transform_0(%arg0: i32, %arg1: i32) -> (i32, i32) {
    %c0_i32 = arith.constant 0 : i32
    %c0_i32_0 = arith.constant 0 : i32
    %c0_i32_1 = arith.constant 0 : i32
    return %c0_i32, %c0_i32_0 : i32, i32
  }
  func.func @transform_1(%arg0: i32, %arg1: i32) -> (i32, i32) {
    %c0_i32 = arith.constant 0 : i32
    %c0_i32_0 = arith.constant 0 : i32
    return %arg0, %c0_i32 : i32, i32
  }
  func.func @transform_2(%arg0: i32, %arg1: i32) -> (i32, i32, i32) {
    %c0_i32 = arith.constant 0 : i32
    %c0_i32_0 = arith.constant 0 : i32
    %c0_i32_1 = arith.constant 0 : i32
    return %arg1, %c0_i32, %c0_i32_0 : i32, i32, i32
  }
  func.func @transform_3(%arg0: i32, %arg1: i32) -> (i32, i32, i32) {
    %c0_i32 = arith.constant 0 : i32
    %c0_i32_0 = arith.constant 0 : i32
    %c0_i32_1 = arith.constant 0 : i32
    return %arg1, %c0_i32, %c0_i32_0 : i32, i32, i32
  }
  func.func @transform_4(%arg0: i32, %arg1: i32) -> (i32, i32, i32) {
    %c0_i32 = arith.constant 0 : i32
    %c0_i32_0 = arith.constant 0 : i32
    %c0_i32_1 = arith.constant 0 : i32
    return %arg1, %c0_i32, %c0_i32_0 : i32, i32, i32
  }
  func.func @transform_5(%arg0: i32, %arg1: i32) -> (i32, i32, i32) {
    %c0_i32 = arith.constant 0 : i32
    %c0_i32_0 = arith.constant 0 : i32
    return %arg1, %arg0, %c0_i32 : i32, i32, i32
  }
  func.func @transform_6(%arg0: i32, %arg1: i32) -> (i32, i32, i32) {
    %c0_i32 = arith.constant 0 : i32
    %c0_i32_0 = arith.constant 0 : i32
    %c0_i32_1 = arith.constant 0 : i32
    return %arg1, %c0_i32, %c0_i32_0 : i32, i32, i32
  }
  func.func @transform_7(%arg0: i32, %arg1: i32) -> (i32, i32) {
    %c0_i32 = arith.constant 0 : i32
    %c0_i32_0 = arith.constant 0 : i32
    return %arg0, %c0_i32 : i32, i32
  }
}

</mosaic_0001>

<llo_original>
// kernel: stochastic_two_layer_rgcn.2
$region0: #{stochastic_two_layer_rgcn.2}
  #allocation0 [shape = 'u32[]', space=smem, size = 0x4, offset = 0x4, fixed_abs, tag = 'smem constant byte address 0x4 - core index']
  #allocation1 [shape = 'u32[144,128]{1,0:T(1,128)}', space=vmem, size = 0x12000, scoped, tag = 'internal scratch']
  %s0 = inlined_call_operand.vmem [shape: bf16[24,16], index: 0, kind: input, shape index: {}, may-alias: {0,1}]
  %s1 = inlined_call_operand.vmem [shape: bf16[24,16], index: 1, kind: input, shape index: {}, may-alias: {0,1}]
  %s2 = inlined_call_operand.vmem [shape: bf16[3,16,32], index: 2, kind: input, shape index: {}]
  %s3 = inlined_call_operand.vmem [shape: bf16[3,4,32], index: 3, kind: input, shape index: {}]
  %s4 = inlined_call_operand.vmem [shape: bf16[3,4,32], index: 4, kind: input, shape index: {}]
  %s5 = inlined_call_operand.vmem [shape: f32[3,16,24], index: 5, kind: input, shape index: {}]
  %s6 = inlined_call_operand.vmem [shape: f32[3,1,32], index: 6, kind: input, shape index: {}]
  %s7 = inlined_call_operand.vmem [shape: f32[16,32], index: 7, kind: output, shape index: {}]
  %s8 = sld [smem:[#allocation0]]
  $region65: #{stochastic_two_layer_rgcn.2} parent=0
    _
  %s10 = ssub.s32 1, %s8
  %s11 = scalar_select 0, %s10, %s8
  loop: start=0, step=1, limit=8
  $region2: #{stochastic_two_layer_rgcn.2} parent=0 // loop_pre_header
    _
  $region3: #{stochastic_two_layer_rgcn.2} parent=0 // loop_header
    %s13 = sphi 0, %s17
    %p14 = scmp.ge.s32.totalorder %s13, 8
    %s20 = sphi 0, %s32
    %s21 = sphi 0, %s28
    %s22 = sphi 0, %s20
    %s23 = sphi 0, %s21
    %s24 = sphi 0, %s22
    %s25 = sphi 0, %s23
    %s33 = sphi 0, %s33
    %s35 = sphi 0, %s33
    %s36 = sphi 0, %s35
    %s50 = sphi 0, %s36
    %s56 = sphi 0, %s58
    %s59 = sphi 0, %s56
    %s60 = sphi 0, %s59
    %s76 = sphi 0, %s60
    %s82 = sphi 0, %s84
    %s85 = sphi 0, %s82
    %s86 = sphi 0, %s85
    %s102 = sphi 0, %s86
    %s108 = sphi 0, %s110
    %s111 = sphi 0, %s108
    %s112 = sphi 0, %s111
    %s128 = sphi 0, %s112
    %s134 = sphi 0, %s136
    %s137 = sphi 0, %s134
    %s138 = sphi 0, %s137
    %s154 = sphi 0, %s138
    %s162 = sphi 0, %s164
    %s165 = sphi 0, %s162
    %s166 = sphi 0, %s165
    %s182 = sphi 0, %s166
    %s188 = sphi 0, %s190
    %s191 = sphi 0, %s188
    %s192 = sphi 0, %s191
    %s208 = sphi 0, %s192
    %s214 = sphi 0, %s216
    %s217 = sphi 0, %s214
    %s218 = sphi 0, %s217
    %s234 = sphi 0, %s218
  $region4: #{stochastic_two_layer_rgcn.2} parent=0 // loop_header_branch
    %16 = sbr.rel (%p14) target = $region8
  $region5: #{stochastic_two_layer_rgcn.2} parent=0 // loop_body
    %s18 = ssub.s32 %s13, 1
    %s19 = ssub.s32 %s13, 2
    %s26 = sadd.s32 1, %s21
    %p27 = scmp.ge.s32.totalorder %s26, 3
    %s28 = scalar_select %p27, 0, %s26
    %s29 = sadd.s32 1, %s20
    %s30 = scalar_select %p27, %s29, %s20
    %p31 = scmp.ge.s32.totalorder %s30, 2
    %s32 = scalar_select %p31, 0, %s30
    %s34 = sadd.s32 %s33, 1
    %p37 = scmp.eq.s32.totalorder %s13, 5
    %p38 = scmp.ne.s32.totalorder %s33, %s35
    %p39 = scmp.eq.s32.totalorder %s13, 0
    %p40 = por %p38, %p39
    %p41 = scmp.ne.s32.totalorder %s33, %s35
    %p42 = scmp.eq.s32.totalorder %s18, 5
    %p43 = por %p41, %p42
    %p44 = scmp.ne.s32.totalorder %s35, %s36
    %p45 = scmp.eq.s32.totalorder %s18, 0
    %p46 = por %p44, %p45
    %p47 = scmp.ne.s32.totalorder %s35, %s36
    %p48 = scmp.eq.s32.totalorder %s19, 5
    %p49 = por %p47, %p48
    %p51 = scmp.ne.s32.totalorder %s36, %s50
    %p52 = scmp.eq.s32.totalorder %s19, 0
    %p53 = por %p51, %p52
    %s54 = ssub.s32 %s20, %s32
    %p55 = scmp.eq.s32.totalorder %s54, 0
    %s57 = sadd.s32 %s56, 1
    %s58 = scalar_select %p55, %s56, %s57
    %p61 = pneg %p55
    %p62 = scmp.eq.s32.totalorder %s13, 5
    %p63 = por %p61, %p62
    %p64 = scmp.ne.s32.totalorder %s56, %s59
    %p65 = scmp.eq.s32.totalorder %s13, 0
    %p66 = por %p64, %p65
    %p67 = scmp.ne.s32.totalorder %s56, %s59
    %p68 = scmp.eq.s32.totalorder %s18, 5
    %p69 = por %p67, %p68
    %p70 = scmp.ne.s32.totalorder %s59, %s60
    %p71 = scmp.eq.s32.totalorder %s18, 0
    %p72 = por %p70, %p71
    %p73 = scmp.ne.s32.totalorder %s59, %s60
    %p74 = scmp.eq.s32.totalorder %s19, 5
    %p75 = por %p73, %p74
    %p77 = scmp.ne.s32.totalorder %s60, %s76
    %p78 = scmp.eq.s32.totalorder %s19, 0
    %p79 = por %p77, %p78
    %s80 = ssub.s32 %s21, %s28
    %p81 = scmp.eq.s32.totalorder %s80, 0
    %s83 = sadd.s32 %s82, 1
    %s84 = scalar_select %p81, %s82, %s83
    %p87 = pneg %p81
    %p88 = scmp.eq.s32.totalorder %s13, 5
    %p89 = por %p87, %p88
    %p90 = scmp.ne.s32.totalorder %s82, %s85
    %p91 = scmp.eq.s32.totalorder %s13, 0
    %p92 = por %p90, %p91
    %p93 = scmp.ne.s32.totalorder %s82, %s85
    %p94 = scmp.eq.s32.totalorder %s18, 5
    %p95 = por %p93, %p94
    %p96 = scmp.ne.s32.totalorder %s85, %s86
    %p97 = scmp.eq.s32.totalorder %s18, 0
    %p98 = por %p96, %p97
    %p99 = scmp.ne.s32.totalorder %s85, %s86
    %p100 = scmp.eq.s32.totalorder %s19, 5
    %p101 = por %p99, %p100
    %p103 = scmp.ne.s32.totalorder %s86, %s102
    %p104 = scmp.eq.s32.totalorder %s19, 0
    %p105 = por %p103, %p104
    %s106 = ssub.s32 %s21, %s28
    %p107 = scmp.eq.s32.totalorder %s106, 0
    %s109 = sadd.s32 %s108, 1
    %s110 = scalar_select %p107, %s108, %s109
    %p113 = pneg %p107
    %p114 = scmp.eq.s32.totalorder %s13, 5
    %p115 = por %p113, %p114
    %p116 = scmp.ne.s32.totalorder %s108, %s111
    %p117 = scmp.eq.s32.totalorder %s13, 0
    %p118 = por %p116, %p117
    %p119 = scmp.ne.s32.totalorder %s108, %s111
    %p120 = scmp.eq.s32.totalorder %s18, 5
    %p121 = por %p119, %p120
    %p122 = scmp.ne.s32.totalorder %s111, %s112
    %p123 = scmp.eq.s32.totalorder %s18, 0
    %p124 = por %p122, %p123
    %p125 = scmp.ne.s32.totalorder %s111, %s112
    %p126 = scmp.eq.s32.totalorder %s19, 5
    %p127 = por %p125, %p126
    %p129 = scmp.ne.s32.totalorder %s112, %s128
    %p130 = scmp.eq.s32.totalorder %s19, 0
    %p131 = por %p129, %p130
    %s132 = ssub.s32 %s21, %s28
    %p133 = scmp.eq.s32.totalorder %s132, 0
    %s135 = sadd.s32 %s134, 1
    %s136 = scalar_select %p133, %s134, %s135
    %p139 = pneg %p133
    %p140 = scmp.eq.s32.totalorder %s13, 5
    %p141 = por %p139, %p140
    %p142 = scmp.ne.s32.totalorder %s134, %s137
    %p143 = scmp.eq.s32.totalorder %s13, 0
    %p144 = por %p142, %p143
    %p145 = scmp.ne.s32.totalorder %s134, %s137
    %p146 = scmp.eq.s32.totalorder %s18, 5
    %p147 = por %p145, %p146
    %p148 = scmp.ne.s32.totalorder %s137, %s138
    %p149 = scmp.eq.s32.totalorder %s18, 0
    %p150 = por %p148, %p149
    %p151 = scmp.ne.s32.totalorder %s137, %s138
    %p152 = scmp.eq.s32.totalorder %s19, 5
    %p153 = por %p151, %p152
    %p155 = scmp.ne.s32.totalorder %s138, %s154
    %p156 = scmp.eq.s32.totalorder %s19, 0
    %p157 = por %p155, %p156
    %s158 = ssub.s32 %s21, %s28
    %s159 = ssub.s32 %s20, %s32
    %s160 = sor.u32 %s158, %s159
    %p161 = scmp.eq.s32.totalorder %s160, 0
    %s163 = sadd.s32 %s162, 1
    %s164 = scalar_select %p161, %s162, %s163
    %p167 = pneg %p161
    %p168 = scmp.eq.s32.totalorder %s13, 5
    %p169 = por %p167, %p168
    %p170 = scmp.ne.s32.totalorder %s162, %s165
    %p171 = scmp.eq.s32.totalorder %s13, 0
    %p172 = por %p170, %p171
    %p173 = scmp.ne.s32.totalorder %s162, %s165
    %p174 = scmp.eq.s32.totalorder %s18, 5
    %p175 = por %p173, %p174
    %p176 = scmp.ne.s32.totalorder %s165, %s166
    %p177 = scmp.eq.s32.totalorder %s18, 0
    %p178 = por %p176, %p177
    %p179 = scmp.ne.s32.totalorder %s165, %s166
    %p180 = scmp.eq.s32.totalorder %s19, 5
    %p181 = por %p179, %p180
    %p183 = scmp.ne.s32.totalorder %s166, %s182
    %p184 = scmp.eq.s32.totalorder %s19, 0
    %p185 = por %p183, %p184
    %s186 = ssub.s32 %s21, %s28
    %p187 = scmp.eq.s32.totalorder %s186, 0
    %s189 = sadd.s32 %s188, 1
    %s190 = scalar_select %p187, %s188, %s189
    %p193 = pneg %p187
    %p194 = scmp.eq.s32.totalorder %s13, 5
    %p195 = por %p193, %p194
    %p196 = scmp.ne.s32.totalorder %s188, %s191
    %p197 = scmp.eq.s32.totalorder %s13, 0
    %p198 = por %p196, %p197
    %p199 = scmp.ne.s32.totalorder %s188, %s191
    %p200 = scmp.eq.s32.totalorder %s18, 5
    %p201 = por %p199, %p200
    %p202 = scmp.ne.s32.totalorder %s191, %s192
    %p203 = scmp.eq.s32.totalorder %s18, 0
    %p204 = por %p202, %p203
    %p205 = scmp.ne.s32.totalorder %s191, %s192
    %p206 = scmp.eq.s32.totalorder %s19, 5
    %p207 = por %p205, %p206
    %p209 = scmp.ne.s32.totalorder %s192, %s208
    %p210 = scmp.eq.s32.totalorder %s19, 0
    %p211 = por %p209, %p210
    %s212 = ssub.s32 %s20, %s32
    %p213 = scmp.eq.s32.totalorder %s212, 0
    %s215 = sadd.s32 %s214, 1
    %s216 = scalar_select %p213, %s214, %s215
    %p219 = pneg %p213
    %p220 = scmp.eq.s32.totalorder %s13, 5
    %p221 = por %p219, %p220
    %p222 = scmp.ne.s32.totalorder %s214, %s217
    %p223 = scmp.eq.s32.totalorder %s13, 0
    %p224 = por %p222, %p223
    %p225 = scmp.ne.s32.totalorder %s214, %s217
    %p226 = scmp.eq.s32.totalorder %s18, 5
    %p227 = por %p225, %p226
    %p228 = scmp.ne.s32.totalorder %s217, %s218
    %p229 = scmp.eq.s32.totalorder %s18, 0
    %p230 = por %p228, %p229
    %p231 = scmp.ne.s32.totalorder %s217, %s218
    %p232 = scmp.eq.s32.totalorder %s19, 5
    %p233 = por %p231, %p232
    %p235 = scmp.ne.s32.totalorder %s218, %s234
    %p236 = scmp.eq.s32.totalorder %s19, 0
    %p237 = por %p235, %p236
    %p238 = scmp.le.s32.totalorder 1, %s13
    %p239 = scmp.lt.s32.totalorder %s13, 7
    %p240 = pnand %p238, %p239
    %p241 = pneg %p240
    // Predicated region
    $region9: #{stochastic_two_layer_rgcn.2} parent=5 // pred_check
      _
    $region10: #{stochastic_two_layer_rgcn.2} parent=5 // pred_check_branch
      %243 = sbr.rel (%p240) target = $region12
    $region11: #{stochastic_two_layer_rgcn.2} parent=5 // pred_region
      %s244 = ssub.s32 %s13, 1
      // Predicated region
      $region13: #{stochastic_two_layer_rgcn.2} parent=11 // pred_check
        %p245 = pneg %p46
      $region14: #{stochastic_two_layer_rgcn.2} parent=11 // pred_check_branch
        %247 = sbr.rel (%p245) target = $region16
      $region15: #{stochastic_two_layer_rgcn.2} parent=11 // pred_region
        _
      $region16: #{stochastic_two_layer_rgcn.2} parent=11 // pred_fallthru
        _
    $region12: #{stochastic_two_layer_rgcn.2} parent=5 // pred_fallthru
      _
    %p248 = scmp.lt.s32.totalorder %s13, 6
    // Predicated region
    $region17: #{stochastic_two_layer_rgcn.2} parent=5 // pred_check
      %p249 = pneg %p248
    $region18: #{stochastic_two_layer_rgcn.2} parent=5 // pred_check_branch
      %251 = sbr.rel (%p249) target = $region20
    $region19: #{stochastic_two_layer_rgcn.2} parent=5 // pred_region
      // Predicated region
      $region21: #{stochastic_two_layer_rgcn.2} parent=19 // pred_check
        %p252 = pneg %p66
      $region22: #{stochastic_two_layer_rgcn.2} parent=19 // pred_check_branch
        %254 = sbr.rel (%p252) target = $region24
      $region23: #{stochastic_two_layer_rgcn.2} parent=19 // pred_region
        %p255 = scmp.lt.s32.totalorder %s20, 2
        %s256 = scalar_select %p255, %s20, 2
        %s257 = smul.addr %s256, 4
        %s258 = scalar_lea.vmem %s1, %s257
      $region24: #{stochastic_two_layer_rgcn.2} parent=19 // pred_fallthru
        _
      // Predicated region
      $region25: #{stochastic_two_layer_rgcn.2} parent=19 // pred_check
        %p259 = pneg %p92
      $region26: #{stochastic_two_layer_rgcn.2} parent=19 // pred_check_branch
        %261 = sbr.rel (%p259) target = $region28
      $region27: #{stochastic_two_layer_rgcn.2} parent=19 // pred_region
        %p262 = scmp.lt.s32.totalorder %s21, 2
        %s263 = scalar_select %p262, %s21, 2
        %s264 = smul.addr %s263, 2
        %s265 = smul.addr %s264, 4
        %s266 = scalar_lea.vmem %s2, %s265
      $region28: #{stochastic_two_layer_rgcn.2} parent=19 // pred_fallthru
        _
      // Predicated region
      $region29: #{stochastic_two_layer_rgcn.2} parent=19 // pred_check
        %p267 = pneg %p118
      $region30: #{stochastic_two_layer_rgcn.2} parent=19 // pred_check_branch
        %269 = sbr.rel (%p267) target = $region32
      $region31: #{stochastic_two_layer_rgcn.2} parent=19 // pred_region
        %p270 = scmp.lt.s32.totalorder %s21, 2
        %s271 = scalar_select %p270, %s21, 2
        %s272 = smul.addr %s271, 2
        %s273 = scalar_lea.vmem %s3, %s272
      $region32: #{stochastic_two_layer_rgcn.2} parent=19 // pred_fallthru
        _
      // Predicated region
      $region33: #{stochastic_two_layer_rgcn.2} parent=19 // pred_check
        %p274 = pneg %p144
      $region34: #{stochastic_two_layer_rgcn.2} parent=19 // pred_check_branch
        %276 = sbr.rel (%p274) target = $region36
      $region35: #{stochastic_two_layer_rgcn.2} parent=19 // pred_region
        %p277 = scmp.lt.s32.totalorder %s21, 2
        %s278 = scalar_select %p277, %s21, 2
        %s279 = smul.addr %s278, 2
        %s280 = scalar_lea.vmem %s4, %s279
      $region36: #{stochastic_two_layer_rgcn.2} parent=19 // pred_fallthru
        _
      // Predicated region
      $region37: #{stochastic_two_layer_rgcn.2} parent=19 // pred_check
        %p281 = pneg %p172
      $region38: #{stochastic_two_layer_rgcn.2} parent=19 // pred_check_branch
        %283 = sbr.rel (%p281) target = $region40
      $region39: #{stochastic_two_layer_rgcn.2} parent=19 // pred_region
        %p284 = scmp.lt.s32.totalorder %s21, 2
        %s285 = scalar_select %p284, %s21, 2
        %p286 = scmp.lt.s32.totalorder %s20, 1
        %s287 = scalar_select %p286, %s20, 1
        %s288 = smul.addr %s285, 2
        %s289 = sadd.s32 %s287, %s288
        %s290 = smul.addr %s289, 8
        %s291 = scalar_lea.vmem %s5, %s290
      $region40: #{stochastic_two_layer_rgcn.2} parent=19 // pred_fallthru
        _
      // Predicated region
      $region41: #{stochastic_two_layer_rgcn.2} parent=19 // pred_check
        %p292 = pneg %p198
      $region42: #{stochastic_two_layer_rgcn.2} parent=19 // pred_check_branch
        %294 = sbr.rel (%p292) target = $region44
      $region43: #{stochastic_two_layer_rgcn.2} parent=19 // pred_region
        %p295 = scmp.lt.s32.totalorder %s21, 2
        %s296 = scalar_select %p295, %s21, 2
        %s297 = scalar_lea.vmem %s6, %s296
      $region44: #{stochastic_two_layer_rgcn.2} parent=19 // pred_fallthru
        _
    $region20: #{stochastic_two_layer_rgcn.2} parent=5 // pred_fallthru
      _
    %p298 = scmp.le.s32.totalorder 1, %s13
    %p299 = scmp.lt.s32.totalorder %s13, 7
    %p300 = pnand %p298, %p299
    %p301 = pneg %p300
    // Predicated region
    $region45: #{stochastic_two_layer_rgcn.2} parent=5 // pred_check
      _
    $region46: #{stochastic_two_layer_rgcn.2} parent=5 // pred_check_branch
      %303 = sbr.rel (%p300) target = $region48
    $region47: #{stochastic_two_layer_rgcn.2} parent=5 // pred_region
      %s304 = ssub.s32 %s13, 1
      %p305 = pneg %p46
      %p306 = pneg %p43
      %p307 = scmp.lt.s32.totalorder %s22, 2
      %s308 = scalar_select %p307, %s22, 2
      %s309 = smul.addr %s308, 4
      %s310 = scalar_lea.vmem %s1, %s309
      %p311 = pneg %p72
      %p312 = pneg %p69
      %p313 = scmp.lt.s32.totalorder %s23, 2
      %s314 = scalar_select %p313, %s23, 2
      %s315 = smul.addr %s314, 2
      %s316 = smul.addr %s315, 4
      %s317 = scalar_lea.vmem %s2, %s316
      %p318 = pneg %p98
      %p319 = pneg %p95
      %p320 = scmp.lt.s32.totalorder %s23, 2
      %s321 = scalar_select %p320, %s23, 2
      %s322 = smul.addr %s321, 2
      %s323 = scalar_lea.vmem %s3, %s322
      %p324 = pneg %p124
      %p325 = pneg %p121
      %p326 = scmp.lt.s32.totalorder %s23, 2
      %s327 = scalar_select %p326, %s23, 2
      %s328 = smul.addr %s327, 2
      %s329 = scalar_lea.vmem %s4, %s328
      %p330 = pneg %p150
      %p331 = pneg %p147
      %p332 = scmp.lt.s32.totalorder %s23, 2
      %s333 = scalar_select %p332, %s23, 2
      %p334 = scmp.lt.s32.totalorder %s22, 1
      %s335 = scalar_select %p334, %s22, 1
      %s336 = smul.addr %s333, 2
      %s337 = sadd.s32 %s335, %s336
      %s338 = smul.addr %s337, 8
      %s339 = scalar_lea.vmem %s5, %s338
      %p340 = pneg %p178
      %p341 = pneg %p175
      %p342 = scmp.lt.s32.totalorder %s23, 2
      %s343 = scalar_select %p342, %s23, 2
      %s344 = scalar_lea.vmem %s6, %s343
      %p345 = pneg %p204
      %p346 = pneg %p201
      %p347 = pneg %p230
      %p348 = pneg %p227
      %p349 = scmp.lt.s32.totalorder %s22, 1
      %s350 = scalar_select %p349, %s22, 1
      %s351 = smul.addr %s350, 8
      %s352 = scalar_lea.vmem %s7, %s351
      %p353 = scmp.lt.s32.totalorder %s22, 2
      %s354 = scalar_select %p353, %s22, 2
      %s355 = smul.addr %s354, 4
      %s356 = scalar_lea.vmem %s1, %s355
      %p357 = scmp.lt.s32.totalorder %s23, 2
      %s358 = scalar_select %p357, %s23, 2
      %s359 = smul.addr %s358, 2
      %s360 = smul.addr %s359, 4
      %s361 = scalar_lea.vmem %s2, %s360
      %p362 = scmp.lt.s32.totalorder %s23, 2
      %s363 = scalar_select %p362, %s23, 2
      %s364 = smul.addr %s363, 2
      %s365 = scalar_lea.vmem %s3, %s364
      %p366 = scmp.lt.s32.totalorder %s23, 2
      %s367 = scalar_select %p366, %s23, 2
      %s368 = smul.addr %s367, 2
      %s369 = scalar_lea.vmem %s4, %s368
      %p370 = scmp.lt.s32.totalorder %s23, 2
      %s371 = scalar_select %p370, %s23, 2
      %p372 = scmp.lt.s32.totalorder %s22, 1
      %s373 = scalar_select %p372, %s22, 1
      %s374 = smul.addr %s371, 2
      %s375 = sadd.s32 %s373, %s374
      %s376 = smul.addr %s375, 8
      %s377 = scalar_lea.vmem %s5, %s376
      %p378 = scmp.lt.s32.totalorder %s23, 2
      %s379 = scalar_select %p378, %s23, 2
      %s380 = scalar_lea.vmem %s6, %s379
      %p381 = scmp.lt.s32.totalorder %s22, 1
      %s382 = scalar_select %p381, %s22, 1
      %s383 = smul.addr %s382, 8
      %s384 = scalar_lea.vmem %s7, %s383
      %p386 = scmp.eq.s32.totalorder %s23, 0
      // Predicated region
      $region49: #{stochastic_two_layer_rgcn.2} parent=47 // pred_check
        %p387 = pneg %p386
      $region50: #{stochastic_two_layer_rgcn.2} parent=47 // pred_check_branch
        %389 = sbr.rel (%p387) target = $region52
      $region51: #{stochastic_two_layer_rgcn.2} parent=47 // pred_region
        %vm390 = vcmask 261120
        %391 = vst.msk [vmem:[%s384] sm:$0xff] %vm390, 0.0
      $region52: #{stochastic_two_layer_rgcn.2} parent=47 // pred_fallthru
        _
      %v392 = vld [vmem:[%s361] sm:$0xf]
      %v393 = vld [vmem:[%s361 + $0x4] sm:$0xf]
      %v394 = vld [vmem:[%s0] sm:$0xf]
      %v395 = vld [vmem:[%s0 + $0x4] sm:$0xf]
      %v396 = vld [vmem:[%s0 + $0x8] sm:$0xf]
      %v400 = vunpack.c.l.b16 %v394
      %v401 = vunpack.c.l.b16 %v395
      %v402 = vunpack.c.l.b16 %v396
      %v403 = vpack.c.b16 %v401, %v400
      %v404 = vpack.c.b16 %v402, %v402
      %v407 = vunpack.c.l.b16 %v392
      %v408 = vunpack.c.l.b16 %v393
      %v409 = vpack.c.b16 %v408, %v407
      %vm411 = vcmask 130048
      %v413 = vsel %vm411, %v403, 0
      %v416 = vsel %vm411, %v404, 0
      %418 = vmatprep.subr.bf16.mxu0 0
      %419 = vmatpush1.bf16.msra.mxu0 %v409
      %420 = vmatprep.subr.bf16.mxu0 0
      %421 = vmatpush1.bf16.msra.mxu0 0
      %422 = vmatprep.subr.bf16.mxu0 0
      %423 = vmatpush1.bf16.msra.mxu0 0
      %424 = vmatprep.subr.bf16.mxu0 0
      %425 = vmatpush1.bf16.msra.mxu0 0
      %426 = vmatprep.subr.bf16.mxu0 0
      %427 = vmatpush1.bf16.msra.mxu0 0
      %428 = vmatprep.subr.bf16.mxu0 0
      %429 = vmatpush1.bf16.msra.mxu0 0
      %430 = vmatprep.subr.bf16.mxu0 0
      %431 = vmatpush1.bf16.msra.mxu0 0
      %432 = vmatprep.subr.bf16.mxu0 0
      %433 = vmatpush1.bf16.msra.mxu0 0
      %434 = vmatprep.subr.bf16.mxu0 0
      %435 = vmatpush1.bf16.msra.mxu0 0
      %436 = vmatprep.subr.bf16.mxu0 0
      %437 = vmatpush1.bf16.msra.mxu0 0
      %438 = vmatprep.subr.bf16.mxu0 0
      %439 = vmatpush1.bf16.msra.mxu0 0
      %440 = vmatprep.subr.bf16.mxu0 0
      %441 = vmatpush1.bf16.msra.mxu0 0
      %442 = vmatprep.subr.bf16.mxu0 0
      %443 = vmatpush1.bf16.msra.mxu0 0
      %444 = vmatprep.subr.bf16.mxu0 0
      %445 = vmatpush1.bf16.msra.mxu0 0
      %446 = vmatprep.subr.bf16.mxu0 0
      %447 = vmatpush1.bf16.msra.mxu0 0
      %448 = vmatprep.subr.bf16.mxu0 0
      %449 = vmatpush1.bf16.msra.mxu0 0
      %450 = vmatprep.mubr.bf16.mxu0 0
      %451 = vmatmul.mubr.bf16.gmra.mrb[0].mxu0 %v413
      %v452 = vpop.f32.mrb[0].mxu0
      %v453 = vadd.f32 0.0, %v452
      %v454 = vpop.f32.mrb[0].mxu0
      %v455 = vpop.f32.mrb[0].mxu0
      %v456 = vadd.f32 0.0, %v455
      %v457 = vpop.f32.mrb[0].mxu0
      %458 = vmatprep.mubr.bf16.mxu0 0
      %459 = vmatmul.mubr.bf16.gmra.mrb[0].mxu0 %v416
      %v460 = vpop.f32.mrb[0].mxu0
      %v461 = vadd.f32 0.0, %v460
      %v462 = vpop.f32.mrb[0].mxu0
      %v463 = vpop.f32.mrb[0].mxu0
      %v464 = vpop.f32.mrb[0].mxu0
      %465 = vdwg.mxu0
      %v466 = vpack.c.bf16 %v456, %v453
      %v467 = vpack.c.bf16 %v461, %v461
      %v468 = vld [vmem:[%s356] sm:$0xf]
      %v470 = vsel %vm411, %v468, 0
      %472 = vmatprep.subr.bf16.mxu0 0
      %473 = vmatpush1.bf16.msra.mxu0 %v409
      %474 = vmatprep.subr.bf16.mxu0 0
      %475 = vmatpush1.bf16.msra.mxu0 0
      %476 = vmatprep.subr.bf16.mxu0 0
      %477 = vmatpush1.bf16.msra.mxu0 0
      %478 = vmatprep.subr.bf16.mxu0 0
      %479 = vmatpush1.bf16.msra.mxu0 0
      %480 = vmatprep.subr.bf16.mxu0 0
      %481 = vmatpush1.bf16.msra.mxu0 0
      %482 = vmatprep.subr.bf16.mxu0 0
      %483 = vmatpush1.bf16.msra.mxu0 0
      %484 = vmatprep.subr.bf16.mxu0 0
      %485 = vmatpush1.bf16.msra.mxu0 0
      %486 = vmatprep.subr.bf16.mxu0 0
      %487 = vmatpush1.bf16.msra.mxu0 0
      %488 = vmatprep.subr.bf16.mxu0 0
      %489 = vmatpush1.bf16.msra.mxu0 0
      %490 = vmatprep.subr.bf16.mxu0 0
      %491 = vmatpush1.bf16.msra.mxu0 0
      %492 = vmatprep.subr.bf16.mxu0 0
      %493 = vmatpush1.bf16.msra.mxu0 0
      %494 = vmatprep.subr.bf16.mxu0 0
      %495 = vmatpush1.bf16.msra.mxu0 0
      %496 = vmatprep.subr.bf16.mxu0 0
      %497 = vmatpush1.bf16.msra.mxu0 0
      %498 = vmatprep.subr.bf16.mxu0 0
      %499 = vmatpush1.bf16.msra.mxu0 0
      %500 = vmatprep.subr.bf16.mxu0 0
      %501 = vmatpush1.bf16.msra.mxu0 0
      %502 = vmatprep.subr.bf16.mxu0 0
      %503 = vmatpush1.bf16.msra.mxu0 0
      %504 = vmatprep.mubr.bf16.mxu0 0
      %505 = vmatmul.mubr.bf16.gmra.mrb[0].mxu0 %v470
      %v506 = vpop.f32.mrb[0].mxu0
      %v507 = vadd.f32 0.0, %v506
      %v508 = vpop.f32.mrb[0].mxu0
      %v509 = vpop.f32.mrb[0].mxu0
      %v510 = vpop.f32.mrb[0].mxu0
      %511 = vdwg.mxu0
      %v512 = vpack.c.bf16 %v507, %v507
      %v513 = vld [vmem:[%s365] sm:$0x3]
      %vm514 = vcmask 261120
      %v516 = vsel %vm514, %v513, 0
      %v519 = vsel %vm514, %v466, 0
      %v522 = vsel %vm514, %v467, 0
      %524 = vmatprep.subr.bf16.mxu0 0
      %525 = vmatpush1.bf16.xpose.msra.mxu0 %v519
      %526 = vmatprep.subr.bf16.mxu0 0
      %527 = vmatpush1.bf16.xpose.msra.mxu0 %v522
      %528 = vmatprep.subr.bf16.mxu0 0
      %529 = vmatpush1.bf16.xpose.msra.mxu0 0
      %530 = vmatprep.subr.bf16.mxu0 0
      %531 = vmatpush1.bf16.xpose.msra.mxu0 0
      %532 = vmatprep.subr.bf16.mxu0 0
      %533 = vmatpush1.bf16.xpose.msra.mxu0 0
      %534 = vmatprep.subr.bf16.mxu0 0
      %535 = vmatpush1.bf16.xpose.msra.mxu0 0
      %536 = vmatprep.subr.bf16.mxu0 0
      %537 = vmatpush1.bf16.xpose.msra.mxu0 0
      %538 = vmatprep.subr.bf16.mxu0 0
      %539 = vmatpush1.bf16.xpose.msra.mxu0 0
      %540 = vmatprep.subr.bf16.mxu0 0
      %541 = vmatpush1.bf16.xpose.msra.mxu0 0
      %542 = vmatprep.subr.bf16.mxu0 0
      %543 = vmatpush1.bf16.xpose.msra.mxu0 0
      %544 = vmatprep.subr.bf16.mxu0 0
      %545 = vmatpush1.bf16.xpose.msra.mxu0 0
      %546 = vmatprep.subr.bf16.mxu0 0
      %547 = vmatpush1.bf16.xpose.msra.mxu0 0
      %548 = vmatprep.subr.bf16.mxu0 0
      %549 = vmatpush1.bf16.xpose.msra.mxu0 0
      %550 = vmatprep.subr.bf16.mxu0 0
      %551 = vmatpush1.bf16.xpose.msra.mxu0 0
      %552 = vmatprep.subr.bf16.mxu0 0
      %553 = vmatpush1.bf16.xpose.msra.mxu0 0
      %554 = vmatprep.subr.bf16.mxu0 0
      %555 = vmatpush1.bf16.xpose.msra.mxu0 0
      %556 = vmatprep.mubr.bf16.mxu0 0
      %557 = vmatmul.mubr.bf16.gmra.mrb[0].mxu0 %v516
      %v558 = vpop.f32.mrb[0].mxu0
      %v559 = vadd.f32 0.0, %v558
      %v560 = vpop.f32.mrb[0].mxu0
      %v561 = vpop.f32.mrb[0].mxu0
      %v562 = vpop.f32.mrb[0].mxu0
      %563 = vdwg.mxu0
      %v564 = vld [vmem:[%s369] sm:$0x3]
      %v566 = vsel %vm514, %v564, 0
      %v569 = vsel %vm514, %v512, 0
      %571 = vmatprep.subr.bf16.mxu0 0
      %572 = vmatpush1.bf16.xpose.msra.mxu0 %v569
      %573 = vmatprep.subr.bf16.mxu0 0
      %574 = vmatpush1.bf16.xpose.msra.mxu0 0
      %575 = vmatprep.subr.bf16.mxu0 0
      %576 = vmatpush1.bf16.xpose.msra.mxu0 0
      %577 = vmatprep.subr.bf16.mxu0 0
      %578 = vmatpush1.bf16.xpose.msra.mxu0 0
      %579 = vmatprep.subr.bf16.mxu0 0
      %580 = vmatpush1.bf16.xpose.msra.mxu0 0
      %581 = vmatprep.subr.bf16.mxu0 0
      %582 = vmatpush1.bf16.xpose.msra.mxu0 0
      %583 = vmatprep.subr.bf16.mxu0 0
      %584 = vmatpush1.bf16.xpose.msra.mxu0 0
      %585 = vmatprep.subr.bf16.mxu0 0
      %586 = vmatpush1.bf16.xpose.msra.mxu0 0
      %587 = vmatprep.subr.bf16.mxu0 0
      %588 = vmatpush1.bf16.xpose.msra.mxu0 0
      %589 = vmatprep.subr.bf16.mxu0 0
      %590 = vmatpush1.bf16.xpose.msra.mxu0 0
      %591 = vmatprep.subr.bf16.mxu0 0
      %592 = vmatpush1.bf16.xpose.msra.mxu0 0
      %593 = vmatprep.subr.bf16.mxu0 0
      %594 = vmatpush1.bf16.xpose.msra.mxu0 0
      %595 = vmatprep.subr.bf16.mxu0 0
      %596 = vmatpush1.bf16.xpose.msra.mxu0 0
      %597 = vmatprep.subr.bf16.mxu0 0
      %598 = vmatpush1.bf16.xpose.msra.mxu0 0
      %599 = vmatprep.subr.bf16.mxu0 0
      %600 = vmatpush1.bf16.xpose.msra.mxu0 0
      %601 = vmatprep.subr.bf16.mxu0 0
      %602 = vmatpush1.bf16.xpose.msra.mxu0 0
      %603 = vmatprep.mubr.bf16.mxu0 0
      %604 = vmatmul.mubr.bf16.gmra.mrb[0].mxu0 %v566
      %v605 = vpop.f32.mrb[0].mxu0
      %v606 = vadd.f32 0.0, %v605
      %v607 = vpop.f32.mrb[0].mxu0
      %v608 = vpop.f32.mrb[0].mxu0
      %v609 = vpop.f32.mrb[0].mxu0
      %610 = vdwg.mxu0
      %v611 = vld [vmem:[%s377] sm:$0xff]
      %v614 = vunpack.c.l.s4 1966171168
      %v615 = vunpack.c.0.s8 %v614
      %v616 = vlaneseq
      %v617 = vshrl.u32 %v616, 7
      %v618 = vsub.s32 %v615, %v617
      %v619 = vrot.slane %v559, %v618
      %v620 = vcombine.high %v619, %v619
      %v622 = vunpack.c.l.s4 1966171168
      %v623 = vunpack.c.0.s8 %v622
      %v624 = vlaneseq
      %v625 = vshrl.u32 %v624, 7
      %v626 = vsub.s32 %v623, %v625
      %v627 = vrot.slane %v619, %v626
      %v629 = vunpack.c.l.s4 1966171168
      %v630 = vunpack.c.0.s8 %v629
      %v631 = vlaneseq
      %v632 = vshrl.u32 %v631, 7
      %v633 = vsub.s32 %v630, %v632
      %v634 = vrot.slane %v620, %v633
      %v635 = vcombine.high %v627, %v627
      %v636 = vcombine.high %v634, %v634
      %v637 = vlaneseq
      %v638 = vshrl.u32 %v637, 7
      %v639 = vsub.s32 0, %v638
      %v640 = vrot.slane %v606, %v639
      %642 = vbcast.lane.b32.xlu0 %v640, 256
      %v643 = vpop.permute.xlu0 %642
      %v644 = vlaneseq
      %v645 = vshrl.u32 %v644, 7
      %v646 = vsub.s32 1, %v645
      %v647 = vrot.slane %v606, %v646
      %649 = vbcast.lane.b32.xlu0 %v647, 256
      %v650 = vpop.permute.xlu0 %649
      %v651 = vlaneseq
      %v652 = vshrl.u32 %v651, 7
      %v653 = vsub.s32 2, %v652
      %v654 = vrot.slane %v606, %v653
      %656 = vbcast.lane.b32.xlu0 %v654, 256
      %v657 = vpop.permute.xlu0 %656
      %v658 = vlaneseq
      %v659 = vshrl.u32 %v658, 7
      %v660 = vsub.s32 3, %v659
      %v661 = vrot.slane %v606, %v660
      %663 = vbcast.lane.b32.xlu0 %v661, 256
      %v664 = vpop.permute.xlu0 %663
      %v665 = vlaneseq
      %v666 = vshrl.u32 %v665, 7
      %v667 = vsub.s32 0, %v666
      %v668 = vrot.slane %v627, %v667
      %v669 = vlaneseq
      %v670 = vshrl.u32 %v669, 7
      %v671 = vsub.s32 0, %v670
      %v672 = vrot.slane %v634, %v671
      %v673 = vlaneseq
      %v674 = vshrl.u32 %v673, 7
      %v675 = vsub.s32 0, %v674
      %v676 = vrot.slane %v635, %v675
      %v677 = vlaneseq
      %v678 = vshrl.u32 %v677, 7
      %v679 = vsub.s32 0, %v678
      %v680 = vrot.slane %v636, %v679
      %v685 = vadd.f32 %v668, %v643
      %v686 = vadd.f32 %v672, %v650
      %v687 = vadd.f32 %v676, %v657
      %v688 = vadd.f32 %v680, %v664
      %vm689 = vcmp.gt.f32.partialorder %v685, 0.0
      %vm690 = vcmp.gt.f32.partialorder %v686, 0.0
      %vm691 = vcmp.gt.f32.partialorder %v687, 0.0
      %vm692 = vcmp.gt.f32.partialorder %v688, 0.0
      %v693 = vmul.f32 %v685, 0.2
      %v694 = vmul.f32 %v686, 0.2
      %v695 = vmul.f32 %v687, 0.2
      %v696 = vmul.f32 %v688, 0.2
      %v697 = vsel %vm689, %v685, %v693
      %v698 = vsel %vm690, %v686, %v694
      %v699 = vsel %vm691, %v687, %v695
      %v700 = vsel %vm692, %v688, %v696
      %v701 = vsub.f32 %v611, 1.0
      %v702 = vmul.f32 %v701, 1e+09
      %v703 = vadd.f32 %v697, %v702
      %v704 = vadd.f32 %v698, %v702
      %v705 = vadd.f32 %v699, %v702
      %v706 = vadd.f32 %v700, %v702
      %vm707 = vcmask 195584
      %v708 = vsel %vm707, %v703, -inf
      %709 = vmax.xlane.f32.xlu0 %v708
      %v710 = vpop.xlane.xlu0 %709
      %v711 = vsel %vm707, %v704, -inf
      %712 = vmax.xlane.f32.xlu0 %v711
      %v713 = vpop.xlane.xlu0 %712
      %v714 = vsel %vm707, %v705, -inf
      %715 = vmax.xlane.f32.xlu0 %v714
      %v716 = vpop.xlane.xlu0 %715
      %v717 = vsel %vm707, %v706, -inf
      %718 = vmax.xlane.f32.xlu0 %v717
      %v719 = vpop.xlane.xlu0 %718
      %v720 = vsub.f32 %v703, %v710
      %v721 = vsub.f32 %v704, %v713
      %v722 = vsub.f32 %v705, %v716
      %v723 = vsub.f32 %v706, %v719
      %v724 = vmul.f32 %v720, 1.442695
      %v725 = vpow.pop %v724
      %v726 = vmul.f32 %v721, 1.442695
      %v727 = vpow.pop %v726
      %v728 = vmul.f32 %v722, 1.442695
      %v729 = vpow.pop %v728
      %v730 = vmul.f32 %v723, 1.442695
      %v731 = vpow.pop %v730
      %v732 = vsel %vm707, %v725, 0.0
      %733 = vadd.xlane.f32.xlu0 %v732
      %v734 = vpop.xlane.xlu0 %733
      %v735 = vsel %vm707, %v727, 0.0
      %736 = vadd.xlane.f32.xlu0 %v735
      %v737 = vpop.xlane.xlu0 %736
      %v738 = vsel %vm707, %v729, 0.0
      %739 = vadd.xlane.f32.xlu0 %v738
      %v740 = vpop.xlane.xlu0 %739
      %v741 = vsel %vm707, %v731, 0.0
      %742 = vadd.xlane.f32.xlu0 %v741
      %v743 = vpop.xlane.xlu0 %742
      %v744 = vrcp.pop %v734
      %v745 = vrcp.pop %v737
      %v746 = vrcp.pop %v740
      %v747 = vrcp.pop %v743
      %v748 = vmul.f32 %v725, %v744
      %v749 = vmul.f32 %v727, %v745
      %v750 = vmul.f32 %v729, %v746
      %v751 = vmul.f32 %v731, %v747
      %v752 = vpack.c.bf16 %v748, %v748
      %v753 = vpack.c.bf16 %v749, %v749
      %v754 = vpack.c.bf16 %v750, %v750
      %v755 = vpack.c.bf16 %v751, %v751
      %v756 = vsel %vm707, %v611, 0.0
      %757 = vadd.xlane.f32.xlu0 %v756
      %v758 = vpop.xlane.xlu0 %757
      %vm759 = vcmp.gt.f32.partialorder %v758, 0.0
      %v760 = vsel %vm759, 1, 0
      %v761 = vcvt.s32.f32 %v760
      %v763 = vsel %vm707, %v752, 0
      %vm765 = vcmask 1043456
      %v766 = vsel %vm765, %v467, 0
      %768 = vmatprep.subr.bf16.mxu0 0
      %769 = vmatpush1.bf16.msra.mxu0 %v466
      %770 = vmatprep.subr.bf16.mxu0 0
      %771 = vmatpush1.bf16.msra.mxu0 %v766
      %772 = vmatprep.subr.bf16.mxu0 0
      %773 = vmatpush1.bf16.msra.mxu0 0
      %774 = vmatprep.subr.bf16.mxu0 0
      %775 = vmatpush1.bf16.msra.mxu0 0
      %776 = vmatprep.subr.bf16.mxu0 0
      %777 = vmatpush1.bf16.msra.mxu0 0
      %778 = vmatprep.subr.bf16.mxu0 0
      %779 = vmatpush1.bf16.msra.mxu0 0
      %780 = vmatprep.subr.bf16.mxu0 0
      %781 = vmatpush1.bf16.msra.mxu0 0
      %782 = vmatprep.subr.bf16.mxu0 0
      %783 = vmatpush1.bf16.msra.mxu0 0
      %784 = vmatprep.subr.bf16.mxu0 0
      %785 = vmatpush1.bf16.msra.mxu0 0
      %786 = vmatprep.subr.bf16.mxu0 0
      %787 = vmatpush1.bf16.msra.mxu0 0
      %788 = vmatprep.subr.bf16.mxu0 0
      %789 = vmatpush1.bf16.msra.mxu0 0
      %790 = vmatprep.subr.bf16.mxu0 0
      %791 = vmatpush1.bf16.msra.mxu0 0
      %792 = vmatprep.subr.bf16.mxu0 0
      %793 = vmatpush1.bf16.msra.mxu0 0
      %794 = vmatprep.subr.bf16.mxu0 0
      %795 = vmatpush1.bf16.msra.mxu0 0
      %796 = vmatprep.subr.bf16.mxu0 0
      %797 = vmatpush1.bf16.msra.mxu0 0
      %798 = vmatprep.subr.bf16.mxu0 0
      %799 = vmatpush1.bf16.msra.mxu0 0
      %800 = vmatprep.mubr.bf16.mxu0 0
      %801 = vmatmul.mubr.bf16.gmra.mrb[0].mxu0 %v763
      %v802 = vpop.f32.mrb[0].mxu0
      %v803 = vadd.f32 0.0, %v802
      %v804 = vpop.f32.mrb[0].mxu0
      %v805 = vpop.f32.mrb[0].mxu0
      %v806 = vpop.f32.mrb[0].mxu0
      %807 = vdwg.mxu0
      %810 = vrot.lane.b32.xlu0 %v466, 120
      %v811 = vpop.permute.xlu0 %810
      %812 = vrot.lane.b32.xlu0 %v467, 120
      %v813 = vpop.permute.xlu0 %812
      %v816 = vsel %vm707, %v753, 0
      %v819 = vsel %vm765, %v813, 0
      %821 = vmatprep.subr.bf16.mxu0 0
      %822 = vmatpush1.bf16.msra.mxu0 %v811
      %823 = vmatprep.subr.bf16.mxu0 0
      %824 = vmatpush1.bf16.msra.mxu0 %v819
      %825 = vmatprep.subr.bf16.mxu0 0
      %826 = vmatpush1.bf16.msra.mxu0 0
      %827 = vmatprep.subr.bf16.mxu0 0
      %828 = vmatpush1.bf16.msra.mxu0 0
      %829 = vmatprep.subr.bf16.mxu0 0
      %830 = vmatpush1.bf16.msra.mxu0 0
      %831 = vmatprep.subr.bf16.mxu0 0
      %832 = vmatpush1.bf16.msra.mxu0 0
      %833 = vmatprep.subr.bf16.mxu0 0
      %834 = vmatpush1.bf16.msra.mxu0 0
      %835 = vmatprep.subr.bf16.mxu0 0
      %836 = vmatpush1.bf16.msra.mxu0 0
      %837 = vmatprep.subr.bf16.mxu0 0
      %838 = vmatpush1.bf16.msra.mxu0 0
      %839 = vmatprep.subr.bf16.mxu0 0
      %840 = vmatpush1.bf16.msra.mxu0 0
      %841 = vmatprep.subr.bf16.mxu0 0
      %842 = vmatpush1.bf16.msra.mxu0 0
      %843 = vmatprep.subr.bf16.mxu0 0
      %844 = vmatpush1.bf16.msra.mxu0 0
      %845 = vmatprep.subr.bf16.mxu0 0
      %846 = vmatpush1.bf16.msra.mxu0 0
      %847 = vmatprep.subr.bf16.mxu0 0
      %848 = vmatpush1.bf16.msra.mxu0 0
      %849 = vmatprep.subr.bf16.mxu0 0
      %850 = vmatpush1.bf16.msra.mxu0 0
      %851 = vmatprep.subr.bf16.mxu0 0
      %852 = vmatpush1.bf16.msra.mxu0 0
      %853 = vmatprep.mubr.bf16.mxu0 0
      %854 = vmatmul.mubr.bf16.gmra.mrb[0].mxu0 %v816
      %v855 = vpop.f32.mrb[0].mxu0
      %v856 = vadd.f32 0.0, %v855
      %v857 = vpop.f32.mrb[0].mxu0
      %v858 = vpop.f32.mrb[0].mxu0
      %v859 = vpop.f32.mrb[0].mxu0
      %860 = vdwg.mxu0
      %861 = vrot.lane.b32.xlu0 %v466, 112
      %v862 = vpop.permute.xlu0 %861
      %863 = vrot.lane.b32.xlu0 %v467, 112
      %v864 = vpop.permute.xlu0 %863
      %v867 = vsel %vm707, %v754, 0
      %v870 = vsel %vm765, %v864, 0
      %872 = vmatprep.subr.bf16.mxu0 0
      %873 = vmatpush1.bf16.msra.mxu0 %v862
      %874 = vmatprep.subr.bf16.mxu0 0
      %875 = vmatpush1.bf16.msra.mxu0 %v870
      %876 = vmatprep.subr.bf16.mxu0 0
      %877 = vmatpush1.bf16.msra.mxu0 0
      %878 = vmatprep.subr.bf16.mxu0 0
      %879 = vmatpush1.bf16.msra.mxu0 0
      %880 = vmatprep.subr.bf16.mxu0 0
      %881 = vmatpush1.bf16.msra.mxu0 0
      %882 = vmatprep.subr.bf16.mxu0 0
      %883 = vmatpush1.bf16.msra.mxu0 0
      %884 = vmatprep.subr.bf16.mxu0 0
      %885 = vmatpush1.bf16.msra.mxu0 0
      %886 = vmatprep.subr.bf16.mxu0 0
      %887 = vmatpush1.bf16.msra.mxu0 0
      %888 = vmatprep.subr.bf16.mxu0 0
      %889 = vmatpush1.bf16.msra.mxu0 0
      %890 = vmatprep.subr.bf16.mxu0 0
      %891 = vmatpush1.bf16.msra.mxu0 0
      %892 = vmatprep.subr.bf16.mxu0 0
      %893 = vmatpush1.bf16.msra.mxu0 0
      %894 = vmatprep.subr.bf16.mxu0 0
      %895 = vmatpush1.bf16.msra.mxu0 0
      %896 = vmatprep.subr.bf16.mxu0 0
      %897 = vmatpush1.bf16.msra.mxu0 0
      %898 = vmatprep.subr.bf16.mxu0 0
      %899 = vmatpush1.bf16.msra.mxu0 0
      %900 = vmatprep.subr.bf16.mxu0 0
      %901 = vmatpush1.bf16.msra.mxu0 0
      %902 = vmatprep.subr.bf16.mxu0 0
      %903 = vmatpush1.bf16.msra.mxu0 0
      %904 = vmatprep.mubr.bf16.mxu0 0
      %905 = vmatmul.mubr.bf16.gmra.mrb[0].mxu0 %v867
      %v906 = vpop.f32.mrb[0].mxu0
      %v907 = vadd.f32 0.0, %v906
      %v908 = vpop.f32.mrb[0].mxu0
      %v909 = vpop.f32.mrb[0].mxu0
      %v910 = vpop.f32.mrb[0].mxu0
      %911 = vdwg.mxu0
      %912 = vrot.lane.b32.xlu0 %v466, 104
      %v913 = vpop.permute.xlu0 %912
      %914 = vrot.lane.b32.xlu0 %v467, 104
      %v915 = vpop.permute.xlu0 %914
      %v918 = vsel %vm707, %v755, 0
      %v921 = vsel %vm765, %v915, 0
      %923 = vmatprep.subr.bf16.mxu0 0
      %924 = vmatpush1.bf16.msra.mxu0 %v913
      %925 = vmatprep.subr.bf16.mxu0 0
      %926 = vmatpush1.bf16.msra.mxu0 %v921
      %927 = vmatprep.subr.bf16.mxu0 0
      %928 = vmatpush1.bf16.msra.mxu0 0
      %929 = vmatprep.subr.bf16.mxu0 0
      %930 = vmatpush1.bf16.msra.mxu0 0
      %931 = vmatprep.subr.bf16.mxu0 0
      %932 = vmatpush1.bf16.msra.mxu0 0
      %933 = vmatprep.subr.bf16.mxu0 0
      %934 = vmatpush1.bf16.msra.mxu0 0
      %935 = vmatprep.subr.bf16.mxu0 0
      %936 = vmatpush1.bf16.msra.mxu0 0
      %937 = vmatprep.subr.bf16.mxu0 0
      %938 = vmatpush1.bf16.msra.mxu0 0
      %939 = vmatprep.subr.bf16.mxu0 0
      %940 = vmatpush1.bf16.msra.mxu0 0
      %941 = vmatprep.subr.bf16.mxu0 0
      %942 = vmatpush1.bf16.msra.mxu0 0
      %943 = vmatprep.subr.bf16.mxu0 0
      %944 = vmatpush1.bf16.msra.mxu0 0
      %945 = vmatprep.subr.bf16.mxu0 0
      %946 = vmatpush1.bf16.msra.mxu0 0
      %947 = vmatprep.subr.bf16.mxu0 0
      %948 = vmatpush1.bf16.msra.mxu0 0
      %949 = vmatprep.subr.bf16.mxu0 0
      %950 = vmatpush1.bf16.msra.mxu0 0
      %951 = vmatprep.subr.bf16.mxu0 0
      %952 = vmatpush1.bf16.msra.mxu0 0
      %953 = vmatprep.subr.bf16.mxu0 0
      %954 = vmatpush1.bf16.msra.mxu0 0
      %955 = vmatprep.mubr.bf16.mxu0 0
      %956 = vmatmul.mubr.bf16.gmra.mrb[0].mxu0 %v918
      %v957 = vpop.f32.mrb[0].mxu0
      %v958 = vadd.f32 0.0, %v957
      %v959 = vpop.f32.mrb[0].mxu0
      %v960 = vpop.f32.mrb[0].mxu0
      %v961 = vpop.f32.mrb[0].mxu0
      %962 = vdwg.mxu0
      %964 = vrot.lane.b32.xlu0 %v856, 8
      %v965 = vpop.permute.xlu0 %964
      %968 = vrot.lane.b32.xlu0 %v907, 16
      %v969 = vpop.permute.xlu0 %968
      %972 = vrot.lane.b32.xlu0 %v958, 24
      %v973 = vpop.permute.xlu0 %972
      %vm975 = vcmask 64512
      %v976 = vsel %vm975, %v803, %v965
      %v977 = vsel %vm411, %v976, %v969
      %v978 = vsel %vm707, %v977, %v973
      %v979 = vld [vmem:[%s384] sm:$0xff]
      %v980 = vmul.f32 %v761, %v978
      %v981 = vadd.f32 %v979, %v980
      %v982 = vld [vmem:[%s380] sm:$0x1]
      %v984 = vlaneseq
      %v985 = vshrl.u32 %v984, 7
      %v986 = vsub.s32 0, %v985
      %v987 = vrot.slane %v982, %v986
      %v989 = vadd.f32 %v981, %v987
      %990 = vst.msk [vmem:[%s384] sm:$0xff] %vm514, %v989
      %p991 = scmp.lt.s32.totalorder %s22, 1
      %s992 = scalar_select %p991, %s22, 1
      %s993 = smul.addr %s992, 8
      %s994 = scalar_lea.vmem %s7, %s993
      // Predicated region
      $region53: #{stochastic_two_layer_rgcn.2} parent=47 // pred_check
        %p995 = pneg %p227
      $region54: #{stochastic_two_layer_rgcn.2} parent=47 // pred_check_branch
        %997 = sbr.rel (%p995) target = $region56
      $region55: #{stochastic_two_layer_rgcn.2} parent=47 // pred_region
        _
      $region56: #{stochastic_two_layer_rgcn.2} parent=47 // pred_fallthru
        _
    $region48: #{stochastic_two_layer_rgcn.2} parent=5 // pred_fallthru
      _
    %p998 = scmp.le.s32.totalorder 2, %s13
    // Predicated region
    $region57: #{stochastic_two_layer_rgcn.2} parent=5 // pred_check
      %p999 = pneg %p998
    $region58: #{stochastic_two_layer_rgcn.2} parent=5 // pred_check_branch
      %1001 = sbr.rel (%p999) target = $region60
    $region59: #{stochastic_two_layer_rgcn.2} parent=5 // pred_region
      %s1002 = ssub.s32 %s13, 2
      // Predicated region
      $region61: #{stochastic_two_layer_rgcn.2} parent=59 // pred_check
        %p1003 = pneg %p233
      $region62: #{stochastic_two_layer_rgcn.2} parent=59 // pred_check_branch
        %1005 = sbr.rel (%p1003) target = $region64
      $region63: #{stochastic_two_layer_rgcn.2} parent=59 // pred_region
        %p1006 = scmp.lt.s32.totalorder %s24, 1
        %s1007 = scalar_select %p1006, %s24, 1
        %s1008 = smul.addr %s1007, 8
        %s1009 = scalar_lea.vmem %s7, %s1008
      $region64: #{stochastic_two_layer_rgcn.2} parent=59 // pred_fallthru
        _
    $region60: #{stochastic_two_layer_rgcn.2} parent=5 // pred_fallthru
      _
  $region6: #{stochastic_two_layer_rgcn.2} parent=0 // loop_footer
    %s17 = sadd.s32 1, %s13
  $region7: #{stochastic_two_layer_rgcn.2} parent=0 // loop_footer_branch
    %12 = sbr.rel target = $region3
  $region8: #{stochastic_two_layer_rgcn.2} parent=0 // loop_exit
    _

// kernel: stochastic_two_layer_rgcn.3
$region0: #{stochastic_two_layer_rgcn.3}
  #allocation0 [shape = 'u32[]', space=smem, size = 0x4, offset = 0x4, fixed_abs, tag = 'smem constant byte address 0x4 - core index']
  #allocation1 [shape = 'u32[144,128]{1,0:T(1,128)}', space=vmem, size = 0x12000, scoped, tag = 'internal scratch']
  %s0 = inlined_call_operand.vmem [shape: bf16[16,32], index: 0, kind: input, shape index: {}, may-alias: {0,1}]
  %s1 = inlined_call_operand.vmem [shape: bf16[16,32], index: 1, kind: input, shape index: {}, may-alias: {0,1}]
  %s2 = inlined_call_operand.vmem [shape: bf16[3,32,128], index: 2, kind: input, shape index: {}]
  %s3 = inlined_call_operand.vmem [shape: bf16[3,16,128], index: 3, kind: input, shape index: {}]
  %s4 = inlined_call_operand.vmem [shape: bf16[3,16,128], index: 4, kind: input, shape index: {}]
  %s5 = inlined_call_operand.vmem [shape: f32[3,8,16], index: 5, kind: input, shape index: {}]
  %s6 = inlined_call_operand.vmem [shape: f32[3,1,128], index: 6, kind: input, shape index: {}]
  %s7 = inlined_call_operand.vmem [shape: f32[8,128], index: 7, kind: output, shape index: {}]
  %s8 = sld [smem:[#allocation0]]
  $region65: #{stochastic_two_layer_rgcn.3} parent=0
    _
  %s10 = ssub.s32 1, %s8
  %s11 = scalar_select 0, %s10, %s8
  loop: start=0, step=1, limit=5
  $region2: #{stochastic_two_layer_rgcn.3} parent=0 // loop_pre_header
    _
  $region3: #{stochastic_two_layer_rgcn.3} parent=0 // loop_header
    %s13 = sphi 0, %s17
    %p14 = scmp.ge.s32.totalorder %s13, 5
    %s20 = sphi 0, %s32
    %s21 = sphi 0, %s28
    %s22 = sphi 0, %s20
    %s23 = sphi 0, %s21
    %s24 = sphi 0, %s22
    %s25 = sphi 0, %s23
    %s33 = sphi 0, %s33
    %s35 = sphi 0, %s33
    %s36 = sphi 0, %s35
    %s50 = sphi 0, %s36
    %s56 = sphi 0, %s58
    %s59 = sphi 0, %s56
    %s60 = sphi 0, %s59
    %s76 = sphi 0, %s60
    %s82 = sphi 0, %s84
    %s85 = sphi 0, %s82
    %s86 = sphi 0, %s85
    %s102 = sphi 0, %s86
    %s108 = sphi 0, %s110
    %s111 = sphi 0, %s108
    %s112 = sphi 0, %s111
    %s128 = sphi 0, %s112
    %s134 = sphi 0, %s136
    %s137 = sphi 0, %s134
    %s138 = sphi 0, %s137
    %s154 = sphi 0, %s138
    %s162 = sphi 0, %s164
    %s165 = sphi 0, %s162
    %s166 = sphi 0, %s165
    %s182 = sphi 0, %s166
    %s188 = sphi 0, %s190
    %s191 = sphi 0, %s188
    %s192 = sphi 0, %s191
    %s208 = sphi 0, %s192
    %s214 = sphi 0, %s216
    %s217 = sphi 0, %s214
    %s218 = sphi 0, %s217
    %s234 = sphi 0, %s218
  $region4: #{stochastic_two_layer_rgcn.3} parent=0 // loop_header_branch
    %16 = sbr.rel (%p14) target = $region8
  $region5: #{stochastic_two_layer_rgcn.3} parent=0 // loop_body
    %s18 = ssub.s32 %s13, 1
    %s19 = ssub.s32 %s13, 2
    %s26 = sadd.s32 1, %s21
    %p27 = scmp.ge.s32.totalorder %s26, 3
    %s28 = scalar_select %p27, 0, %s26
    %s29 = sadd.s32 1, %s20
    %s30 = scalar_select %p27, %s29, %s20
    %p31 = scmp.ge.s32.totalorder %s30, 1
    %s32 = scalar_select %p31, 0, %s30
    %s34 = sadd.s32 %s33, 1
    %p37 = scmp.eq.s32.totalorder %s13, 2
    %p38 = scmp.ne.s32.totalorder %s33, %s35
    %p39 = scmp.eq.s32.totalorder %s13, 0
    %p40 = por %p38, %p39
    %p41 = scmp.ne.s32.totalorder %s33, %s35
    %p42 = scmp.eq.s32.totalorder %s18, 2
    %p43 = por %p41, %p42
    %p44 = scmp.ne.s32.totalorder %s35, %s36
    %p45 = scmp.eq.s32.totalorder %s18, 0
    %p46 = por %p44, %p45
    %p47 = scmp.ne.s32.totalorder %s35, %s36
    %p48 = scmp.eq.s32.totalorder %s19, 2
    %p49 = por %p47, %p48
    %p51 = scmp.ne.s32.totalorder %s36, %s50
    %p52 = scmp.eq.s32.totalorder %s19, 0
    %p53 = por %p51, %p52
    %s54 = ssub.s32 %s20, %s32
    %p55 = scmp.eq.s32.totalorder %s54, 0
    %s57 = sadd.s32 %s56, 1
    %s58 = scalar_select %p55, %s56, %s57
    %p61 = pneg %p55
    %p62 = scmp.eq.s32.totalorder %s13, 2
    %p63 = por %p61, %p62
    %p64 = scmp.ne.s32.totalorder %s56, %s59
    %p65 = scmp.eq.s32.totalorder %s13, 0
    %p66 = por %p64, %p65
    %p67 = scmp.ne.s32.totalorder %s56, %s59
    %p68 = scmp.eq.s32.totalorder %s18, 2
    %p69 = por %p67, %p68
    %p70 = scmp.ne.s32.totalorder %s59, %s60
    %p71 = scmp.eq.s32.totalorder %s18, 0
    %p72 = por %p70, %p71
    %p73 = scmp.ne.s32.totalorder %s59, %s60
    %p74 = scmp.eq.s32.totalorder %s19, 2
    %p75 = por %p73, %p74
    %p77 = scmp.ne.s32.totalorder %s60, %s76
    %p78 = scmp.eq.s32.totalorder %s19, 0
    %p79 = por %p77, %p78
    %s80 = ssub.s32 %s21, %s28
    %p81 = scmp.eq.s32.totalorder %s80, 0
    %s83 = sadd.s32 %s82, 1
    %s84 = scalar_select %p81, %s82, %s83
    %p87 = pneg %p81
    %p88 = scmp.eq.s32.totalorder %s13, 2
    %p89 = por %p87, %p88
    %p90 = scmp.ne.s32.totalorder %s82, %s85
    %p91 = scmp.eq.s32.totalorder %s13, 0
    %p92 = por %p90, %p91
    %p93 = scmp.ne.s32.totalorder %s82, %s85
    %p94 = scmp.eq.s32.totalorder %s18, 2
    %p95 = por %p93, %p94
    %p96 = scmp.ne.s32.totalorder %s85, %s86
    %p97 = scmp.eq.s32.totalorder %s18, 0
    %p98 = por %p96, %p97
    %p99 = scmp.ne.s32.totalorder %s85, %s86
    %p100 = scmp.eq.s32.totalorder %s19, 2
    %p101 = por %p99, %p100
    %p103 = scmp.ne.s32.totalorder %s86, %s102
    %p104 = scmp.eq.s32.totalorder %s19, 0
    %p105 = por %p103, %p104
    %s106 = ssub.s32 %s21, %s28
    %p107 = scmp.eq.s32.totalorder %s106, 0
    %s109 = sadd.s32 %s108, 1
    %s110 = scalar_select %p107, %s108, %s109
    %p113 = pneg %p107
    %p114 = scmp.eq.s32.totalorder %s13, 2
    %p115 = por %p113, %p114
    %p116 = scmp.ne.s32.totalorder %s108, %s111
    %p117 = scmp.eq.s32.totalorder %s13, 0
    %p118 = por %p116, %p117
    %p119 = scmp.ne.s32.totalorder %s108, %s111
    %p120 = scmp.eq.s32.totalorder %s18, 2
    %p121 = por %p119, %p120
    %p122 = scmp.ne.s32.totalorder %s111, %s112
    %p123 = scmp.eq.s32.totalorder %s18, 0
    %p124 = por %p122, %p123
    %p125 = scmp.ne.s32.totalorder %s111, %s112
    %p126 = scmp.eq.s32.totalorder %s19, 2
    %p127 = por %p125, %p126
    %p129 = scmp.ne.s32.totalorder %s112, %s128
    %p130 = scmp.eq.s32.totalorder %s19, 0
    %p131 = por %p129, %p130
    %s132 = ssub.s32 %s21, %s28
    %p133 = scmp.eq.s32.totalorder %s132, 0
    %s135 = sadd.s32 %s134, 1
    %s136 = scalar_select %p133, %s134, %s135
    %p139 = pneg %p133
    %p140 = scmp.eq.s32.totalorder %s13, 2
    %p141 = por %p139, %p140
    %p142 = scmp.ne.s32.totalorder %s134, %s137
    %p143 = scmp.eq.s32.totalorder %s13, 0
    %p144 = por %p142, %p143
    %p145 = scmp.ne.s32.totalorder %s134, %s137
    %p146 = scmp.eq.s32.totalorder %s18, 2
    %p147 = por %p145, %p146
    %p148 = scmp.ne.s32.totalorder %s137, %s138
    %p149 = scmp.eq.s32.totalorder %s18, 0
    %p150 = por %p148, %p149
    %p151 = scmp.ne.s32.totalorder %s137, %s138
    %p152 = scmp.eq.s32.totalorder %s19, 2
    %p153 = por %p151, %p152
    %p155 = scmp.ne.s32.totalorder %s138, %s154
    %p156 = scmp.eq.s32.totalorder %s19, 0
    %p157 = por %p155, %p156
    %s158 = ssub.s32 %s21, %s28
    %s159 = ssub.s32 %s20, %s32
    %s160 = sor.u32 %s158, %s159
    %p161 = scmp.eq.s32.totalorder %s160, 0
    %s163 = sadd.s32 %s162, 1
    %s164 = scalar_select %p161, %s162, %s163
    %p167 = pneg %p161
    %p168 = scmp.eq.s32.totalorder %s13, 2
    %p169 = por %p167, %p168
    %p170 = scmp.ne.s32.totalorder %s162, %s165
    %p171 = scmp.eq.s32.totalorder %s13, 0
    %p172 = por %p170, %p171
    %p173 = scmp.ne.s32.totalorder %s162, %s165
    %p174 = scmp.eq.s32.totalorder %s18, 2
    %p175 = por %p173, %p174
    %p176 = scmp.ne.s32.totalorder %s165, %s166
    %p177 = scmp.eq.s32.totalorder %s18, 0
    %p178 = por %p176, %p177
    %p179 = scmp.ne.s32.totalorder %s165, %s166
    %p180 = scmp.eq.s32.totalorder %s19, 2
    %p181 = por %p179, %p180
    %p183 = scmp.ne.s32.totalorder %s166, %s182
    %p184 = scmp.eq.s32.totalorder %s19, 0
    %p185 = por %p183, %p184
    %s186 = ssub.s32 %s21, %s28
    %p187 = scmp.eq.s32.totalorder %s186, 0
    %s189 = sadd.s32 %s188, 1
    %s190 = scalar_select %p187, %s188, %s189
    %p193 = pneg %p187
    %p194 = scmp.eq.s32.totalorder %s13, 2
    %p195 = por %p193, %p194
    %p196 = scmp.ne.s32.totalorder %s188, %s191
    %p197 = scmp.eq.s32.totalorder %s13, 0
    %p198 = por %p196, %p197
    %p199 = scmp.ne.s32.totalorder %s188, %s191
    %p200 = scmp.eq.s32.totalorder %s18, 2
    %p201 = por %p199, %p200
    %p202 = scmp.ne.s32.totalorder %s191, %s192
    %p203 = scmp.eq.s32.totalorder %s18, 0
    %p204 = por %p202, %p203
    %p205 = scmp.ne.s32.totalorder %s191, %s192
    %p206 = scmp.eq.s32.totalorder %s19, 2
    %p207 = por %p205, %p206
    %p209 = scmp.ne.s32.totalorder %s192, %s208
    %p210 = scmp.eq.s32.totalorder %s19, 0
    %p211 = por %p209, %p210
    %s212 = ssub.s32 %s20, %s32
    %p213 = scmp.eq.s32.totalorder %s212, 0
    %s215 = sadd.s32 %s214, 1
    %s216 = scalar_select %p213, %s214, %s215
    %p219 = pneg %p213
    %p220 = scmp.eq.s32.totalorder %s13, 2
    %p221 = por %p219, %p220
    %p222 = scmp.ne.s32.totalorder %s214, %s217
    %p223 = scmp.eq.s32.totalorder %s13, 0
    %p224 = por %p222, %p223
    %p225 = scmp.ne.s32.totalorder %s214, %s217
    %p226 = scmp.eq.s32.totalorder %s18, 2
    %p227 = por %p225, %p226
    %p228 = scmp.ne.s32.totalorder %s217, %s218
    %p229 = scmp.eq.s32.totalorder %s18, 0
    %p230 = por %p228, %p229
    %p231 = scmp.ne.s32.totalorder %s217, %s218
    %p232 = scmp.eq.s32.totalorder %s19, 2
    %p233 = por %p231, %p232
    %p235 = scmp.ne.s32.totalorder %s218, %s234
    %p236 = scmp.eq.s32.totalorder %s19, 0
    %p237 = por %p235, %p236
    %p238 = scmp.le.s32.totalorder 1, %s13
    %p239 = scmp.lt.s32.totalorder %s13, 4
    %p240 = pnand %p238, %p239
    %p241 = pneg %p240
    // Predicated region
    $region9: #{stochastic_two_layer_rgcn.3} parent=5 // pred_check
      _
    $region10: #{stochastic_two_layer_rgcn.3} parent=5 // pred_check_branch
      %243 = sbr.rel (%p240) target = $region12
    $region11: #{stochastic_two_layer_rgcn.3} parent=5 // pred_region
      %s244 = ssub.s32 %s13, 1
      // Predicated region
      $region13: #{stochastic_two_layer_rgcn.3} parent=11 // pred_check
        %p245 = pneg %p46
      $region14: #{stochastic_two_layer_rgcn.3} parent=11 // pred_check_branch
        %247 = sbr.rel (%p245) target = $region16
      $region15: #{stochastic_two_layer_rgcn.3} parent=11 // pred_region
        _
      $region16: #{stochastic_two_layer_rgcn.3} parent=11 // pred_fallthru
        _
      // Predicated region
      $region17: #{stochastic_two_layer_rgcn.3} parent=11 // pred_check
        %p248 = pneg %p72
      $region18: #{stochastic_two_layer_rgcn.3} parent=11 // pred_check_branch
        %250 = sbr.rel (%p248) target = $region20
      $region19: #{stochastic_two_layer_rgcn.3} parent=11 // pred_region
        %p251 = scmp.lt.s32.totalorder %s22, 1
        %s252 = scalar_select %p251, %s22, 1
        %s253 = smul.addr %s252, 4
        %s254 = scalar_lea.vmem %s1, %s253
      $region20: #{stochastic_two_layer_rgcn.3} parent=11 // pred_fallthru
        _
    $region12: #{stochastic_two_layer_rgcn.3} parent=5 // pred_fallthru
      _
    %p255 = scmp.lt.s32.totalorder %s13, 3
    // Predicated region
    $region21: #{stochastic_two_layer_rgcn.3} parent=5 // pred_check
      %p256 = pneg %p255
    $region22: #{stochastic_two_layer_rgcn.3} parent=5 // pred_check_branch
      %258 = sbr.rel (%p256) target = $region24
    $region23: #{stochastic_two_layer_rgcn.3} parent=5 // pred_region
      // Predicated region
      $region25: #{stochastic_two_layer_rgcn.3} parent=23 // pred_check
        %p259 = pneg %p92
      $region26: #{stochastic_two_layer_rgcn.3} parent=23 // pred_check_branch
        %261 = sbr.rel (%p259) target = $region28
      $region27: #{stochastic_two_layer_rgcn.3} parent=23 // pred_region
        %p262 = scmp.lt.s32.totalorder %s21, 2
        %s263 = scalar_select %p262, %s21, 2
        %s264 = smul.addr %s263, 4
        %s265 = smul.addr %s264, 4
        %s266 = scalar_lea.vmem %s2, %s265
      $region28: #{stochastic_two_layer_rgcn.3} parent=23 // pred_fallthru
        _
      // Predicated region
      $region29: #{stochastic_two_layer_rgcn.3} parent=23 // pred_check
        %p267 = pneg %p118
      $region30: #{stochastic_two_layer_rgcn.3} parent=23 // pred_check_branch
        %269 = sbr.rel (%p267) target = $region32
      $region31: #{stochastic_two_layer_rgcn.3} parent=23 // pred_region
        %p270 = scmp.lt.s32.totalorder %s21, 2
        %s271 = scalar_select %p270, %s21, 2
        %s272 = smul.addr %s271, 2
        %s273 = smul.addr %s272, 4
        %s274 = scalar_lea.vmem %s3, %s273
      $region32: #{stochastic_two_layer_rgcn.3} parent=23 // pred_fallthru
        _
      // Predicated region
      $region33: #{stochastic_two_layer_rgcn.3} parent=23 // pred_check
        %p275 = pneg %p144
      $region34: #{stochastic_two_layer_rgcn.3} parent=23 // pred_check_branch
        %277 = sbr.rel (%p275) target = $region36
      $region35: #{stochastic_two_layer_rgcn.3} parent=23 // pred_region
        %p278 = scmp.lt.s32.totalorder %s21, 2
        %s279 = scalar_select %p278, %s21, 2
        %s280 = smul.addr %s279, 2
        %s281 = smul.addr %s280, 4
        %s282 = scalar_lea.vmem %s4, %s281
      $region36: #{stochastic_two_layer_rgcn.3} parent=23 // pred_fallthru
        _
      // Predicated region
      $region37: #{stochastic_two_layer_rgcn.3} parent=23 // pred_check
        %p283 = pneg %p172
      $region38: #{stochastic_two_layer_rgcn.3} parent=23 // pred_check_branch
        %285 = sbr.rel (%p283) target = $region40
      $region39: #{stochastic_two_layer_rgcn.3} parent=23 // pred_region
        %p286 = scmp.lt.s32.totalorder %s21, 2
        %s287 = scalar_select %p286, %s21, 2
        %p288 = scmp.lt.s32.totalorder %s20, 0
        %s289 = scalar_select %p288, %s20, 0
        %s290 = sadd.s32 %s289, %s287
        %s291 = smul.addr %s290, 8
        %s292 = scalar_lea.vmem %s5, %s291
      $region40: #{stochastic_two_layer_rgcn.3} parent=23 // pred_fallthru
        _
      // Predicated region
      $region41: #{stochastic_two_layer_rgcn.3} parent=23 // pred_check
        %p293 = pneg %p198
      $region42: #{stochastic_two_layer_rgcn.3} parent=23 // pred_check_branch
        %295 = sbr.rel (%p293) target = $region44
      $region43: #{stochastic_two_layer_rgcn.3} parent=23 // pred_region
        %p296 = scmp.lt.s32.totalorder %s21, 2
        %s297 = scalar_select %p296, %s21, 2
        %s298 = scalar_lea.vmem %s6, %s297
      $region44: #{stochastic_two_layer_rgcn.3} parent=23 // pred_fallthru
        _
    $region24: #{stochastic_two_layer_rgcn.3} parent=5 // pred_fallthru
      _
    %p299 = scmp.le.s32.totalorder 1, %s13
    %p300 = scmp.lt.s32.totalorder %s13, 4
    %p301 = pnand %p299, %p300
    %p302 = pneg %p301
    // Predicated region
    $region45: #{stochastic_two_layer_rgcn.3} parent=5 // pred_check
      _
    $region46: #{stochastic_two_layer_rgcn.3} parent=5 // pred_check_branch
      %304 = sbr.rel (%p301) target = $region48
    $region47: #{stochastic_two_layer_rgcn.3} parent=5 // pred_region
      %s305 = ssub.s32 %s13, 1
      %p306 = pneg %p46
      %p307 = pneg %p43
      %p308 = scmp.lt.s32.totalorder %s22, 1
      %s309 = scalar_select %p308, %s22, 1
      %s310 = smul.addr %s309, 4
      %s311 = scalar_lea.vmem %s1, %s310
      %p312 = pneg %p72
      %p313 = pneg %p69
      %p314 = scmp.lt.s32.totalorder %s23, 2
      %s315 = scalar_select %p314, %s23, 2
      %s316 = smul.addr %s315, 4
      %s317 = smul.addr %s316, 4
      %s318 = scalar_lea.vmem %s2, %s317
      %p319 = pneg %p98
      %p320 = pneg %p95
      %p321 = scmp.lt.s32.totalorder %s23, 2
      %s322 = scalar_select %p321, %s23, 2
      %s323 = smul.addr %s322, 2
      %s324 = smul.addr %s323, 4
      %s325 = scalar_lea.vmem %s3, %s324
      %p326 = pneg %p124
      %p327 = pneg %p121
      %p328 = scmp.lt.s32.totalorder %s23, 2
      %s329 = scalar_select %p328, %s23, 2
      %s330 = smul.addr %s329, 2
      %s331 = smul.addr %s330, 4
      %s332 = scalar_lea.vmem %s4, %s331
      %p333 = pneg %p150
      %p334 = pneg %p147
      %p335 = scmp.lt.s32.totalorder %s23, 2
      %s336 = scalar_select %p335, %s23, 2
      %p337 = scmp.lt.s32.totalorder %s22, 0
      %s338 = scalar_select %p337, %s22, 0
      %s339 = sadd.s32 %s338, %s336
      %s340 = smul.addr %s339, 8
      %s341 = scalar_lea.vmem %s5, %s340
      %p342 = pneg %p178
      %p343 = pneg %p175
      %p344 = scmp.lt.s32.totalorder %s23, 2
      %s345 = scalar_select %p344, %s23, 2
      %s346 = scalar_lea.vmem %s6, %s345
      %p347 = pneg %p204
      %p348 = pneg %p201
      %p349 = pneg %p230
      %p350 = pneg %p227
      %p351 = scmp.lt.s32.totalorder %s22, 0
      %s352 = scalar_select %p351, %s22, 0
      %s353 = smul.addr %s352, 8
      %s354 = scalar_lea.vmem %s7, %s353
      %p355 = scmp.lt.s32.totalorder %s22, 1
      %s356 = scalar_select %p355, %s22, 1
      %s357 = smul.addr %s356, 4
      %s358 = scalar_lea.vmem %s1, %s357
      %p359 = scmp.lt.s32.totalorder %s23, 2
      %s360 = scalar_select %p359, %s23, 2
      %s361 = smul.addr %s360, 4
      %s362 = smul.addr %s361, 4
      %s363 = scalar_lea.vmem %s2, %s362
      %p364 = scmp.lt.s32.totalorder %s23, 2
      %s365 = scalar_select %p364, %s23, 2
      %s366 = smul.addr %s365, 2
      %s367 = smul.addr %s366, 4
      %s368 = scalar_lea.vmem %s3, %s367
      %p369 = scmp.lt.s32.totalorder %s23, 2
      %s370 = scalar_select %p369, %s23, 2
      %s371 = smul.addr %s370, 2
      %s372 = smul.addr %s371, 4
      %s373 = scalar_lea.vmem %s4, %s372
      %p374 = scmp.lt.s32.totalorder %s23, 2
      %s375 = scalar_select %p374, %s23, 2
      %p376 = scmp.lt.s32.totalorder %s22, 0
      %s377 = scalar_select %p376, %s22, 0
      %s378 = sadd.s32 %s377, %s375
      %s379 = smul.addr %s378, 8
      %s380 = scalar_lea.vmem %s5, %s379
      %p381 = scmp.lt.s32.totalorder %s23, 2
      %s382 = scalar_select %p381, %s23, 2
      %s383 = scalar_lea.vmem %s6, %s382
      %p384 = scmp.lt.s32.totalorder %s22, 0
      %s385 = scalar_select %p384, %s22, 0
      %s386 = smul.addr %s385, 8
      %s387 = scalar_lea.vmem %s7, %s386
      %p389 = scmp.eq.s32.totalorder %s23, 0
      // Predicated region
      $region49: #{stochastic_two_layer_rgcn.3} parent=47 // pred_check
        %p390 = pneg %p389
      $region50: #{stochastic_two_layer_rgcn.3} parent=47 // pred_check_branch
        %392 = sbr.rel (%p390) target = $region52
      $region51: #{stochastic_two_layer_rgcn.3} parent=47 // pred_region
        %393 = vst [vmem:[%s387] sm:$0xff] 0.0
      $region52: #{stochastic_two_layer_rgcn.3} parent=47 // pred_fallthru
        _
      %v394 = vld [vmem:[%s363] sm:$0xf]
      %v395 = vld [vmem:[%s363 + $0x4] sm:$0xf]
      %v396 = vld [vmem:[%s363 + $0x8] sm:$0xf]
      %v397 = vld [vmem:[%s363 + $0xc] sm:$0xf]
      %v398 = vld [vmem:[%s0] sm:$0xf]
      %v399 = vld [vmem:[%s0 + $0x4] sm:$0xf]
      %v402 = vunpack.c.l.b16 %v398
      %v403 = vunpack.c.l.b16 %v399
      %v404 = vpack.c.b16 %v403, %v402
      %v409 = vunpack.c.l.b16 %v394
      %v410 = vunpack.c.l.b16 %v395
      %v411 = vunpack.c.l.b16 %v396
      %v412 = vunpack.c.l.b16 %v397
      %v413 = vpack.c.b16 %v410, %v409
      %v414 = vpack.c.b16 %v412, %v411
      %vm417 = vcmask 261120
      %v419 = vsel %vm417, %v404, 0
      %421 = vmatprep.subr.bf16.mxu0 0
      %422 = vmatpush1.bf16.msra.mxu0 %v413
      %423 = vmatprep.subr.bf16.mxu0 0
      %424 = vmatpush1.bf16.msra.mxu0 %v414
      %425 = vmatprep.subr.bf16.mxu0 0
      %426 = vmatpush1.bf16.msra.mxu0 0
      %427 = vmatprep.subr.bf16.mxu0 0
      %428 = vmatpush1.bf16.msra.mxu0 0
      %429 = vmatprep.subr.bf16.mxu0 0
      %430 = vmatpush1.bf16.msra.mxu0 0
      %431 = vmatprep.subr.bf16.mxu0 0
      %432 = vmatpush1.bf16.msra.mxu0 0
      %433 = vmatprep.subr.bf16.mxu0 0
      %434 = vmatpush1.bf16.msra.mxu0 0
      %435 = vmatprep.subr.bf16.mxu0 0
      %436 = vmatpush1.bf16.msra.mxu0 0
      %437 = vmatprep.subr.bf16.mxu0 0
      %438 = vmatpush1.bf16.msra.mxu0 0
      %439 = vmatprep.subr.bf16.mxu0 0
      %440 = vmatpush1.bf16.msra.mxu0 0
      %441 = vmatprep.subr.bf16.mxu0 0
      %442 = vmatpush1.bf16.msra.mxu0 0
      %443 = vmatprep.subr.bf16.mxu0 0
      %444 = vmatpush1.bf16.msra.mxu0 0
      %445 = vmatprep.subr.bf16.mxu0 0
      %446 = vmatpush1.bf16.msra.mxu0 0
      %447 = vmatprep.subr.bf16.mxu0 0
      %448 = vmatpush1.bf16.msra.mxu0 0
      %449 = vmatprep.subr.bf16.mxu0 0
      %450 = vmatpush1.bf16.msra.mxu0 0
      %451 = vmatprep.subr.bf16.mxu0 0
      %452 = vmatpush1.bf16.msra.mxu0 0
      %453 = vmatprep.mubr.bf16.mxu0 0
      %454 = vmatmul.mubr.bf16.gmra.mrb[0].mxu0 %v419
      %v455 = vpop.f32.mrb[0].mxu0
      %v456 = vadd.f32 0.0, %v455
      %v457 = vpop.f32.mrb[0].mxu0
      %v458 = vpop.f32.mrb[0].mxu0
      %v459 = vadd.f32 0.0, %v458
      %v460 = vpop.f32.mrb[0].mxu0
      %461 = vdwg.mxu0
      %v462 = vpack.c.bf16 %v459, %v456
      %v463 = vld [vmem:[%s358] sm:$0xf]
      %v465 = vsel %vm417, %v463, 0
      %467 = vmatprep.subr.bf16.mxu0 0
      %468 = vmatpush1.bf16.msra.mxu0 %v413
      %469 = vmatprep.subr.bf16.mxu0 0
      %470 = vmatpush1.bf16.msra.mxu0 %v414
      %471 = vmatprep.subr.bf16.mxu0 0
      %472 = vmatpush1.bf16.msra.mxu0 0
      %473 = vmatprep.subr.bf16.mxu0 0
      %474 = vmatpush1.bf16.msra.mxu0 0
      %475 = vmatprep.subr.bf16.mxu0 0
      %476 = vmatpush1.bf16.msra.mxu0 0
      %477 = vmatprep.subr.bf16.mxu0 0
      %478 = vmatpush1.bf16.msra.mxu0 0
      %479 = vmatprep.subr.bf16.mxu0 0
      %480 = vmatpush1.bf16.msra.mxu0 0
      %481 = vmatprep.subr.bf16.mxu0 0
      %482 = vmatpush1.bf16.msra.mxu0 0
      %483 = vmatprep.subr.bf16.mxu0 0
      %484 = vmatpush1.bf16.msra.mxu0 0
      %485 = vmatprep.subr.bf16.mxu0 0
      %486 = vmatpush1.bf16.msra.mxu0 0
      %487 = vmatprep.subr.bf16.mxu0 0
      %488 = vmatpush1.bf16.msra.mxu0 0
      %489 = vmatprep.subr.bf16.mxu0 0
      %490 = vmatpush1.bf16.msra.mxu0 0
      %491 = vmatprep.subr.bf16.mxu0 0
      %492 = vmatpush1.bf16.msra.mxu0 0
      %493 = vmatprep.subr.bf16.mxu0 0
      %494 = vmatpush1.bf16.msra.mxu0 0
      %495 = vmatprep.subr.bf16.mxu0 0
      %496 = vmatpush1.bf16.msra.mxu0 0
      %497 = vmatprep.subr.bf16.mxu0 0
      %498 = vmatpush1.bf16.msra.mxu0 0
      %499 = vmatprep.mubr.bf16.mxu0 0
      %500 = vmatmul.mubr.bf16.gmra.mrb[0].mxu0 %v465
      %v501 = vpop.f32.mrb[0].mxu0
      %v502 = vadd.f32 0.0, %v501
      %v503 = vpop.f32.mrb[0].mxu0
      %v504 = vpop.f32.mrb[0].mxu0
      %v505 = vpop.f32.mrb[0].mxu0
      %506 = vdwg.mxu0
      %v507 = vpack.c.bf16 %v502, %v502
      %v508 = vld [vmem:[%s368] sm:$0xf]
      %v509 = vld [vmem:[%s368 + $0x4] sm:$0xf]
      %v512 = vunpack.c.l.b16 %v508
      %v513 = vunpack.c.l.b16 %v509
      %v514 = vpack.c.b16 %v513, %v512
      %516 = vmatprep.subr.bf16.mxu0 0
      %517 = vmatpush1.bf16.xpose.msra.mxu0 %v462
      %518 = vmatprep.subr.bf16.mxu0 0
      %519 = vmatpush1.bf16.xpose.msra.mxu0 0
      %520 = vmatprep.subr.bf16.mxu0 0
      %521 = vmatpush1.bf16.xpose.msra.mxu0 0
      %522 = vmatprep.subr.bf16.mxu0 0
      %523 = vmatpush1.bf16.xpose.msra.mxu0 0
      %524 = vmatprep.subr.bf16.mxu0 0
      %525 = vmatpush1.bf16.xpose.msra.mxu0 0
      %526 = vmatprep.subr.bf16.mxu0 0
      %527 = vmatpush1.bf16.xpose.msra.mxu0 0
      %528 = vmatprep.subr.bf16.mxu0 0
      %529 = vmatpush1.bf16.xpose.msra.mxu0 0
      %530 = vmatprep.subr.bf16.mxu0 0
      %531 = vmatpush1.bf16.xpose.msra.mxu0 0
      %532 = vmatprep.subr.bf16.mxu0 0
      %533 = vmatpush1.bf16.xpose.msra.mxu0 0
      %534 = vmatprep.subr.bf16.mxu0 0
      %535 = vmatpush1.bf16.xpose.msra.mxu0 0
      %536 = vmatprep.subr.bf16.mxu0 0
      %537 = vmatpush1.bf16.xpose.msra.mxu0 0
      %538 = vmatprep.subr.bf16.mxu0 0
      %539 = vmatpush1.bf16.xpose.msra.mxu0 0
      %540 = vmatprep.subr.bf16.mxu0 0
      %541 = vmatpush1.bf16.xpose.msra.mxu0 0
      %542 = vmatprep.subr.bf16.mxu0 0
      %543 = vmatpush1.bf16.xpose.msra.mxu0 0
      %544 = vmatprep.subr.bf16.mxu0 0
      %545 = vmatpush1.bf16.xpose.msra.mxu0 0
      %546 = vmatprep.subr.bf16.mxu0 0
      %547 = vmatpush1.bf16.xpose.msra.mxu0 0
      %548 = vmatprep.mubr.bf16.mxu0 0
      %549 = vmatmul.mubr.bf16.gmra.mrb[0].mxu0 %v514
      %v550 = vpop.f32.mrb[0].mxu0
      %v551 = vadd.f32 0.0, %v550
      %v552 = vpop.f32.mrb[0].mxu0
      %v553 = vpop.f32.mrb[0].mxu0
      %v554 = vadd.f32 0.0, %v553
      %v555 = vpop.f32.mrb[0].mxu0
      %556 = vdwg.mxu0
      %v557 = vld [vmem:[%s373] sm:$0xf]
      %v558 = vld [vmem:[%s373 + $0x4] sm:$0xf]
      %v561 = vunpack.c.l.b16 %v557
      %v562 = vunpack.c.l.b16 %v558
      %v563 = vpack.c.b16 %v562, %v561
      %565 = vmatprep.subr.bf16.mxu0 0
      %566 = vmatpush1.bf16.xpose.msra.mxu0 %v507
      %567 = vmatprep.subr.bf16.mxu0 0
      %568 = vmatpush1.bf16.xpose.msra.mxu0 0
      %569 = vmatprep.subr.bf16.mxu0 0
      %570 = vmatpush1.bf16.xpose.msra.mxu0 0
      %571 = vmatprep.subr.bf16.mxu0 0
      %572 = vmatpush1.bf16.xpose.msra.mxu0 0
      %573 = vmatprep.subr.bf16.mxu0 0
      %574 = vmatpush1.bf16.xpose.msra.mxu0 0
      %575 = vmatprep.subr.bf16.mxu0 0
      %576 = vmatpush1.bf16.xpose.msra.mxu0 0
      %577 = vmatprep.subr.bf16.mxu0 0
      %578 = vmatpush1.bf16.xpose.msra.mxu0 0
      %579 = vmatprep.subr.bf16.mxu0 0
      %580 = vmatpush1.bf16.xpose.msra.mxu0 0
      %581 = vmatprep.subr.bf16.mxu0 0
      %582 = vmatpush1.bf16.xpose.msra.mxu0 0
      %583 = vmatprep.subr.bf16.mxu0 0
      %584 = vmatpush1.bf16.xpose.msra.mxu0 0
      %585 = vmatprep.subr.bf16.mxu0 0
      %586 = vmatpush1.bf16.xpose.msra.mxu0 0
      %587 = vmatprep.subr.bf16.mxu0 0
      %588 = vmatpush1.bf16.xpose.msra.mxu0 0
      %589 = vmatprep.subr.bf16.mxu0 0
      %590 = vmatpush1.bf16.xpose.msra.mxu0 0
      %591 = vmatprep.subr.bf16.mxu0 0
      %592 = vmatpush1.bf16.xpose.msra.mxu0 0
      %593 = vmatprep.subr.bf16.mxu0 0
      %594 = vmatpush1.bf16.xpose.msra.mxu0 0
      %595 = vmatprep.subr.bf16.mxu0 0
      %596 = vmatpush1.bf16.xpose.msra.mxu0 0
      %597 = vmatprep.mubr.bf16.mxu0 0
      %598 = vmatmul.mubr.bf16.gmra.mrb[0].mxu0 %v563
      %v599 = vpop.f32.mrb[0].mxu0
      %v600 = vadd.f32 0.0, %v599
      %v601 = vpop.f32.mrb[0].mxu0
      %v602 = vpop.f32.mrb[0].mxu0
      %v603 = vadd.f32 0.0, %v602
      %v604 = vpop.f32.mrb[0].mxu0
      %605 = vdwg.mxu0
      %v606 = vld [vmem:[%s380] sm:$0xff]
      %v609 = vcombine.high %v551, %v551
      %v611 = vunpack.c.l.s4 1966171168
      %v612 = vunpack.c.0.s8 %v611
      %v613 = vlaneseq
      %v614 = vshrl.u32 %v613, 7
      %v615 = vsub.s32 %v612, %v614
      %v616 = vrot.slane %v551, %v615
      %v618 = vunpack.c.l.s4 1966171168
      %v619 = vunpack.c.0.s8 %v618
      %v620 = vlaneseq
      %v621 = vshrl.u32 %v620, 7
      %v622 = vsub.s32 %v619, %v621
      %v623 = vrot.slane %v609, %v622
      %v624 = vcombine.high %v616, %v616
      %v625 = vcombine.high %v623, %v623
      %v627 = vunpack.c.l.s4 1966171168
      %v628 = vunpack.c.0.s8 %v627
      %v629 = vlaneseq
      %v630 = vshrl.u32 %v629, 7
      %v631 = vsub.s32 %v628, %v630
      %v632 = vrot.slane %v616, %v631
      %v634 = vunpack.c.l.s4 1966171168
      %v635 = vunpack.c.0.s8 %v634
      %v636 = vlaneseq
      %v637 = vshrl.u32 %v636, 7
      %v638 = vsub.s32 %v635, %v637
      %v639 = vrot.slane %v623, %v638
      %v641 = vunpack.c.l.s4 1966171168
      %v642 = vunpack.c.0.s8 %v641
      %v643 = vlaneseq
      %v644 = vshrl.u32 %v643, 7
      %v645 = vsub.s32 %v642, %v644
      %v646 = vrot.slane %v624, %v645
      %v648 = vunpack.c.l.s4 1966171168
      %v649 = vunpack.c.0.s8 %v648
      %v650 = vlaneseq
      %v651 = vshrl.u32 %v650, 7
      %v652 = vsub.s32 %v649, %v651
      %v653 = vrot.slane %v625, %v652
      %v654 = vcombine.high %v632, %v632
      %v655 = vcombine.high %v639, %v639
      %v656 = vcombine.high %v646, %v646
      %v657 = vcombine.high %v653, %v653
      %v658 = vcombine.high %v554, %v554
      %v660 = vunpack.c.l.s4 1966171168
      %v661 = vunpack.c.0.s8 %v660
      %v662 = vlaneseq
      %v663 = vshrl.u32 %v662, 7
      %v664 = vsub.s32 %v661, %v663
      %v665 = vrot.slane %v554, %v664
      %v667 = vunpack.c.l.s4 1966171168
      %v668 = vunpack.c.0.s8 %v667
      %v669 = vlaneseq
      %v670 = vshrl.u32 %v669, 7
      %v671 = vsub.s32 %v668, %v670
      %v672 = vrot.slane %v658, %v671
      %v673 = vcombine.high %v665, %v665
      %v674 = vcombine.high %v672, %v672
      %v676 = vunpack.c.l.s4 1966171168
      %v677 = vunpack.c.0.s8 %v676
      %v678 = vlaneseq
      %v679 = vshrl.u32 %v678, 7
      %v680 = vsub.s32 %v677, %v679
      %v681 = vrot.slane %v665, %v680
      %v683 = vunpack.c.l.s4 1966171168
      %v684 = vunpack.c.0.s8 %v683
      %v685 = vlaneseq
      %v686 = vshrl.u32 %v685, 7
      %v687 = vsub.s32 %v684, %v686
      %v688 = vrot.slane %v672, %v687
      %v690 = vunpack.c.l.s4 1966171168
      %v691 = vunpack.c.0.s8 %v690
      %v692 = vlaneseq
      %v693 = vshrl.u32 %v692, 7
      %v694 = vsub.s32 %v691, %v693
      %v695 = vrot.slane %v673, %v694
      %v697 = vunpack.c.l.s4 1966171168
      %v698 = vunpack.c.0.s8 %v697
      %v699 = vlaneseq
      %v700 = vshrl.u32 %v699, 7
      %v701 = vsub.s32 %v698, %v700
      %v702 = vrot.slane %v674, %v701
      %v703 = vcombine.high %v681, %v681
      %v704 = vcombine.high %v688, %v688
      %v705 = vcombine.high %v695, %v695
      %v706 = vcombine.high %v702, %v702
      %v707 = vlaneseq
      %v708 = vshrl.u32 %v707, 7
      %v709 = vsub.s32 0, %v708
      %v710 = vrot.slane %v600, %v709
      %712 = vbcast.lane.b32.xlu0 %v710, 256
      %v713 = vpop.permute.xlu0 %712
      %v714 = vlaneseq
      %v715 = vshrl.u32 %v714, 7
      %v716 = vsub.s32 1, %v715
      %v717 = vrot.slane %v600, %v716
      %719 = vbcast.lane.b32.xlu0 %v717, 256
      %v720 = vpop.permute.xlu0 %719
      %v721 = vlaneseq
      %v722 = vshrl.u32 %v721, 7
      %v723 = vsub.s32 2, %v722
      %v724 = vrot.slane %v600, %v723
      %726 = vbcast.lane.b32.xlu0 %v724, 256
      %v727 = vpop.permute.xlu0 %726
      %v728 = vlaneseq
      %v729 = vshrl.u32 %v728, 7
      %v730 = vsub.s32 3, %v729
      %v731 = vrot.slane %v600, %v730
      %733 = vbcast.lane.b32.xlu0 %v731, 256
      %v734 = vpop.permute.xlu0 %733
      %v735 = vlaneseq
      %v736 = vshrl.u32 %v735, 7
      %v737 = vsub.s32 4, %v736
      %v738 = vrot.slane %v600, %v737
      %740 = vbcast.lane.b32.xlu0 %v738, 256
      %v741 = vpop.permute.xlu0 %740
      %v742 = vlaneseq
      %v743 = vshrl.u32 %v742, 7
      %v744 = vsub.s32 5, %v743
      %v745 = vrot.slane %v600, %v744
      %747 = vbcast.lane.b32.xlu0 %v745, 256
      %v748 = vpop.permute.xlu0 %747
      %v749 = vlaneseq
      %v750 = vshrl.u32 %v749, 7
      %v751 = vsub.s32 6, %v750
      %v752 = vrot.slane %v600, %v751
      %754 = vbcast.lane.b32.xlu0 %v752, 256
      %v755 = vpop.permute.xlu0 %754
      %v756 = vlaneseq
      %v757 = vshrl.u32 %v756, 7
      %v758 = vsub.s32 7, %v757
      %v759 = vrot.slane %v600, %v758
      %761 = vbcast.lane.b32.xlu0 %v759, 256
      %v762 = vpop.permute.xlu0 %761
      %v763 = vlaneseq
      %v764 = vshrl.u32 %v763, 7
      %v765 = vsub.s32 0, %v764
      %v766 = vrot.slane %v603, %v765
      %768 = vbcast.lane.b32.xlu0 %v766, 256
      %v769 = vpop.permute.xlu0 %768
      %v770 = vlaneseq
      %v771 = vshrl.u32 %v770, 7
      %v772 = vsub.s32 1, %v771
      %v773 = vrot.slane %v603, %v772
      %775 = vbcast.lane.b32.xlu0 %v773, 256
      %v776 = vpop.permute.xlu0 %775
      %v777 = vlaneseq
      %v778 = vshrl.u32 %v777, 7
      %v779 = vsub.s32 2, %v778
      %v780 = vrot.slane %v603, %v779
      %782 = vbcast.lane.b32.xlu0 %v780, 256
      %v783 = vpop.permute.xlu0 %782
      %v784 = vlaneseq
      %v785 = vshrl.u32 %v784, 7
      %v786 = vsub.s32 3, %v785
      %v787 = vrot.slane %v603, %v786
      %789 = vbcast.lane.b32.xlu0 %v787, 256
      %v790 = vpop.permute.xlu0 %789
      %v791 = vlaneseq
      %v792 = vshrl.u32 %v791, 7
      %v793 = vsub.s32 4, %v792
      %v794 = vrot.slane %v603, %v793
      %796 = vbcast.lane.b32.xlu0 %v794, 256
      %v797 = vpop.permute.xlu0 %796
      %v798 = vlaneseq
      %v799 = vshrl.u32 %v798, 7
      %v800 = vsub.s32 5, %v799
      %v801 = vrot.slane %v603, %v800
      %803 = vbcast.lane.b32.xlu0 %v801, 256
      %v804 = vpop.permute.xlu0 %803
      %v805 = vlaneseq
      %v806 = vshrl.u32 %v805, 7
      %v807 = vsub.s32 6, %v806
      %v808 = vrot.slane %v603, %v807
      %810 = vbcast.lane.b32.xlu0 %v808, 256
      %v811 = vpop.permute.xlu0 %810
      %v812 = vlaneseq
      %v813 = vshrl.u32 %v812, 7
      %v814 = vsub.s32 7, %v813
      %v815 = vrot.slane %v603, %v814
      %817 = vbcast.lane.b32.xlu0 %v815, 256
      %v818 = vpop.permute.xlu0 %817
      %v819 = vlaneseq
      %v820 = vshrl.u32 %v819, 7
      %v821 = vsub.s32 0, %v820
      %v822 = vrot.slane %v632, %v821
      %v823 = vlaneseq
      %v824 = vshrl.u32 %v823, 7
      %v825 = vsub.s32 0, %v824
      %v826 = vrot.slane %v646, %v825
      %v827 = vlaneseq
      %v828 = vshrl.u32 %v827, 7
      %v829 = vsub.s32 0, %v828
      %v830 = vrot.slane %v654, %v829
      %v831 = vlaneseq
      %v832 = vshrl.u32 %v831, 7
      %v833 = vsub.s32 0, %v832
      %v834 = vrot.slane %v656, %v833
      %v835 = vlaneseq
      %v836 = vshrl.u32 %v835, 7
      %v837 = vsub.s32 0, %v836
      %v838 = vrot.slane %v639, %v837
      %v839 = vlaneseq
      %v840 = vshrl.u32 %v839, 7
      %v841 = vsub.s32 0, %v840
      %v842 = vrot.slane %v653, %v841
      %v843 = vlaneseq
      %v844 = vshrl.u32 %v843, 7
      %v845 = vsub.s32 0, %v844
      %v846 = vrot.slane %v655, %v845
      %v847 = vlaneseq
      %v848 = vshrl.u32 %v847, 7
      %v849 = vsub.s32 0, %v848
      %v850 = vrot.slane %v657, %v849
      %v851 = vlaneseq
      %v852 = vshrl.u32 %v851, 7
      %v853 = vsub.s32 0, %v852
      %v854 = vrot.slane %v681, %v853
      %v855 = vlaneseq
      %v856 = vshrl.u32 %v855, 7
      %v857 = vsub.s32 0, %v856
      %v858 = vrot.slane %v695, %v857
      %v859 = vlaneseq
      %v860 = vshrl.u32 %v859, 7
      %v861 = vsub.s32 0, %v860
      %v862 = vrot.slane %v703, %v861
      %v863 = vlaneseq
      %v864 = vshrl.u32 %v863, 7
      %v865 = vsub.s32 0, %v864
      %v866 = vrot.slane %v705, %v865
      %v867 = vlaneseq
      %v868 = vshrl.u32 %v867, 7
      %v869 = vsub.s32 0, %v868
      %v870 = vrot.slane %v688, %v869
      %v871 = vlaneseq
      %v872 = vshrl.u32 %v871, 7
      %v873 = vsub.s32 0, %v872
      %v874 = vrot.slane %v702, %v873
      %v875 = vlaneseq
      %v876 = vshrl.u32 %v875, 7
      %v877 = vsub.s32 0, %v876
      %v878 = vrot.slane %v704, %v877
      %v879 = vlaneseq
      %v880 = vshrl.u32 %v879, 7
      %v881 = vsub.s32 0, %v880
      %v882 = vrot.slane %v706, %v881
      %v899 = vadd.f32 %v822, %v713
      %v900 = vadd.f32 %v826, %v720
      %v901 = vadd.f32 %v830, %v727
      %v902 = vadd.f32 %v834, %v734
      %v903 = vadd.f32 %v838, %v741
      %v904 = vadd.f32 %v842, %v748
      %v905 = vadd.f32 %v846, %v755
      %v906 = vadd.f32 %v850, %v762
      %v907 = vadd.f32 %v854, %v769
      %v908 = vadd.f32 %v858, %v776
      %v909 = vadd.f32 %v862, %v783
      %v910 = vadd.f32 %v866, %v790
      %v911 = vadd.f32 %v870, %v797
      %v912 = vadd.f32 %v874, %v804
      %v913 = vadd.f32 %v878, %v811
      %v914 = vadd.f32 %v882, %v818
      %vm915 = vcmp.gt.f32.partialorder %v899, 0.0
      %vm916 = vcmp.gt.f32.partialorder %v900, 0.0
      %vm917 = vcmp.gt.f32.partialorder %v901, 0.0
      %vm918 = vcmp.gt.f32.partialorder %v902, 0.0
      %vm919 = vcmp.gt.f32.partialorder %v903, 0.0
      %vm920 = vcmp.gt.f32.partialorder %v904, 0.0
      %vm921 = vcmp.gt.f32.partialorder %v905, 0.0
      %vm922 = vcmp.gt.f32.partialorder %v906, 0.0
      %vm923 = vcmp.gt.f32.partialorder %v907, 0.0
      %vm924 = vcmp.gt.f32.partialorder %v908, 0.0
      %vm925 = vcmp.gt.f32.partialorder %v909, 0.0
      %vm926 = vcmp.gt.f32.partialorder %v910, 0.0
      %vm927 = vcmp.gt.f32.partialorder %v911, 0.0
      %vm928 = vcmp.gt.f32.partialorder %v912, 0.0
      %vm929 = vcmp.gt.f32.partialorder %v913, 0.0
      %vm930 = vcmp.gt.f32.partialorder %v914, 0.0
      %v931 = vmul.f32 %v899, 0.2
      %v932 = vmul.f32 %v900, 0.2
      %v933 = vmul.f32 %v901, 0.2
      %v934 = vmul.f32 %v902, 0.2
      %v935 = vmul.f32 %v903, 0.2
      %v936 = vmul.f32 %v904, 0.2
      %v937 = vmul.f32 %v905, 0.2
      %v938 = vmul.f32 %v906, 0.2
      %v939 = vmul.f32 %v907, 0.2
      %v940 = vmul.f32 %v908, 0.2
      %v941 = vmul.f32 %v909, 0.2
      %v942 = vmul.f32 %v910, 0.2
      %v943 = vmul.f32 %v911, 0.2
      %v944 = vmul.f32 %v912, 0.2
      %v945 = vmul.f32 %v913, 0.2
      %v946 = vmul.f32 %v914, 0.2
      %v947 = vsel %vm915, %v899, %v931
      %v948 = vsel %vm916, %v900, %v932
      %v949 = vsel %vm917, %v901, %v933
      %v950 = vsel %vm918, %v902, %v934
      %v951 = vsel %vm919, %v903, %v935
      %v952 = vsel %vm920, %v904, %v936
      %v953 = vsel %vm921, %v905, %v937
      %v954 = vsel %vm922, %v906, %v938
      %v955 = vsel %vm923, %v907, %v939
      %v956 = vsel %vm924, %v908, %v940
      %v957 = vsel %vm925, %v909, %v941
      %v958 = vsel %vm926, %v910, %v942
      %v959 = vsel %vm927, %v911, %v943
      %v960 = vsel %vm928, %v912, %v944
      %v961 = vsel %vm929, %v913, %v945
      %v962 = vsel %vm930, %v914, %v946
      %v963 = vsub.f32 %v606, 1.0
      %v964 = vmul.f32 %v963, 1e+09
      %v965 = vadd.f32 %v947, %v964
      %v966 = vadd.f32 %v948, %v964
      %v967 = vadd.f32 %v949, %v964
      %v968 = vadd.f32 %v950, %v964
      %v969 = vadd.f32 %v951, %v964
      %v970 = vadd.f32 %v952, %v964
      %v971 = vadd.f32 %v953, %v964
      %v972 = vadd.f32 %v954, %v964
      %v973 = vadd.f32 %v955, %v964
      %v974 = vadd.f32 %v956, %v964
      %v975 = vadd.f32 %v957, %v964
      %v976 = vadd.f32 %v958, %v964
      %v977 = vadd.f32 %v959, %v964
      %v978 = vadd.f32 %v960, %v964
      %v979 = vadd.f32 %v961, %v964
      %v980 = vadd.f32 %v962, %v964
      %vm981 = vcmask 130048
      %v982 = vsel %vm981, %v965, -inf
      %983 = vmax.xlane.f32.xlu0 %v982
      %v984 = vpop.xlane.xlu0 %983
      %v985 = vsel %vm981, %v966, -inf
      %986 = vmax.xlane.f32.xlu0 %v985
      %v987 = vpop.xlane.xlu0 %986
      %v988 = vsel %vm981, %v967, -inf
      %989 = vmax.xlane.f32.xlu0 %v988
      %v990 = vpop.xlane.xlu0 %989
      %v991 = vsel %vm981, %v968, -inf
      %992 = vmax.xlane.f32.xlu0 %v991
      %v993 = vpop.xlane.xlu0 %992
      %v994 = vsel %vm981, %v969, -inf
      %995 = vmax.xlane.f32.xlu0 %v994
      %v996 = vpop.xlane.xlu0 %995
      %v997 = vsel %vm981, %v970, -inf
      %998 = vmax.xlane.f32.xlu0 %v997
      %v999 = vpop.xlane.xlu0 %998
      %v1000 = vsel %vm981, %v971, -inf
      %1001 = vmax.xlane.f32.xlu0 %v1000
      %v1002 = vpop.xlane.xlu0 %1001
      %v1003 = vsel %vm981, %v972, -inf
      %1004 = vmax.xlane.f32.xlu0 %v1003
      %v1005 = vpop.xlane.xlu0 %1004
      %v1006 = vsel %vm981, %v973, -inf
      %1007 = vmax.xlane.f32.xlu0 %v1006
      %v1008 = vpop.xlane.xlu0 %1007
      %v1009 = vsel %vm981, %v974, -inf
      %1010 = vmax.xlane.f32.xlu0 %v1009
      %v1011 = vpop.xlane.xlu0 %1010
      %v1012 = vsel %vm981, %v975, -inf
      %1013 = vmax.xlane.f32.xlu0 %v1012
      %v1014 = vpop.xlane.xlu0 %1013
      %v1015 = vsel %vm981, %v976, -inf
      %1016 = vmax.xlane.f32.xlu0 %v1015
      %v1017 = vpop.xlane.xlu0 %1016
      %v1018 = vsel %vm981, %v977, -inf
      %1019 = vmax.xlane.f32.xlu0 %v1018
      %v1020 = vpop.xlane.xlu0 %1019
      %v1021 = vsel %vm981, %v978, -inf
      %1022 = vmax.xlane.f32.xlu0 %v1021
      %v1023 = vpop.xlane.xlu0 %1022
      %v1024 = vsel %vm981, %v979, -inf
      %1025 = vmax.xlane.f32.xlu0 %v1024
      %v1026 = vpop.xlane.xlu0 %1025
      %v1027 = vsel %vm981, %v980, -inf
      %1028 = vmax.xlane.f32.xlu0 %v1027
      %v1029 = vpop.xlane.xlu0 %1028
      %v1030 = vsub.f32 %v965, %v984
      %v1031 = vsub.f32 %v966, %v987
      %v1032 = vsub.f32 %v967, %v990
      %v1033 = vsub.f32 %v968, %v993
      %v1034 = vsub.f32 %v969, %v996
      %v1035 = vsub.f32 %v970, %v999
      %v1036 = vsub.f32 %v971, %v1002
      %v1037 = vsub.f32 %v972, %v1005
      %v1038 = vsub.f32 %v973, %v1008
      %v1039 = vsub.f32 %v974, %v1011
      %v1040 = vsub.f32 %v975, %v1014
      %v1041 = vsub.f32 %v976, %v1017
      %v1042 = vsub.f32 %v977, %v1020
      %v1043 = vsub.f32 %v978, %v1023
      %v1044 = vsub.f32 %v979, %v1026
      %v1045 = vsub.f32 %v980, %v1029
      %v1046 = vmul.f32 %v1030, 1.442695
      %v1047 = vpow.pop %v1046
      %v1048 = vmul.f32 %v1031, 1.442695
      %v1049 = vpow.pop %v1048
      %v1050 = vmul.f32 %v1032, 1.442695
      %v1051 = vpow.pop %v1050
      %v1052 = vmul.f32 %v1033, 1.442695
      %v1053 = vpow.pop %v1052
      %v1054 = vmul.f32 %v1034, 1.442695
      %v1055 = vpow.pop %v1054
      %v1056 = vmul.f32 %v1035, 1.442695
      %v1057 = vpow.pop %v1056
      %v1058 = vmul.f32 %v1036, 1.442695
      %v1059 = vpow.pop %v1058
      %v1060 = vmul.f32 %v1037, 1.442695
      %v1061 = vpow.pop %v1060
      %v1062 = vmul.f32 %v1038, 1.442695
      %v1063 = vpow.pop %v1062
      %v1064 = vmul.f32 %v1039, 1.442695
      %v1065 = vpow.pop %v1064
      %v1066 = vmul.f32 %v1040, 1.442695
      %v1067 = vpow.pop %v1066
      %v1068 = vmul.f32 %v1041, 1.442695
      %v1069 = vpow.pop %v1068
      %v1070 = vmul.f32 %v1042, 1.442695
      %v1071 = vpow.pop %v1070
      %v1072 = vmul.f32 %v1043, 1.442695
      %v1073 = vpow.pop %v1072
      %v1074 = vmul.f32 %v1044, 1.442695
      %v1075 = vpow.pop %v1074
      %v1076 = vmul.f32 %v1045, 1.442695
      %v1077 = vpow.pop %v1076
      %v1078 = vsel %vm981, %v1047, 0.0
      %1079 = vadd.xlane.f32.xlu0 %v1078
      %v1080 = vpop.xlane.xlu0 %1079
      %v1081 = vsel %vm981, %v1049, 0.0
      %1082 = vadd.xlane.f32.xlu0 %v1081
      %v1083 = vpop.xlane.xlu0 %1082
      %v1084 = vsel %vm981, %v1051, 0.0
      %1085 = vadd.xlane.f32.xlu0 %v1084
      %v1086 = vpop.xlane.xlu0 %1085
      %v1087 = vsel %vm981, %v1053, 0.0
      %1088 = vadd.xlane.f32.xlu0 %v1087
      %v1089 = vpop.xlane.xlu0 %1088
      %v1090 = vsel %vm981, %v1055, 0.0
      %1091 = vadd.xlane.f32.xlu0 %v1090
      %v1092 = vpop.xlane.xlu0 %1091
      %v1093 = vsel %vm981, %v1057, 0.0
      %1094 = vadd.xlane.f32.xlu0 %v1093
      %v1095 = vpop.xlane.xlu0 %1094
      %v1096 = vsel %vm981, %v1059, 0.0
      %1097 = vadd.xlane.f32.xlu0 %v1096
      %v1098 = vpop.xlane.xlu0 %1097
      %v1099 = vsel %vm981, %v1061, 0.0
      %1100 = vadd.xlane.f32.xlu0 %v1099
      %v1101 = vpop.xlane.xlu0 %1100
      %v1102 = vsel %vm981, %v1063, 0.0
      %1103 = vadd.xlane.f32.xlu0 %v1102
      %v1104 = vpop.xlane.xlu0 %1103
      %v1105 = vsel %vm981, %v1065, 0.0
      %1106 = vadd.xlane.f32.xlu0 %v1105
      %v1107 = vpop.xlane.xlu0 %1106
      %v1108 = vsel %vm981, %v1067, 0.0
      %1109 = vadd.xlane.f32.xlu0 %v1108
      %v1110 = vpop.xlane.xlu0 %1109
      %v1111 = vsel %vm981, %v1069, 0.0
      %1112 = vadd.xlane.f32.xlu0 %v1111
      %v1113 = vpop.xlane.xlu0 %1112
      %v1114 = vsel %vm981, %v1071, 0.0
      %1115 = vadd.xlane.f32.xlu0 %v1114
      %v1116 = vpop.xlane.xlu0 %1115
      %v1117 = vsel %vm981, %v1073, 0.0
      %1118 = vadd.xlane.f32.xlu0 %v1117
      %v1119 = vpop.xlane.xlu0 %1118
      %v1120 = vsel %vm981, %v1075, 0.0
      %1121 = vadd.xlane.f32.xlu0 %v1120
      %v1122 = vpop.xlane.xlu0 %1121
      %v1123 = vsel %vm981, %v1077, 0.0
      %1124 = vadd.xlane.f32.xlu0 %v1123
      %v1125 = vpop.xlane.xlu0 %1124
      %v1126 = vrcp.pop %v1080
      %v1127 = vrcp.pop %v1083
      %v1128 = vrcp.pop %v1086
      %v1129 = vrcp.pop %v1089
      %v1130 = vrcp.pop %v1092
      %v1131 = vrcp.pop %v1095
      %v1132 = vrcp.pop %v1098
      %v1133 = vrcp.pop %v1101
      %v1134 = vrcp.pop %v1104
      %v1135 = vrcp.pop %v1107
      %v1136 = vrcp.pop %v1110
      %v1137 = vrcp.pop %v1113
      %v1138 = vrcp.pop %v1116
      %v1139 = vrcp.pop %v1119
      %v1140 = vrcp.pop %v1122
      %v1141 = vrcp.pop %v1125
      %v1142 = vmul.f32 %v1047, %v1126
      %v1143 = vmul.f32 %v1049, %v1127
      %v1144 = vmul.f32 %v1051, %v1128
      %v1145 = vmul.f32 %v1053, %v1129
      %v1146 = vmul.f32 %v1055, %v1130
      %v1147 = vmul.f32 %v1057, %v1131
      %v1148 = vmul.f32 %v1059, %v1132
      %v1149 = vmul.f32 %v1061, %v1133
      %v1150 = vmul.f32 %v1063, %v1134
      %v1151 = vmul.f32 %v1065, %v1135
      %v1152 = vmul.f32 %v1067, %v1136
      %v1153 = vmul.f32 %v1069, %v1137
      %v1154 = vmul.f32 %v1071, %v1138
      %v1155 = vmul.f32 %v1073, %v1139
      %v1156 = vmul.f32 %v1075, %v1140
      %v1157 = vmul.f32 %v1077, %v1141
      %v1158 = vpack.c.bf16 %v1142, %v1142
      %v1159 = vpack.c.bf16 %v1143, %v1143
      %v1160 = vpack.c.bf16 %v1144, %v1144
      %v1161 = vpack.c.bf16 %v1145, %v1145
      %v1162 = vpack.c.bf16 %v1146, %v1146
      %v1163 = vpack.c.bf16 %v1147, %v1147
      %v1164 = vpack.c.bf16 %v1148, %v1148
      %v1165 = vpack.c.bf16 %v1149, %v1149
      %v1166 = vpack.c.bf16 %v1150, %v1150
      %v1167 = vpack.c.bf16 %v1151, %v1151
      %v1168 = vpack.c.bf16 %v1152, %v1152
      %v1169 = vpack.c.bf16 %v1153, %v1153
      %v1170 = vpack.c.bf16 %v1154, %v1154
      %v1171 = vpack.c.bf16 %v1155, %v1155
      %v1172 = vpack.c.bf16 %v1156, %v1156
      %v1173 = vpack.c.bf16 %v1157, %v1157
      %v1174 = vsel %vm981, %v606, 0.0
      %1175 = vadd.xlane.f32.xlu0 %v1174
      %v1176 = vpop.xlane.xlu0 %1175
      %vm1177 = vcmp.gt.f32.partialorder %v1176, 0.0
      %v1178 = vsel %vm1177, 1, 0
      %v1179 = vcvt.s32.f32 %v1178
      %v1181 = vsel %vm981, %v1158, 0
      %1183 = vmatprep.subr.bf16.mxu0 0
      %1184 = vmatpush1.bf16.msra.mxu0 %v462
      %1185 = vmatprep.subr.bf16.mxu0 0
      %1186 = vmatpush1.bf16.msra.mxu0 0
      %1187 = vmatprep.subr.bf16.mxu0 0
      %1188 = vmatpush1.bf16.msra.mxu0 0
      %1189 = vmatprep.subr.bf16.mxu0 0
      %1190 = vmatpush1.bf16.msra.mxu0 0
      %1191 = vmatprep.subr.bf16.mxu0 0
      %1192 = vmatpush1.bf16.msra.mxu0 0
      %1193 = vmatprep.subr.bf16.mxu0 0
      %1194 = vmatpush1.bf16.msra.mxu0 0
      %1195 = vmatprep.subr.bf16.mxu0 0
      %1196 = vmatpush1.bf16.msra.mxu0 0
      %1197 = vmatprep.subr.bf16.mxu0 0
      %1198 = vmatpush1.bf16.msra.mxu0 0
      %1199 = vmatprep.subr.bf16.mxu0 0
      %1200 = vmatpush1.bf16.msra.mxu0 0
      %1201 = vmatprep.subr.bf16.mxu0 0
      %1202 = vmatpush1.bf16.msra.mxu0 0
      %1203 = vmatprep.subr.bf16.mxu0 0
      %1204 = vmatpush1.bf16.msra.mxu0 0
      %1205 = vmatprep.subr.bf16.mxu0 0
      %1206 = vmatpush1.bf16.msra.mxu0 0
      %1207 = vmatprep.subr.bf16.mxu0 0
      %1208 = vmatpush1.bf16.msra.mxu0 0
      %1209 = vmatprep.subr.bf16.mxu0 0
      %1210 = vmatpush1.bf16.msra.mxu0 0
      %1211 = vmatprep.subr.bf16.mxu0 0
      %1212 = vmatpush1.bf16.msra.mxu0 0
      %1213 = vmatprep.subr.bf16.mxu0 0
      %1214 = vmatpush1.bf16.msra.mxu0 0
      %1215 = vmatprep.mubr.bf16.mxu0 0
      %1216 = vmatmul.mubr.bf16.gmra.mrb[0].mxu0 %v1181
      %v1217 = vpop.f32.mrb[0].mxu0
      %v1218 = vadd.f32 0.0, %v1217
      %v1219 = vpop.f32.mrb[0].mxu0
      %v1220 = vpop.f32.mrb[0].mxu0
      %v1221 = vpop.f32.mrb[0].mxu0
      %1222 = vdwg.mxu0
      %1224 = vrot.lane.b32.xlu0 %v462, 120
      %v1225 = vpop.permute.xlu0 %1224
      %v1228 = vsel %vm981, %v1159, 0
      %1230 = vmatprep.subr.bf16.mxu0 0
      %1231 = vmatpush1.bf16.msra.mxu0 %v1225
      %1232 = vmatprep.subr.bf16.mxu0 0
      %1233 = vmatpush1.bf16.msra.mxu0 0
      %1234 = vmatprep.subr.bf16.mxu0 0
      %1235 = vmatpush1.bf16.msra.mxu0 0
      %1236 = vmatprep.subr.bf16.mxu0 0
      %1237 = vmatpush1.bf16.msra.mxu0 0
      %1238 = vmatprep.subr.bf16.mxu0 0
      %1239 = vmatpush1.bf16.msra.mxu0 0
      %1240 = vmatprep.subr.bf16.mxu0 0
      %1241 = vmatpush1.bf16.msra.mxu0 0
      %1242 = vmatprep.subr.bf16.mxu0 0
      %1243 = vmatpush1.bf16.msra.mxu0 0
      %1244 = vmatprep.subr.bf16.mxu0 0
      %1245 = vmatpush1.bf16.msra.mxu0 0
      %1246 = vmatprep.subr.bf16.mxu0 0
      %1247 = vmatpush1.bf16.msra.mxu0 0
      %1248 = vmatprep.subr.bf16.mxu0 0
      %1249 = vmatpush1.bf16.msra.mxu0 0
      %1250 = vmatprep.subr.bf16.mxu0 0
      %1251 = vmatpush1.bf16.msra.mxu0 0
      %1252 = vmatprep.subr.bf16.mxu0 0
      %1253 = vmatpush1.bf16.msra.mxu0 0
      %1254 = vmatprep.subr.bf16.mxu0 0
      %1255 = vmatpush1.bf16.msra.mxu0 0
      %1256 = vmatprep.subr.bf16.mxu0 0
      %1257 = vmatpush1.bf16.msra.mxu0 0
      %1258 = vmatprep.subr.bf16.mxu0 0
      %1259 = vmatpush1.bf16.msra.mxu0 0
      %1260 = vmatprep.subr.bf16.mxu0 0
      %1261 = vmatpush1.bf16.msra.mxu0 0
      %1262 = vmatprep.mubr.bf16.mxu0 0
      %1263 = vmatmul.mubr.bf16.gmra.mrb[0].mxu0 %v1228
      %v1264 = vpop.f32.mrb[0].mxu0
      %v1265 = vadd.f32 0.0, %v1264
      %v1266 = vpop.f32.mrb[0].mxu0
      %v1267 = vpop.f32.mrb[0].mxu0
      %v1268 = vpop.f32.mrb[0].mxu0
      %1269 = vdwg.mxu0
      %1270 = vrot.lane.b32.xlu0 %v462, 112
      %v1271 = vpop.permute.xlu0 %1270
      %v1274 = vsel %vm981, %v1160, 0
      %1276 = vmatprep.subr.bf16.mxu0 0
      %1277 = vmatpush1.bf16.msra.mxu0 %v1271
      %1278 = vmatprep.subr.bf16.mxu0 0
      %1279 = vmatpush1.bf16.msra.mxu0 0
      %1280 = vmatprep.subr.bf16.mxu0 0
      %1281 = vmatpush1.bf16.msra.mxu0 0
      %1282 = vmatprep.subr.bf16.mxu0 0
      %1283 = vmatpush1.bf16.msra.mxu0 0
      %1284 = vmatprep.subr.bf16.mxu0 0
      %1285 = vmatpush1.bf16.msra.mxu0 0
      %1286 = vmatprep.subr.bf16.mxu0 0
      %1287 = vmatpush1.bf16.msra.mxu0 0
      %1288 = vmatprep.subr.bf16.mxu0 0
      %1289 = vmatpush1.bf16.msra.mxu0 0
      %1290 = vmatprep.subr.bf16.mxu0 0
      %1291 = vmatpush1.bf16.msra.mxu0 0
      %1292 = vmatprep.subr.bf16.mxu0 0
      %1293 = vmatpush1.bf16.msra.mxu0 0
      %1294 = vmatprep.subr.bf16.mxu0 0
      %1295 = vmatpush1.bf16.msra.mxu0 0
      %1296 = vmatprep.subr.bf16.mxu0 0
      %1297 = vmatpush1.bf16.msra.mxu0 0
      %1298 = vmatprep.subr.bf16.mxu0 0
      %1299 = vmatpush1.bf16.msra.mxu0 0
      %1300 = vmatprep.subr.bf16.mxu0 0
      %1301 = vmatpush1.bf16.msra.mxu0 0
      %1302 = vmatprep.subr.bf16.mxu0 0
      %1303 = vmatpush1.bf16.msra.mxu0 0
      %1304 = vmatprep.subr.bf16.mxu0 0
      %1305 = vmatpush1.bf16.msra.mxu0 0
      %1306 = vmatprep.subr.bf16.mxu0 0
      %1307 = vmatpush1.bf16.msra.mxu0 0
      %1308 = vmatprep.mubr.bf16.mxu0 0
      %1309 = vmatmul.mubr.bf16.gmra.mrb[0].mxu0 %v1274
      %v1310 = vpop.f32.mrb[0].mxu0
      %v1311 = vadd.f32 0.0, %v1310
      %v1312 = vpop.f32.mrb[0].mxu0
      %v1313 = vpop.f32.mrb[0].mxu0
      %v1314 = vpop.f32.mrb[0].mxu0
      %1315 = vdwg.mxu0
      %1316 = vrot.lane.b32.xlu0 %v462, 104
      %v1317 = vpop.permute.xlu0 %1316
      %v1320 = vsel %vm981, %v1161, 0
      %1322 = vmatprep.subr.bf16.mxu0 0
      %1323 = vmatpush1.bf16.msra.mxu0 %v1317
      %1324 = vmatprep.subr.bf16.mxu0 0
      %1325 = vmatpush1.bf16.msra.mxu0 0
      %1326 = vmatprep.subr.bf16.mxu0 0
      %1327 = vmatpush1.bf16.msra.mxu0 0
      %1328 = vmatprep.subr.bf16.mxu0 0
      %1329 = vmatpush1.bf16.msra.mxu0 0
      %1330 = vmatprep.subr.bf16.mxu0 0
      %1331 = vmatpush1.bf16.msra.mxu0 0
      %1332 = vmatprep.subr.bf16.mxu0 0
      %1333 = vmatpush1.bf16.msra.mxu0 0
      %1334 = vmatprep.subr.bf16.mxu0 0
      %1335 = vmatpush1.bf16.msra.mxu0 0
      %1336 = vmatprep.subr.bf16.mxu0 0
      %1337 = vmatpush1.bf16.msra.mxu0 0
      %1338 = vmatprep.subr.bf16.mxu0 0
      %1339 = vmatpush1.bf16.msra.mxu0 0
      %1340 = vmatprep.subr.bf16.mxu0 0
      %1341 = vmatpush1.bf16.msra.mxu0 0
      %1342 = vmatprep.subr.bf16.mxu0 0
      %1343 = vmatpush1.bf16.msra.mxu0 0
      %1344 = vmatprep.subr.bf16.mxu0 0
      %1345 = vmatpush1.bf16.msra.mxu0 0
      %1346 = vmatprep.subr.bf16.mxu0 0
      %1347 = vmatpush1.bf16.msra.mxu0 0
      %1348 = vmatprep.subr.bf16.mxu0 0
      %1349 = vmatpush1.bf16.msra.mxu0 0
      %1350 = vmatprep.subr.bf16.mxu0 0
      %1351 = vmatpush1.bf16.msra.mxu0 0
      %1352 = vmatprep.subr.bf16.mxu0 0
      %1353 = vmatpush1.bf16.msra.mxu0 0
      %1354 = vmatprep.mubr.bf16.mxu0 0
      %1355 = vmatmul.mubr.bf16.gmra.mrb[0].mxu0 %v1320
      %v1356 = vpop.f32.mrb[0].mxu0
      %v1357 = vadd.f32 0.0, %v1356
      %v1358 = vpop.f32.mrb[0].mxu0
      %v1359 = vpop.f32.mrb[0].mxu0
      %v1360 = vpop.f32.mrb[0].mxu0
      %1361 = vdwg.mxu0
      %1362 = vrot.lane.b32.xlu0 %v462, 96
      %v1363 = vpop.permute.xlu0 %1362
      %v1366 = vsel %vm981, %v1162, 0
      %1368 = vmatprep.subr.bf16.mxu0 0
      %1369 = vmatpush1.bf16.msra.mxu0 %v1363
      %1370 = vmatprep.subr.bf16.mxu0 0
      %1371 = vmatpush1.bf16.msra.mxu0 0
      %1372 = vmatprep.subr.bf16.mxu0 0
      %1373 = vmatpush1.bf16.msra.mxu0 0
      %1374 = vmatprep.subr.bf16.mxu0 0
      %1375 = vmatpush1.bf16.msra.mxu0 0
      %1376 = vmatprep.subr.bf16.mxu0 0
      %1377 = vmatpush1.bf16.msra.mxu0 0
      %1378 = vmatprep.subr.bf16.mxu0 0
      %1379 = vmatpush1.bf16.msra.mxu0 0
      %1380 = vmatprep.subr.bf16.mxu0 0
      %1381 = vmatpush1.bf16.msra.mxu0 0
      %1382 = vmatprep.subr.bf16.mxu0 0
      %1383 = vmatpush1.bf16.msra.mxu0 0
      %1384 = vmatprep.subr.bf16.mxu0 0
      %1385 = vmatpush1.bf16.msra.mxu0 0
      %1386 = vmatprep.subr.bf16.mxu0 0
      %1387 = vmatpush1.bf16.msra.mxu0 0
      %1388 = vmatprep.subr.bf16.mxu0 0
      %1389 = vmatpush1.bf16.msra.mxu0 0
      %1390 = vmatprep.subr.bf16.mxu0 0
      %1391 = vmatpush1.bf16.msra.mxu0 0
      %1392 = vmatprep.subr.bf16.mxu0 0
      %1393 = vmatpush1.bf16.msra.mxu0 0
      %1394 = vmatprep.subr.bf16.mxu0 0
      %1395 = vmatpush1.bf16.msra.mxu0 0
      %1396 = vmatprep.subr.bf16.mxu0 0
      %1397 = vmatpush1.bf16.msra.mxu0 0
      %1398 = vmatprep.subr.bf16.mxu0 0
      %1399 = vmatpush1.bf16.msra.mxu0 0
      %1400 = vmatprep.mubr.bf16.mxu0 0
      %1401 = vmatmul.mubr.bf16.gmra.mrb[0].mxu0 %v1366
      %v1402 = vpop.f32.mrb[0].mxu0
      %v1403 = vadd.f32 0.0, %v1402
      %v1404 = vpop.f32.mrb[0].mxu0
      %v1405 = vpop.f32.mrb[0].mxu0
      %v1406 = vpop.f32.mrb[0].mxu0
      %1407 = vdwg.mxu0
      %1408 = vrot.lane.b32.xlu0 %v462, 88
      %v1409 = vpop.permute.xlu0 %1408
      %v1412 = vsel %vm981, %v1163, 0
      %1414 = vmatprep.subr.bf16.mxu0 0
      %1415 = vmatpush1.bf16.msra.mxu0 %v1409
      %1416 = vmatprep.subr.bf16.mxu0 0
      %1417 = vmatpush1.bf16.msra.mxu0 0
      %1418 = vmatprep.subr.bf16.mxu0 0
      %1419 = vmatpush1.bf16.msra.mxu0 0
      %1420 = vmatprep.subr.bf16.mxu0 0
      %1421 = vmatpush1.bf16.msra.mxu0 0
      %1422 = vmatprep.subr.bf16.mxu0 0
      %1423 = vmatpush1.bf16.msra.mxu0 0
      %1424 = vmatprep.subr.bf16.mxu0 0
      %1425 = vmatpush1.bf16.msra.mxu0 0
      %1426 = vmatprep.subr.bf16.mxu0 0
      %1427 = vmatpush1.bf16.msra.mxu0 0
      %1428 = vmatprep.subr.bf16.mxu0 0
      %1429 = vmatpush1.bf16.msra.mxu0 0
      %1430 = vmatprep.subr.bf16.mxu0 0
      %1431 = vmatpush1.bf16.msra.mxu0 0
      %1432 = vmatprep.subr.bf16.mxu0 0
      %1433 = vmatpush1.bf16.msra.mxu0 0
      %1434 = vmatprep.subr.bf16.mxu0 0
      %1435 = vmatpush1.bf16.msra.mxu0 0
      %1436 = vmatprep.subr.bf16.mxu0 0
      %1437 = vmatpush1.bf16.msra.mxu0 0
      %1438 = vmatprep.subr.bf16.mxu0 0
      %1439 = vmatpush1.bf16.msra.mxu0 0
      %1440 = vmatprep.subr.bf16.mxu0 0
      %1441 = vmatpush1.bf16.msra.mxu0 0
      %1442 = vmatprep.subr.bf16.mxu0 0
      %1443 = vmatpush1.bf16.msra.mxu0 0
      %1444 = vmatprep.subr.bf16.mxu0 0
      %1445 = vmatpush1.bf16.msra.mxu0 0
      %1446 = vmatprep.mubr.bf16.mxu0 0
      %1447 = vmatmul.mubr.bf16.gmra.mrb[0].mxu0 %v1412
      %v1448 = vpop.f32.mrb[0].mxu0
      %v1449 = vadd.f32 0.0, %v1448
      %v1450 = vpop.f32.mrb[0].mxu0
      %v1451 = vpop.f32.mrb[0].mxu0
      %v1452 = vpop.f32.mrb[0].mxu0
      %1453 = vdwg.mxu0
      %1454 = vrot.lane.b32.xlu0 %v462, 80
      %v1455 = vpop.permute.xlu0 %1454
      %v1458 = vsel %vm981, %v1164, 0
      %1460 = vmatprep.subr.bf16.mxu0 0
      %1461 = vmatpush1.bf16.msra.mxu0 %v1455
      %1462 = vmatprep.subr.bf16.mxu0 0
      %1463 = vmatpush1.bf16.msra.mxu0 0
      %1464 = vmatprep.subr.bf16.mxu0 0
      %1465 = vmatpush1.bf16.msra.mxu0 0
      %1466 = vmatprep.subr.bf16.mxu0 0
      %1467 = vmatpush1.bf16.msra.mxu0 0
      %1468 = vmatprep.subr.bf16.mxu0 0
      %1469 = vmatpush1.bf16.msra.mxu0 0
      %1470 = vmatprep.subr.bf16.mxu0 0
      %1471 = vmatpush1.bf16.msra.mxu0 0
      %1472 = vmatprep.subr.bf16.mxu0 0
      %1473 = vmatpush1.bf16.msra.mxu0 0
      %1474 = vmatprep.subr.bf16.mxu0 0
      %1475 = vmatpush1.bf16.msra.mxu0 0
      %1476 = vmatprep.subr.bf16.mxu0 0
      %1477 = vmatpush1.bf16.msra.mxu0 0
      %1478 = vmatprep.subr.bf16.mxu0 0
      %1479 = vmatpush1.bf16.msra.mxu0 0
      %1480 = vmatprep.subr.bf16.mxu0 0
      %1481 = vmatpush1.bf16.msra.mxu0 0
      %1482 = vmatprep.subr.bf16.mxu0 0
      %1483 = vmatpush1.bf16.msra.mxu0 0
      %1484 = vmatprep.subr.bf16.mxu0 0
      %1485 = vmatpush1.bf16.msra.mxu0 0
      %1486 = vmatprep.subr.bf16.mxu0 0
      %1487 = vmatpush1.bf16.msra.mxu0 0
      %1488 = vmatprep.subr.bf16.mxu0 0
      %1489 = vmatpush1.bf16.msra.mxu0 0
      %1490 = vmatprep.subr.bf16.mxu0 0
      %1491 = vmatpush1.bf16.msra.mxu0 0
      %1492 = vmatprep.mubr.bf16.mxu0 0
      %1493 = vmatmul.mubr.bf16.gmra.mrb[0].mxu0 %v1458
      %v1494 = vpop.f32.mrb[0].mxu0
      %v1495 = vadd.f32 0.0, %v1494
      %v1496 = vpop.f32.mrb[0].mxu0
      %v1497 = vpop.f32.mrb[0].mxu0
      %v1498 = vpop.f32.mrb[0].mxu0
      %1499 = vdwg.mxu0
      %1500 = vrot.lane.b32.xlu0 %v462, 72
      %v1501 = vpop.permute.xlu0 %1500
      %v1504 = vsel %vm981, %v1165, 0
      %1506 = vmatprep.subr.bf16.mxu0 0
      %1507 = vmatpush1.bf16.msra.mxu0 %v1501
      %1508 = vmatprep.subr.bf16.mxu0 0
      %1509 = vmatpush1.bf16.msra.mxu0 0
      %1510 = vmatprep.subr.bf16.mxu0 0
      %1511 = vmatpush1.bf16.msra.mxu0 0
      %1512 = vmatprep.subr.bf16.mxu0 0
      %1513 = vmatpush1.bf16.msra.mxu0 0
      %1514 = vmatprep.subr.bf16.mxu0 0
      %1515 = vmatpush1.bf16.msra.mxu0 0
      %1516 = vmatprep.subr.bf16.mxu0 0
      %1517 = vmatpush1.bf16.msra.mxu0 0
      %1518 = vmatprep.subr.bf16.mxu0 0
      %1519 = vmatpush1.bf16.msra.mxu0 0
      %1520 = vmatprep.subr.bf16.mxu0 0
      %1521 = vmatpush1.bf16.msra.mxu0 0
      %1522 = vmatprep.subr.bf16.mxu0 0
      %1523 = vmatpush1.bf16.msra.mxu0 0
      %1524 = vmatprep.subr.bf16.mxu0 0
      %1525 = vmatpush1.bf16.msra.mxu0 0
      %1526 = vmatprep.subr.bf16.mxu0 0
      %1527 = vmatpush1.bf16.msra.mxu0 0
      %1528 = vmatprep.subr.bf16.mxu0 0
      %1529 = vmatpush1.bf16.msra.mxu0 0
      %1530 = vmatprep.subr.bf16.mxu0 0
      %1531 = vmatpush1.bf16.msra.mxu0 0
      %1532 = vmatprep.subr.bf16.mxu0 0
      %1533 = vmatpush1.bf16.msra.mxu0 0
      %1534 = vmatprep.subr.bf16.mxu0 0
      %1535 = vmatpush1.bf16.msra.mxu0 0
      %1536 = vmatprep.subr.bf16.mxu0 0
      %1537 = vmatpush1.bf16.msra.mxu0 0
      %1538 = vmatprep.mubr.bf16.mxu0 0
      %1539 = vmatmul.mubr.bf16.gmra.mrb[0].mxu0 %v1504
      %v1540 = vpop.f32.mrb[0].mxu0
      %v1541 = vadd.f32 0.0, %v1540
      %v1542 = vpop.f32.mrb[0].mxu0
      %v1543 = vpop.f32.mrb[0].mxu0
      %v1544 = vpop.f32.mrb[0].mxu0
      %1545 = vdwg.mxu0
      %1546 = vrot.lane.b32.xlu0 %v462, 64
      %v1547 = vpop.permute.xlu0 %1546
      %v1550 = vsel %vm981, %v1166, 0
      %1552 = vmatprep.subr.bf16.mxu0 0
      %1553 = vmatpush1.bf16.msra.mxu0 %v1547
      %1554 = vmatprep.subr.bf16.mxu0 0
      %1555 = vmatpush1.bf16.msra.mxu0 0
      %1556 = vmatprep.subr.bf16.mxu0 0
      %1557 = vmatpush1.bf16.msra.mxu0 0
      %1558 = vmatprep.subr.bf16.mxu0 0
      %1559 = vmatpush1.bf16.msra.mxu0 0
      %1560 = vmatprep.subr.bf16.mxu0 0
      %1561 = vmatpush1.bf16.msra.mxu0 0
      %1562 = vmatprep.subr.bf16.mxu0 0
      %1563 = vmatpush1.bf16.msra.mxu0 0
      %1564 = vmatprep.subr.bf16.mxu0 0
      %1565 = vmatpush1.bf16.msra.mxu0 0
      %1566 = vmatprep.subr.bf16.mxu0 0
      %1567 = vmatpush1.bf16.msra.mxu0 0
      %1568 = vmatprep.subr.bf16.mxu0 0
      %1569 = vmatpush1.bf16.msra.mxu0 0
      %1570 = vmatprep.subr.bf16.mxu0 0
      %1571 = vmatpush1.bf16.msra.mxu0 0
      %1572 = vmatprep.subr.bf16.mxu0 0
      %1573 = vmatpush1.bf16.msra.mxu0 0
      %1574 = vmatprep.subr.bf16.mxu0 0
      %1575 = vmatpush1.bf16.msra.mxu0 0
      %1576 = vmatprep.subr.bf16.mxu0 0
      %1577 = vmatpush1.bf16.msra.mxu0 0
      %1578 = vmatprep.subr.bf16.mxu0 0
      %1579 = vmatpush1.bf16.msra.mxu0 0
      %1580 = vmatprep.subr.bf16.mxu0 0
      %1581 = vmatpush1.bf16.msra.mxu0 0
      %1582 = vmatprep.subr.bf16.mxu0 0
      %1583 = vmatpush1.bf16.msra.mxu0 0
      %1584 = vmatprep.mubr.bf16.mxu0 0
      %1585 = vmatmul.mubr.bf16.gmra.mrb[0].mxu0 %v1550
      %v1586 = vpop.f32.mrb[0].mxu0
      %v1587 = vadd.f32 0.0, %v1586
      %v1588 = vpop.f32.mrb[0].mxu0
      %v1589 = vpop.f32.mrb[0].mxu0
      %v1590 = vpop.f32.mrb[0].mxu0
      %1591 = vdwg.mxu0
      %1592 = vrot.lane.b32.xlu0 %v462, 56
      %v1593 = vpop.permute.xlu0 %1592
      %v1596 = vsel %vm981, %v1167, 0
      %1598 = vmatprep.subr.bf16.mxu0 0
      %1599 = vmatpush1.bf16.msra.mxu0 %v1593
      %1600 = vmatprep.subr.bf16.mxu0 0
      %1601 = vmatpush1.bf16.msra.mxu0 0
      %1602 = vmatprep.subr.bf16.mxu0 0
      %1603 = vmatpush1.bf16.msra.mxu0 0
      %1604 = vmatprep.subr.bf16.mxu0 0
      %1605 = vmatpush1.bf16.msra.mxu0 0
      %1606 = vmatprep.subr.bf16.mxu0 0
      %1607 = vmatpush1.bf16.msra.mxu0 0
      %1608 = vmatprep.subr.bf16.mxu0 0
      %1609 = vmatpush1.bf16.msra.mxu0 0
      %1610 = vmatprep.subr.bf16.mxu0 0
      %1611 = vmatpush1.bf16.msra.mxu0 0
      %1612 = vmatprep.subr.bf16.mxu0 0
      %1613 = vmatpush1.bf16.msra.mxu0 0
      %1614 = vmatprep.subr.bf16.mxu0 0
      %1615 = vmatpush1.bf16.msra.mxu0 0
      %1616 = vmatprep.subr.bf16.mxu0 0
      %1617 = vmatpush1.bf16.msra.mxu0 0
      %1618 = vmatprep.subr.bf16.mxu0 0
      %1619 = vmatpush1.bf16.msra.mxu0 0
      %1620 = vmatprep.subr.bf16.mxu0 0
      %1621 = vmatpush1.bf16.msra.mxu0 0
      %1622 = vmatprep.subr.bf16.mxu0 0
      %1623 = vmatpush1.bf16.msra.mxu0 0
      %1624 = vmatprep.subr.bf16.mxu0 0
      %1625 = vmatpush1.bf16.msra.mxu0 0
      %1626 = vmatprep.subr.bf16.mxu0 0
      %1627 = vmatpush1.bf16.msra.mxu0 0
      %1628 = vmatprep.subr.bf16.mxu0 0
      %1629 = vmatpush1.bf16.msra.mxu0 0
      %1630 = vmatprep.mubr.bf16.mxu0 0
      %1631 = vmatmul.mubr.bf16.gmra.mrb[0].mxu0 %v1596
      %v1632 = vpop.f32.mrb[0].mxu0
      %v1633 = vadd.f32 0.0, %v1632
      %v1634 = vpop.f32.mrb[0].mxu0
      %v1635 = vpop.f32.mrb[0].mxu0
      %v1636 = vpop.f32.mrb[0].mxu0
      %1637 = vdwg.mxu0
      %1638 = vrot.lane.b32.xlu0 %v462, 48
      %v1639 = vpop.permute.xlu0 %1638
      %v1642 = vsel %vm981, %v1168, 0
      %1644 = vmatprep.subr.bf16.mxu0 0
      %1645 = vmatpush1.bf16.msra.mxu0 %v1639
      %1646 = vmatprep.subr.bf16.mxu0 0
      %1647 = vmatpush1.bf16.msra.mxu0 0
      %1648 = vmatprep.subr.bf16.mxu0 0
      %1649 = vmatpush1.bf16.msra.mxu0 0
      %1650 = vmatprep.subr.bf16.mxu0 0
      %1651 = vmatpush1.bf16.msra.mxu0 0
      %1652 = vmatprep.subr.bf16.mxu0 0
      %1653 = vmatpush1.bf16.msra.mxu0 0
      %1654 = vmatprep.subr.bf16.mxu0 0
      %1655 = vmatpush1.bf16.msra.mxu0 0
      %1656 = vmatprep.subr.bf16.mxu0 0
      %1657 = vmatpush1.bf16.msra.mxu0 0
      %1658 = vmatprep.subr.bf16.mxu0 0
      %1659 = vmatpush1.bf16.msra.mxu0 0
      %1660 = vmatprep.subr.bf16.mxu0 0
      %1661 = vmatpush1.bf16.msra.mxu0 0
      %1662 = vmatprep.subr.bf16.mxu0 0
      %1663 = vmatpush1.bf16.msra.mxu0 0
      %1664 = vmatprep.subr.bf16.mxu0 0
      %1665 = vmatpush1.bf16.msra.mxu0 0
      %1666 = vmatprep.subr.bf16.mxu0 0
      %1667 = vmatpush1.bf16.msra.mxu0 0
      %1668 = vmatprep.subr.bf16.mxu0 0
      %1669 = vmatpush1.bf16.msra.mxu0 0
      %1670 = vmatprep.subr.bf16.mxu0 0
      %1671 = vmatpush1.bf16.msra.mxu0 0
      %1672 = vmatprep.subr.bf16.mxu0 0
      %1673 = vmatpush1.bf16.msra.mxu0 0
      %1674 = vmatprep.subr.bf16.mxu0 0
      %1675 = vmatpush1.bf16.msra.mxu0 0
      %1676 = vmatprep.mubr.bf16.mxu0 0
      %1677 = vmatmul.mubr.bf16.gmra.mrb[0].mxu0 %v1642
      %v1678 = vpop.f32.mrb[0].mxu0
      %v1679 = vadd.f32 0.0, %v1678
      %v1680 = vpop.f32.mrb[0].mxu0
      %v1681 = vpop.f32.mrb[0].mxu0
      %v1682 = vpop.f32.mrb[0].mxu0
      %1683 = vdwg.mxu0
      %1684 = vrot.lane.b32.xlu0 %v462, 40
      %v1685 = vpop.permute.xlu0 %1684
      %v1688 = vsel %vm981, %v1169, 0
      %1690 = vmatprep.subr.bf16.mxu0 0
      %1691 = vmatpush1.bf16.msra.mxu0 %v1685
      %1692 = vmatprep.subr.bf16.mxu0 0
      %1693 = vmatpush1.bf16.msra.mxu0 0
      %1694 = vmatprep.subr.bf16.mxu0 0
      %1695 = vmatpush1.bf16.msra.mxu0 0
      %1696 = vmatprep.subr.bf16.mxu0 0
      %1697 = vmatpush1.bf16.msra.mxu0 0
      %1698 = vmatprep.subr.bf16.mxu0 0
      %1699 = vmatpush1.bf16.msra.mxu0 0
      %1700 = vmatprep.subr.bf16.mxu0 0
      %1701 = vmatpush1.bf16.msra.mxu0 0
      %1702 = vmatprep.subr.bf16.mxu0 0
      %1703 = vmatpush1.bf16.msra.mxu0 0
      %1704 = vmatprep.subr.bf16.mxu0 0
      %1705 = vmatpush1.bf16.msra.mxu0 0
      %1706 = vmatprep.subr.bf16.mxu0 0
      %1707 = vmatpush1.bf16.msra.mxu0 0
      %1708 = vmatprep.subr.bf16.mxu0 0
      %1709 = vmatpush1.bf16.msra.mxu0 0
      %1710 = vmatprep.subr.bf16.mxu0 0
      %1711 = vmatpush1.bf16.msra.mxu0 0
      %1712 = vmatprep.subr.bf16.mxu0 0
      %1713 = vmatpush1.bf16.msra.mxu0 0
      %1714 = vmatprep.subr.bf16.mxu0 0
      %1715 = vmatpush1.bf16.msra.mxu0 0
      %1716 = vmatprep.subr.bf16.mxu0 0
      %1717 = vmatpush1.bf16.msra.mxu0 0
      %1718 = vmatprep.subr.bf16.mxu0 0
      %1719 = vmatpush1.bf16.msra.mxu0 0
      %1720 = vmatprep.subr.bf16.mxu0 0
      %1721 = vmatpush1.bf16.msra.mxu0 0
      %1722 = vmatprep.mubr.bf16.mxu0 0
      %1723 = vmatmul.mubr.bf16.gmra.mrb[0].mxu0 %v1688
      %v1724 = vpop.f32.mrb[0].mxu0
      %v1725 = vadd.f32 0.0, %v1724
      %v1726 = vpop.f32.mrb[0].mxu0
      %v1727 = vpop.f32.mrb[0].mxu0
      %v1728 = vpop.f32.mrb[0].mxu0
      %1729 = vdwg.mxu0
      %1730 = vrot.lane.b32.xlu0 %v462, 32
      %v1731 = vpop.permute.xlu0 %1730
      %v1734 = vsel %vm981, %v1170, 0
      %1736 = vmatprep.subr.bf16.mxu0 0
      %1737 = vmatpush1.bf16.msra.mxu0 %v1731
      %1738 = vmatprep.subr.bf16.mxu0 0
      %1739 = vmatpush1.bf16.msra.mxu0 0
      %1740 = vmatprep.subr.bf16.mxu0 0
      %1741 = vmatpush1.bf16.msra.mxu0 0
      %1742 = vmatprep.subr.bf16.mxu0 0
      %1743 = vmatpush1.bf16.msra.mxu0 0
      %1744 = vmatprep.subr.bf16.mxu0 0
      %1745 = vmatpush1.bf16.msra.mxu0 0
      %1746 = vmatprep.subr.bf16.mxu0 0
      %1747 = vmatpush1.bf16.msra.mxu0 0
      %1748 = vmatprep.subr.bf16.mxu0 0
      %1749 = vmatpush1.bf16.msra.mxu0 0
      %1750 = vmatprep.subr.bf16.mxu0 0
      %1751 = vmatpush1.bf16.msra.mxu0 0
      %1752 = vmatprep.subr.bf16.mxu0 0
      %1753 = vmatpush1.bf16.msra.mxu0 0
      %1754 = vmatprep.subr.bf16.mxu0 0
      %1755 = vmatpush1.bf16.msra.mxu0 0
      %1756 = vmatprep.subr.bf16.mxu0 0
      %1757 = vmatpush1.bf16.msra.mxu0 0
      %1758 = vmatprep.subr.bf16.mxu0 0
      %1759 = vmatpush1.bf16.msra.mxu0 0
      %1760 = vmatprep.subr.bf16.mxu0 0
      %1761 = vmatpush1.bf16.msra.mxu0 0
      %1762 = vmatprep.subr.bf16.mxu0 0
      %1763 = vmatpush1.bf16.msra.mxu0 0
      %1764 = vmatprep.subr.bf16.mxu0 0
      %1765 = vmatpush1.bf16.msra.mxu0 0
      %1766 = vmatprep.subr.bf16.mxu0 0
      %1767 = vmatpush1.bf16.msra.mxu0 0
      %1768 = vmatprep.mubr.bf16.mxu0 0
      %1769 = vmatmul.mubr.bf16.gmra.mrb[0].mxu0 %v1734
      %v1770 = vpop.f32.mrb[0].mxu0
      %v1771 = vadd.f32 0.0, %v1770
      %v1772 = vpop.f32.mrb[0].mxu0
      %v1773 = vpop.f32.mrb[0].mxu0
      %v1774 = vpop.f32.mrb[0].mxu0
      %1775 = vdwg.mxu0
      %1776 = vrot.lane.b32.xlu0 %v462, 24
      %v1777 = vpop.permute.xlu0 %1776
      %v1780 = vsel %vm981, %v1171, 0
      %1782 = vmatprep.subr.bf16.mxu0 0
      %1783 = vmatpush1.bf16.msra.mxu0 %v1777
      %1784 = vmatprep.subr.bf16.mxu0 0
      %1785 = vmatpush1.bf16.msra.mxu0 0
      %1786 = vmatprep.subr.bf16.mxu0 0
      %1787 = vmatpush1.bf16.msra.mxu0 0
      %1788 = vmatprep.subr.bf16.mxu0 0
      %1789 = vmatpush1.bf16.msra.mxu0 0
      %1790 = vmatprep.subr.bf16.mxu0 0
      %1791 = vmatpush1.bf16.msra.mxu0 0
      %1792 = vmatprep.subr.bf16.mxu0 0
      %1793 = vmatpush1.bf16.msra.mxu0 0
      %1794 = vmatprep.subr.bf16.mxu0 0
      %1795 = vmatpush1.bf16.msra.mxu0 0
      %1796 = vmatprep.subr.bf16.mxu0 0
      %1797 = vmatpush1.bf16.msra.mxu0 0
      %1798 = vmatprep.subr.bf16.mxu0 0
      %1799 = vmatpush1.bf16.msra.mxu0 0
      %1800 = vmatprep.subr.bf16.mxu0 0
      %1801 = vmatpush1.bf16.msra.mxu0 0
      %1802 = vmatprep.subr.bf16.mxu0 0
      %1803 = vmatpush1.bf16.msra.mxu0 0
      %1804 = vmatprep.subr.bf16.mxu0 0
      %1805 = vmatpush1.bf16.msra.mxu0 0
      %1806 = vmatprep.subr.bf16.mxu0 0
      %1807 = vmatpush1.bf16.msra.mxu0 0
      %1808 = vmatprep.subr.bf16.mxu0 0
      %1809 = vmatpush1.bf16.msra.mxu0 0
      %1810 = vmatprep.subr.bf16.mxu0 0
      %1811 = vmatpush1.bf16.msra.mxu0 0
      %1812 = vmatprep.subr.bf16.mxu0 0
      %1813 = vmatpush1.bf16.msra.mxu0 0
      %1814 = vmatprep.mubr.bf16.mxu0 0
      %1815 = vmatmul.mubr.bf16.gmra.mrb[0].mxu0 %v1780
      %v1816 = vpop.f32.mrb[0].mxu0
      %v1817 = vadd.f32 0.0, %v1816
      %v1818 = vpop.f32.mrb[0].mxu0
      %v1819 = vpop.f32.mrb[0].mxu0
      %v1820 = vpop.f32.mrb[0].mxu0
      %1821 = vdwg.mxu0
      %1822 = vrot.lane.b32.xlu0 %v462, 16
      %v1823 = vpop.permute.xlu0 %1822
      %v1826 = vsel %vm981, %v1172, 0
      %1828 = vmatprep.subr.bf16.mxu0 0
      %1829 = vmatpush1.bf16.msra.mxu0 %v1823
      %1830 = vmatprep.subr.bf16.mxu0 0
      %1831 = vmatpush1.bf16.msra.mxu0 0
      %1832 = vmatprep.subr.bf16.mxu0 0
      %1833 = vmatpush1.bf16.msra.mxu0 0
      %1834 = vmatprep.subr.bf16.mxu0 0
      %1835 = vmatpush1.bf16.msra.mxu0 0
      %1836 = vmatprep.subr.bf16.mxu0 0
      %1837 = vmatpush1.bf16.msra.mxu0 0
      %1838 = vmatprep.subr.bf16.mxu0 0
      %1839 = vmatpush1.bf16.msra.mxu0 0
      %1840 = vmatprep.subr.bf16.mxu0 0
      %1841 = vmatpush1.bf16.msra.mxu0 0
      %1842 = vmatprep.subr.bf16.mxu0 0
      %1843 = vmatpush1.bf16.msra.mxu0 0
      %1844 = vmatprep.subr.bf16.mxu0 0
      %1845 = vmatpush1.bf16.msra.mxu0 0
      %1846 = vmatprep.subr.bf16.mxu0 0
      %1847 = vmatpush1.bf16.msra.mxu0 0
      %1848 = vmatprep.subr.bf16.mxu0 0
      %1849 = vmatpush1.bf16.msra.mxu0 0
      %1850 = vmatprep.subr.bf16.mxu0 0
      %1851 = vmatpush1.bf16.msra.mxu0 0
      %1852 = vmatprep.subr.bf16.mxu0 0
      %1853 = vmatpush1.bf16.msra.mxu0 0
      %1854 = vmatprep.subr.bf16.mxu0 0
      %1855 = vmatpush1.bf16.msra.mxu0 0
      %1856 = vmatprep.subr.bf16.mxu0 0
      %1857 = vmatpush1.bf16.msra.mxu0 0
      %1858 = vmatprep.subr.bf16.mxu0 0
      %1859 = vmatpush1.bf16.msra.mxu0 0
      %1860 = vmatprep.mubr.bf16.mxu0 0
      %1861 = vmatmul.mubr.bf16.gmra.mrb[0].mxu0 %v1826
      %v1862 = vpop.f32.mrb[0].mxu0
      %v1863 = vadd.f32 0.0, %v1862
      %v1864 = vpop.f32.mrb[0].mxu0
      %v1865 = vpop.f32.mrb[0].mxu0
      %v1866 = vpop.f32.mrb[0].mxu0
      %1867 = vdwg.mxu0
      %1868 = vrot.lane.b32.xlu0 %v462, 8
      %v1869 = vpop.permute.xlu0 %1868
      %v1872 = vsel %vm981, %v1173, 0
      %1874 = vmatprep.subr.bf16.mxu0 0
      %1875 = vmatpush1.bf16.msra.mxu0 %v1869
      %1876 = vmatprep.subr.bf16.mxu0 0
      %1877 = vmatpush1.bf16.msra.mxu0 0
      %1878 = vmatprep.subr.bf16.mxu0 0
      %1879 = vmatpush1.bf16.msra.mxu0 0
      %1880 = vmatprep.subr.bf16.mxu0 0
      %1881 = vmatpush1.bf16.msra.mxu0 0
      %1882 = vmatprep.subr.bf16.mxu0 0
      %1883 = vmatpush1.bf16.msra.mxu0 0
      %1884 = vmatprep.subr.bf16.mxu0 0
      %1885 = vmatpush1.bf16.msra.mxu0 0
      %1886 = vmatprep.subr.bf16.mxu0 0
      %1887 = vmatpush1.bf16.msra.mxu0 0
      %1888 = vmatprep.subr.bf16.mxu0 0
      %1889 = vmatpush1.bf16.msra.mxu0 0
      %1890 = vmatprep.subr.bf16.mxu0 0
      %1891 = vmatpush1.bf16.msra.mxu0 0
      %1892 = vmatprep.subr.bf16.mxu0 0
      %1893 = vmatpush1.bf16.msra.mxu0 0
      %1894 = vmatprep.subr.bf16.mxu0 0
      %1895 = vmatpush1.bf16.msra.mxu0 0
      %1896 = vmatprep.subr.bf16.mxu0 0
      %1897 = vmatpush1.bf16.msra.mxu0 0
      %1898 = vmatprep.subr.bf16.mxu0 0
      %1899 = vmatpush1.bf16.msra.mxu0 0
      %1900 = vmatprep.subr.bf16.mxu0 0
      %1901 = vmatpush1.bf16.msra.mxu0 0
      %1902 = vmatprep.subr.bf16.mxu0 0
      %1903 = vmatpush1.bf16.msra.mxu0 0
      %1904 = vmatprep.subr.bf16.mxu0 0
      %1905 = vmatpush1.bf16.msra.mxu0 0
      %1906 = vmatprep.mubr.bf16.mxu0 0
      %1907 = vmatmul.mubr.bf16.gmra.mrb[0].mxu0 %v1872
      %v1908 = vpop.f32.mrb[0].mxu0
      %v1909 = vadd.f32 0.0, %v1908
      %v1910 = vpop.f32.mrb[0].mxu0
      %v1911 = vpop.f32.mrb[0].mxu0
      %v1912 = vpop.f32.mrb[0].mxu0
      %1913 = vdwg.mxu0
      %1915 = vrot.lane.b32.xlu0 %v1265, 8
      %v1916 = vpop.permute.xlu0 %1915
      %1919 = vrot.lane.b32.xlu0 %v1311, 16
      %v1920 = vpop.permute.xlu0 %1919
      %1923 = vrot.lane.b32.xlu0 %v1357, 24
      %v1924 = vpop.permute.xlu0 %1923
      %1927 = vrot.lane.b32.xlu0 %v1403, 32
      %v1928 = vpop.permute.xlu0 %1927
      %1931 = vrot.lane.b32.xlu0 %v1449, 40
      %v1932 = vpop.permute.xlu0 %1931
      %1935 = vrot.lane.b32.xlu0 %v1495, 48
      %v1936 = vpop.permute.xlu0 %1935
      %1939 = vrot.lane.b32.xlu0 %v1541, 56
      %v1940 = vpop.permute.xlu0 %1939
      %1943 = vrot.lane.b32.xlu0 %v1587, 64
      %v1944 = vpop.permute.xlu0 %1943
      %1947 = vrot.lane.b32.xlu0 %v1633, 72
      %v1948 = vpop.permute.xlu0 %1947
      %1951 = vrot.lane.b32.xlu0 %v1679, 80
      %v1952 = vpop.permute.xlu0 %1951
      %1955 = vrot.lane.b32.xlu0 %v1725, 88
      %v1956 = vpop.permute.xlu0 %1955
      %1959 = vrot.lane.b32.xlu0 %v1771, 96
      %v1960 = vpop.permute.xlu0 %1959
      %1963 = vrot.lane.b32.xlu0 %v1817, 104
      %v1964 = vpop.permute.xlu0 %1963
      %1967 = vrot.lane.b32.xlu0 %v1863, 112
      %v1968 = vpop.permute.xlu0 %1967
      %1971 = vrot.lane.b32.xlu0 %v1909, 120
      %v1972 = vpop.permute.xlu0 %1971
      %vm1974 = vcmask 64512
      %v1975 = vsel %vm1974, %v1218, %v1916
      %v1976 = vsel %vm981, %v1975, %v1920
      %vm1977 = vcmask 195584
      %v1978 = vsel %vm1977, %v1976, %v1924
      %v1979 = vsel %vm417, %v1978, %v1928
      %vm1980 = vcmask 326656
      %v1981 = vsel %vm1980, %v1979, %v1932
      %vm1982 = vcmask 392192
      %v1983 = vsel %vm1982, %v1981, %v1936
      %vm1984 = vcmask 457728
      %v1985 = vsel %vm1984, %v1983, %v1940
      %vm1986 = vcmask 523264
      %v1987 = vsel %vm1986, %v1985, %v1944
      %vm1988 = vcmask 588800
      %v1989 = vsel %vm1988, %v1987, %v1948
      %vm1990 = vcmask 654336
      %v1991 = vsel %vm1990, %v1989, %v1952
      %vm1992 = vcmask 719872
      %v1993 = vsel %vm1992, %v1991, %v1956
      %vm1994 = vcmask 785408
      %v1995 = vsel %vm1994, %v1993, %v1960
      %vm1996 = vcmask 850944
      %v1997 = vsel %vm1996, %v1995, %v1964
      %vm1998 = vcmask 916480
      %v1999 = vsel %vm1998, %v1997, %v1968
      %vm2000 = vcmask 982016
      %v2001 = vsel %vm2000, %v1999, %v1972
      %v2002 = vld [vmem:[%s387] sm:$0xff]
      %v2003 = vmul.f32 %v1179, %v2001
      %v2004 = vadd.f32 %v2002, %v2003
      %v2005 = vld [vmem:[%s383] sm:$0x1]
      %v2007 = vlaneseq
      %v2008 = vshrl.u32 %v2007, 7
      %v2009 = vsub.s32 0, %v2008
      %v2010 = vrot.slane %v2005, %v2009
      %v2012 = vadd.f32 %v2004, %v2010
      %2013 = vst [vmem:[%s387] sm:$0xff] %v2012
      %p2014 = scmp.lt.s32.totalorder %s22, 0
      %s2015 = scalar_select %p2014, %s22, 0
      %s2016 = smul.addr %s2015, 8
      %s2017 = scalar_lea.vmem %s7, %s2016
      // Predicated region
      $region53: #{stochastic_two_layer_rgcn.3} parent=47 // pred_check
        %p2018 = pneg %p227
      $region54: #{stochastic_two_layer_rgcn.3} parent=47 // pred_check_branch
        %2020 = sbr.rel (%p2018) target = $region56
      $region55: #{stochastic_two_layer_rgcn.3} parent=47 // pred_region
        _
      $region56: #{stochastic_two_layer_rgcn.3} parent=47 // pred_fallthru
        _
      // Predicated region
      $region57: #{stochastic_two_layer_rgcn.3} parent=47 // pred_check
        %p2021 = pneg %p227
      $region58: #{stochastic_two_layer_rgcn.3} parent=47 // pred_check_branch
        %2023 = sbr.rel (%p2021) target = $region60
      $region59: #{stochastic_two_layer_rgcn.3} parent=47 // pred_region
        %p2024 = scmp.lt.s32.totalorder %s22, 0
        %s2025 = scalar_select %p2024, %s22, 0
        %s2026 = smul.addr %s2025, 8
        %s2027 = scalar_lea.vmem %s7, %s2026
      $region60: #{stochastic_two_layer_rgcn.3} parent=47 // pred_fallthru
        _
    $region48: #{stochastic_two_layer_rgcn.3} parent=5 // pred_fallthru
      _
    %p2028 = scmp.le.s32.totalorder 2, %s13
    // Predicated region
    $region61: #{stochastic_two_layer_rgcn.3} parent=5 // pred_check
      %p2029 = pneg %p2028
    $region62: #{stochastic_two_layer_rgcn.3} parent=5 // pred_check_branch
      %2031 = sbr.rel (%p2029) target = $region64
    $region63: #{stochastic_two_layer_rgcn.3} parent=5 // pred_region
      %s2032 = ssub.s32 %s13, 2
    $region64: #{stochastic_two_layer_rgcn.3} parent=5 // pred_fallthru
      _
  $region6: #{stochastic_two_layer_rgcn.3} parent=0 // loop_footer
    %s17 = sadd.s32 1, %s13
  $region7: #{stochastic_two_layer_rgcn.3} parent=0 // loop_footer_branch
    %12 = sbr.rel target = $region3
  $region8: #{stochastic_two_layer_rgcn.3} parent=0 // loop_exit
    _

</llo_original>
